<compile_context>
chip_gen: v5e
topology: v5e:2x2
jax: 0.10.0
libtpu: 0.0.40
codegen_flags: <defaults>
</compile_context>

<pallas_src>
import numpy as np
import jax
import jax.numpy as jnp
from jax.experimental import pallas as pl
from jax.experimental.pallas import tpu as pltpu


_VMEM = pl.BlockSpec(memory_space=pltpu.MemorySpace.VMEM)
_SMEM = pl.BlockSpec(memory_space=pltpu.MemorySpace.SMEM)

# Constant 4x4 gate matrices (both symmetric, so M == M^T).
_I2 = np.eye(2, dtype=np.float32)
_H1 = (1.0 / np.sqrt(2.0)) * np.array([[1.0, 1.0], [1.0, -1.0]], np.float32)
_H_ALL = np.kron(_H1, _H1).astype(np.float32)                 # H (x) H
_CX01 = np.array([[1, 0, 0, 0],
                  [0, 0, 0, 1],
                  [0, 0, 1, 0],
                  [0, 1, 0, 0]], np.float32)                  # CX, control q0, target q1


# ---------------------------------------------------------------------------
# Pallas kernels
# ---------------------------------------------------------------------------

def _conv_pool_kernel(p_ref, w_ref, b_ref, o_ref):
    """conv-as-matmul (all 4 pool members in one dot) + 2x2 max + bias + ReLU.

    p_ref: (4*M, K) im2col patches, member-major row blocks
    w_ref: (K, C);  b_ref: (1, C);  o_ref: (M, C)
    """
    y = jnp.dot(p_ref[...], w_ref[...], preferred_element_type=jnp.float32)   # (4M, C)
    m = o_ref.shape[0]
    h = jnp.maximum(jnp.maximum(y[0:m], y[m:2 * m]),
                    jnp.maximum(y[2 * m:3 * m], y[3 * m:4 * m]))
    o_ref[...] = jnp.maximum(h + b_ref[...], 0.0)


def _tail_kernel(p_ref, w2_ref, b2_ref, wf1_ref, bf1_ref, wf2_ref, bf2_ref,
                 had_ref, cx_ref, ura_ref, fc3_ref, o_ref):
    """conv2+ReLU+pool -> fc1+ReLU -> fc2 -> 2-qubit QNN -> fc3 -> cat(y, 1-y).

    p_ref  : (4*16*B, 50) conv2 im2col patches; rows (member, position, batch)
    w2_ref : (50, 16);  b2_ref: (1, 16)
    wf1_ref: (256, 64) in (position, channel) row order;  bf1_ref: (1, 64)
    wf2_ref: (64, 2);   bf2_ref: (1, 2)
    had_ref/cx_ref/ura_ref: (4, 4) real gate matrices (already "transposed")
    fc3_ref: (2,) SMEM scalars [w3, b3]
    o_ref  : (B, 2)
    """
    bsz = o_ref.shape[0]

    # --- conv2 + 2x2 max-pool + bias + ReLU (single MXU dot) ---------------
    y = jnp.dot(p_ref[...], w2_ref[...], preferred_element_type=jnp.float32)  # (4*M2, 16)
    m2 = y.shape[0] // 4                                                       # 16 * B
    h2 = jnp.maximum(jnp.maximum(y[0:m2], y[m2:2 * m2]),
                     jnp.maximum(y[2 * m2:3 * m2], y[3 * m2:4 * m2]))
    h2 = jnp.maximum(h2 + b2_ref[...], 0.0)            # (16*B, 16), rows (pos, b)

    # --- fc1 as 16 accumulating position-block matmuls (no in-kernel reshape)
    npos = m2 // bsz                                    # 16 spatial positions
    nch = h2.shape[1]                                   # 16 channels
    acc = None
    for p in range(npos):
        t = jnp.dot(h2[p * bsz:(p + 1) * bsz, :],
                    wf1_ref[p * nch:(p + 1) * nch, :],
                    preferred_element_type=jnp.float32)
        acc = t if acc is None else acc + t
    hfc = jnp.maximum(acc + bf1_ref[...], 0.0)          # (B, 64)

    # --- fc2 ---------------------------------------------------------------
    z = jnp.dot(hfc, wf2_ref[...], preferred_element_type=jnp.float32) + bf2_ref[...]  # (B, 2)

    # --- exact 2-qubit QNN statevector simulation --------------------------
    x0 = z[:, 0:1]
    x1 = z[:, 1:2]
    col = jax.lax.broadcasted_iota(jnp.int32, (bsz, 4), 1)
    m_q0 = ((col == 1) | (col == 3)).astype(jnp.float32)
    m_q1 = (col >= 2).astype(jnp.float32)
    re = (col == 0).astype(jnp.float32)                 # |00>
    im = jnp.zeros((bsz, 4), jnp.float32)

    def phase(re, im, mask, phi):                       # diag phase on masked states
        cp = jnp.cos(phi)
        sp = jnp.sin(phi)
        c = 1.0 + mask * (cp - 1.0)
        s = mask * sp
        return re * c - im * s, re * s + im * c

    had = had_ref[...]
    cx = cx_ref[...]
    pi = np.float32(np.pi)
    for _ in range(2):                                  # ZZFeatureMap, reps=2
        re = jnp.dot(re, had, preferred_element_type=jnp.float32)
        im = jnp.dot(im, had, preferred_element_type=jnp.float32)
        re, im = phase(re, im, m_q0, 2.0 * x0)
        re, im = phase(re, im, m_q1, 2.0 * x1)
        re = jnp.dot(re, cx, preferred_element_type=jnp.float32)
        im = jnp.dot(im, cx, preferred_element_type=jnp.float32)
        re, im = phase(re, im, m_q1, 2.0 * (pi - x0) * (pi - x1))
        re = jnp.dot(re, cx, preferred_element_type=jnp.float32)
        im = jnp.dot(im, cx, preferred_element_type=jnp.float32)

    ura = ura_ref[...]                                  # RealAmplitudes (real) U^T
    re = jnp.dot(re, ura, preferred_element_type=jnp.float32)
    im = jnp.dot(im, ura, preferred_element_type=jnp.float32)

    zz = (1.0 - 2.0 * m_q0) * (1.0 - 2.0 * m_q1)        # <Z x Z> signs [1,-1,-1,1]
    q = jnp.sum((re * re + im * im) * zz, axis=-1, keepdims=True)   # (B, 1)

    # --- fc3 + cat((y, 1-y), -1) -------------------------------------------
    yv = q * fc3_ref[0] + fc3_ref[1]
    oc = jax.lax.broadcasted_iota(jnp.int32, o_ref.shape, 1)
    o_ref[...] = jnp.where(oc == 0, yv, 1.0 - yv)


# ---------------------------------------------------------------------------
# pallas_call wrappers
# ---------------------------------------------------------------------------

def conv1_block(patches, w, b):
    rows, kf = patches.shape
    m = rows // 4
    c = w.shape[1]
    cost = pl.CostEstimate(
        flops=2 * rows * kf * c,
        transcendentals=0,
        bytes_accessed=4 * (rows * kf + kf * c + c + m * c))
    return pl.pallas_call(
        _conv_pool_kernel,
        out_shape=jax.ShapeDtypeStruct((m, c), jnp.float32),
        in_specs=[_VMEM, _VMEM, _VMEM],
        out_specs=_VMEM,
        cost_estimate=cost,
    )(patches, w, b.reshape(1, c))


def tail_block(patches2, params, u_ra_t, bsz):
    rows, kf = patches2.shape
    cost = pl.CostEstimate(
        flops=2 * (rows * kf * 16 + 16 * bsz * 16 * 64 + bsz * 64 * 2 + 14 * bsz * 4 * 4),
        transcendentals=16 * bsz,
        bytes_accessed=4 * (rows * kf + 50 * 16 + 16 + 256 * 64 + 64
                            + 64 * 2 + 2 + 3 * 16 + 2 + bsz * 2))
    return pl.pallas_call(
        _tail_kernel,
        out_shape=jax.ShapeDtypeStruct((bsz, 2), jnp.float32),
        in_specs=[_VMEM] * 10 + [_SMEM],
        out_specs=_VMEM,
        cost_estimate=cost,
    )(patches2,
      params["w2r"], params["b2"].reshape(1, 16),
      params["W_fc1"], params["b_fc1"].reshape(1, 64),
      params["W_fc2"], params["b_fc2"].reshape(1, 2),
      jnp.asarray(_H_ALL), jnp.asarray(_CX01), u_ra_t,
      params["fc3_wb"])


# ---------------------------------------------------------------------------
# Jitted glue: im2col + pool-member grouping, RealAmplitudes matrix from theta
# ---------------------------------------------------------------------------

def _pooled_patches(x, k, batch_minor):
    """x (B,H,W,C) -> (4 * Mo, C*k*k) im2col patches grouped by 2x2 pool member.

    Feature order is (c, ky, kx), matching a flattened torch conv weight.
    Within each member block, rows are ordered (b, oh, ow) if batch_minor is
    False, else (oh, ow, b)."""
    b, h, w, c = x.shape
    ho, wo = h - k + 1, w - k + 1
    cols = [x[:, ky:ky + ho, kx:kx + wo, ci]
            for ci in range(c) for ky in range(k) for kx in range(k)]
    p = jnp.stack(cols, axis=-1)                       # (B, ho, wo, C*k*k)
    groups = []
    for wy in range(2):
        for wx in range(2):
            g = p[:, wy::2, wx::2, :]                  # (B, ho//2, wo//2, K)
            if batch_minor:
                g = jnp.transpose(g, (1, 2, 0, 3))     # (oh, ow, B, K)
            groups.append(g.reshape(-1, p.shape[-1]))
    return jnp.concatenate(groups, axis=0)


def _ry(t):
    c, s = jnp.cos(t / 2.0), jnp.sin(t / 2.0)
    return jnp.array([[c, -s], [s, c]], dtype=jnp.float32)


def _real_amplitudes_matrix_t(theta):
    """Combined (real) unitary of RealAmplitudes(2, reps=1), transposed for
    row-vector state application (state_row @ U^T)."""
    i2 = jnp.asarray(_I2)
    cx = jnp.asarray(_CX01)
    m1 = jnp.kron(i2, _ry(theta[0]))      # RY(theta0) on q0
    m2 = jnp.kron(_ry(theta[1]), i2)      # RY(theta1) on q1
    m4 = jnp.kron(i2, _ry(theta[2]))      # RY(theta2) on q0
    m5 = jnp.kron(_ry(theta[3]), i2)      # RY(theta3) on q1
    u = m5 @ m4 @ cx @ m2 @ m1
    return u.T


# ---------------------------------------------------------------------------
# Forward pass
# ---------------------------------------------------------------------------

@jax.jit
def net_forward(x_nchw, params):
    bsz = x_nchw.shape[0]
    x = jnp.transpose(x_nchw, (0, 2, 3, 1)).astype(jnp.float32)      # NHWC (B,28,28,1)

    # conv1 (1->2, k=5) + ReLU + maxpool2 -> (B,12,12,2)       [kernel A]
    p1 = _pooled_patches(x, k=5, batch_minor=False)                  # (4*B*144, 25)
    h1 = conv1_block(p1, params["w1r"], params["b1"]).reshape(bsz, 12, 12, 2)

    # conv2 + ReLU + pool + fc1 + ReLU + fc2 + QNN + fc3 + cat  [kernel B]
    # Dropout2d: identity (eval mode).
    p2 = _pooled_patches(h1, k=5, batch_minor=True)                  # (4*16*B, 50)
    u_ra_t = _real_amplitudes_matrix_t(params["qnn_theta"])          # parameter-only prep
    return tail_block(p2, params, u_ra_t, bsz)                       # (B, 2)


def init_params(key):
    ks = jax.random.split(key, 11)
    n = jax.random.normal
    # torch-layout weights
    w1 = 0.1 * n(ks[0], (2, 1, 5, 5), jnp.float32)        # conv1.weight
    w2 = 0.1 * n(ks[1], (16, 2, 5, 5), jnp.float32)       # conv2.weight
    w_fc1 = 0.05 * n(ks[4], (64, 256), jnp.float32)       # fc1.weight, cols in (c,oh,ow) order
    # fc1 weight permuted ONCE at init so kernel B consumes the pooled conv2
    # output directly in (position, channel) order (folds the NCHW flatten).
    w_fc1_k = jnp.transpose(w_fc1.reshape(64, 16, 4, 4), (2, 3, 1, 0)).reshape(256, 64)
    return {
        "w1r": w1.reshape(2, 25).T,                        # (25, 2), features (c,ky,kx)
        "b1": 0.1 * n(ks[2], (2,), jnp.float32),
        "w2r": w2.reshape(16, 50).T,                       # (50, 16)
        "b2": 0.1 * n(ks[3], (16,), jnp.float32),
        "W_fc1": w_fc1_k,
        "b_fc1": 0.05 * n(ks[5], (64,), jnp.float32),
        "W_fc2": 0.1 * n(ks[6], (64, 2), jnp.float32),     # torch fc2.weight.T
        "b_fc2": 0.1 * n(ks[7], (2,), jnp.float32),
        "qnn_theta": 0.5 * n(ks[8], (4,), jnp.float32),
        "fc3_wb": jnp.concatenate([0.5 * n(ks[9], (1,), jnp.float32),     # fc3 weight
                                   0.1 * n(ks[10], (1,), jnp.float32)]),  # fc3 bias
    }


if __name__ == "__main__":
    key = jax.random.PRNGKey(0)
    k_in, k_par = jax.random.split(key)
    x = jax.random.normal(k_in, (2, 1, 28, 28), jnp.float32)   # NCHW, like PyTorch
    params = init_params(k_par)

    out = jax.block_until_ready(net_forward(x, params))

    assert out.shape == (2, 2), out.shape
    assert bool(jnp.all(jnp.isfinite(out)))
    # rows are (y, 1-y) so each row sums to 1
    assert bool(jnp.allclose(out.sum(axis=-1), 1.0, atol=1e-5))
    print("KERNEL_OK")
</pallas_src>

<mosaic_0001>
module attributes {stable_mosaic.version = 11 : i64} {
  func.func @_conv_pool_kernel(%arg0: memref<1152x25xf32, #tpu.memory_space<vmem>>, %arg1: memref<25x2xf32, #tpu.memory_space<vmem>>, %arg2: memref<1x2xf32, #tpu.memory_space<vmem>>, %arg3: memref<288x2xf32, #tpu.memory_space<vmem>>) attributes {dimension_semantics = [], scalar_prefetch = 0 : i64, scratch_operands = 0 : i64, tpu.core_type = #tpu.core_type<tc>} {
    %c0 = arith.constant 0 : index
    %c0_0 = arith.constant 0 : index
    %0 = vector.load %arg0[%c0, %c0_0] : memref<1152x25xf32, #tpu.memory_space<vmem>>, vector<1152x25xf32>
    %c0_1 = arith.constant 0 : index
    %c0_2 = arith.constant 0 : index
    %1 = vector.load %arg1[%c0_1, %c0_2] : memref<25x2xf32, #tpu.memory_space<vmem>>, vector<25x2xf32>
    %cst = arith.constant dense<0.000000e+00> : vector<1152x2xf32>
    %2 = tpu.matmul %0, %1, %cst {dimension_numbers = #tpu.dot_dimension_numbers<[1], [0], [0], [1], [0, 0, 1, 1], [], []>} : vector<1152x25xf32>, vector<25x2xf32>, vector<1152x2xf32> -> vector<1152x2xf32>
    %3 = vector.extract_strided_slice %2 {offsets = [0, 0], sizes = [288, 2], strides = [1, 1]} : vector<1152x2xf32> to vector<288x2xf32>
    %4 = vector.extract_strided_slice %2 {offsets = [288, 0], sizes = [288, 2], strides = [1, 1]} : vector<1152x2xf32> to vector<288x2xf32>
    %5 = arith.maximumf %3, %4 : vector<288x2xf32>
    %6 = vector.extract_strided_slice %2 {offsets = [576, 0], sizes = [288, 2], strides = [1, 1]} : vector<1152x2xf32> to vector<288x2xf32>
    %7 = vector.extract_strided_slice %2 {offsets = [864, 0], sizes = [288, 2], strides = [1, 1]} : vector<1152x2xf32> to vector<288x2xf32>
    %8 = arith.maximumf %6, %7 : vector<288x2xf32>
    %9 = arith.maximumf %5, %8 : vector<288x2xf32>
    %c0_3 = arith.constant 0 : index
    %c0_4 = arith.constant 0 : index
    %10 = vector.load %arg2[%c0_3, %c0_4] : memref<1x2xf32, #tpu.memory_space<vmem>>, vector<1x2xf32>
    %11 = vector.broadcast %10 : vector<1x2xf32> to vector<288x2xf32>
    %12 = arith.addf %9, %11 : vector<288x2xf32>
    %cst_5 = arith.constant 0.000000e+00 : f32
    %13 = vector.broadcast %cst_5 : f32 to vector<288x2xf32>
    %14 = arith.maximumf %12, %13 : vector<288x2xf32>
    %c0_6 = arith.constant 0 : index
    %c0_7 = arith.constant 0 : index
    %15 = vector.load %arg3[%c0_6, %c0_7] : memref<288x2xf32, #tpu.memory_space<vmem>>, vector<288x2xf32>
    tpu.vector_store %arg3[%c0_6, %c0_7], %14 {strides = array<i32>} : memref<288x2xf32, #tpu.memory_space<vmem>>, vector<288x2xf32>,
    return
  }
}

module attributes {stable_mosaic.version = 11 : i64} {
  func.func @_tail_kernel(%arg0: memref<128x50xf32, #tpu.memory_space<vmem>>, %arg1: memref<50x16xf32, #tpu.memory_space<vmem>>, %arg2: memref<1x16xf32, #tpu.memory_space<vmem>>, %arg3: memref<256x64xf32, #tpu.memory_space<vmem>>, %arg4: memref<1x64xf32, #tpu.memory_space<vmem>>, %arg5: memref<64x2xf32, #tpu.memory_space<vmem>>, %arg6: memref<1x2xf32, #tpu.memory_space<vmem>>, %arg7: memref<4x4xf32, #tpu.memory_space<vmem>>, %arg8: memref<4x4xf32, #tpu.memory_space<vmem>>, %arg9: memref<4x4xf32, #tpu.memory_space<vmem>>, %arg10: memref<2xf32, #tpu.memory_space<smem>>, %arg11: memref<2x2xf32, #tpu.memory_space<vmem>>) attributes {dimension_semantics = [], scalar_prefetch = 0 : i64, scratch_operands = 0 : i64, tpu.core_type = #tpu.core_type<tc>} {
    %c0 = arith.constant 0 : index
    %c0_0 = arith.constant 0 : index
    %0 = vector.load %arg0[%c0, %c0_0] : memref<128x50xf32, #tpu.memory_space<vmem>>, vector<128x50xf32>
    %c0_1 = arith.constant 0 : index
    %c0_2 = arith.constant 0 : index
    %1 = vector.load %arg1[%c0_1, %c0_2] : memref<50x16xf32, #tpu.memory_space<vmem>>, vector<50x16xf32>
    %cst = arith.constant dense<0.000000e+00> : vector<128x16xf32>
    %2 = tpu.matmul %0, %1, %cst {dimension_numbers = #tpu.dot_dimension_numbers<[1], [0], [0], [1], [0, 0, 1, 1], [], []>} : vector<128x50xf32>, vector<50x16xf32>, vector<128x16xf32> -> vector<128x16xf32>
    %3 = vector.extract_strided_slice %2 {offsets = [0, 0], sizes = [32, 16], strides = [1, 1]} : vector<128x16xf32> to vector<32x16xf32>
    %4 = vector.extract_strided_slice %2 {offsets = [32, 0], sizes = [32, 16], strides = [1, 1]} : vector<128x16xf32> to vector<32x16xf32>
    %5 = arith.maximumf %3, %4 : vector<32x16xf32>
    %6 = vector.extract_strided_slice %2 {offsets = [64, 0], sizes = [32, 16], strides = [1, 1]} : vector<128x16xf32> to vector<32x16xf32>
    %7 = vector.extract_strided_slice %2 {offsets = [96, 0], sizes = [32, 16], strides = [1, 1]} : vector<128x16xf32> to vector<32x16xf32>
    %8 = arith.maximumf %6, %7 : vector<32x16xf32>
    %9 = arith.maximumf %5, %8 : vector<32x16xf32>
    %c0_3 = arith.constant 0 : index
    %c0_4 = arith.constant 0 : index
    %10 = vector.load %arg2[%c0_3, %c0_4] : memref<1x16xf32, #tpu.memory_space<vmem>>, vector<1x16xf32>
    %11 = vector.broadcast %10 : vector<1x16xf32> to vector<32x16xf32>
    %12 = arith.addf %9, %11 : vector<32x16xf32>
    %cst_5 = arith.constant 0.000000e+00 : f32
    %13 = vector.broadcast %cst_5 : f32 to vector<32x16xf32>
    %14 = arith.maximumf %12, %13 : vector<32x16xf32>
    %15 = vector.extract_strided_slice %14 {offsets = [0, 0], sizes = [2, 16], strides = [1, 1]} : vector<32x16xf32> to vector<2x16xf32>
    %c0_6 = arith.constant 0 : index
    %c0_7 = arith.constant 0 : index
    %16 = vector.load %arg3[%c0_6, %c0_7] : memref<256x64xf32, #tpu.memory_space<vmem>>, vector<16x64xf32>
    %cst_8 = arith.constant dense<0.000000e+00> : vector<2x64xf32>
    %17 = tpu.matmul %15, %16, %cst_8 {dimension_numbers = #tpu.dot_dimension_numbers<[1], [0], [0], [1], [0, 0, 1, 1], [], []>} : vector<2x16xf32>, vector<16x64xf32>, vector<2x64xf32> -> vector<2x64xf32>
    %18 = vector.extract_strided_slice %14 {offsets = [2, 0], sizes = [2, 16], strides = [1, 1]} : vector<32x16xf32> to vector<2x16xf32>
    %c16 = arith.constant 16 : index
    %c0_9 = arith.constant 0 : index
    %19 = vector.load %arg3[%c16, %c0_9] : memref<256x64xf32, #tpu.memory_space<vmem>>, vector<16x64xf32>
    %cst_10 = arith.constant dense<0.000000e+00> : vector<2x64xf32>
    %20 = tpu.matmul %18, %19, %cst_10 {dimension_numbers = #tpu.dot_dimension_numbers<[1], [0], [0], [1], [0, 0, 1, 1], [], []>} : vector<2x16xf32>, vector<16x64xf32>, vector<2x64xf32> -> vector<2x64xf32>
    %21 = arith.addf %17, %20 : vector<2x64xf32>
    %22 = vector.extract_strided_slice %14 {offsets = [4, 0], sizes = [2, 16], strides = [1, 1]} : vector<32x16xf32> to vector<2x16xf32>
    %c32 = arith.constant 32 : index
    %c0_11 = arith.constant 0 : index
    %23 = vector.load %arg3[%c32, %c0_11] : memref<256x64xf32, #tpu.memory_space<vmem>>, vector<16x64xf32>
    %cst_12 = arith.constant dense<0.000000e+00> : vector<2x64xf32>
    %24 = tpu.matmul %22, %23, %cst_12 {dimension_numbers = #tpu.dot_dimension_numbers<[1], [0], [0], [1], [0, 0, 1, 1], [], []>} : vector<2x16xf32>, vector<16x64xf32>, vector<2x64xf32> -> vector<2x64xf32>
    %25 = arith.addf %21, %24 : vector<2x64xf32>
    %26 = vector.extract_strided_slice %14 {offsets = [6, 0], sizes = [2, 16], strides = [1, 1]} : vector<32x16xf32> to vector<2x16xf32>
    %c48 = arith.constant 48 : index
    %c0_13 = arith.constant 0 : index
    %27 = vector.load %arg3[%c48, %c0_13] : memref<256x64xf32, #tpu.memory_space<vmem>>, vector<16x64xf32>
    %cst_14 = arith.constant dense<0.000000e+00> : vector<2x64xf32>
    %28 = tpu.matmul %26, %27, %cst_14 {dimension_numbers = #tpu.dot_dimension_numbers<[1], [0], [0], [1], [0, 0, 1, 1], [], []>} : vector<2x16xf32>, vector<16x64xf32>, vector<2x64xf32> -> vector<2x64xf32>
    %29 = arith.addf %25, %28 : vector<2x64xf32>
    %30 = vector.extract_strided_slice %14 {offsets = [8, 0], sizes = [2, 16], strides = [1, 1]} : vector<32x16xf32> to vector<2x16xf32>
    %c64 = arith.constant 64 : index
    %c0_15 = arith.constant 0 : index
    %31 = vector.load %arg3[%c64, %c0_15] : memref<256x64xf32, #tpu.memory_space<vmem>>, vector<16x64xf32>
    %cst_16 = arith.constant dense<0.000000e+00> : vector<2x64xf32>
    %32 = tpu.matmul %30, %31, %cst_16 {dimension_numbers = #tpu.dot_dimension_numbers<[1], [0], [0], [1], [0, 0, 1, 1], [], []>} : vector<2x16xf32>, vector<16x64xf32>, vector<2x64xf32> -> vector<2x64xf32>
    %33 = arith.addf %29, %32 : vector<2x64xf32>
    %34 = vector.extract_strided_slice %14 {offsets = [10, 0], sizes = [2, 16], strides = [1, 1]} : vector<32x16xf32> to vector<2x16xf32>
    %c80 = arith.constant 80 : index
    %c0_17 = arith.constant 0 : index
    %35 = vector.load %arg3[%c80, %c0_17] : memref<256x64xf32, #tpu.memory_space<vmem>>, vector<16x64xf32>
    %cst_18 = arith.constant dense<0.000000e+00> : vector<2x64xf32>
    %36 = tpu.matmul %34, %35, %cst_18 {dimension_numbers = #tpu.dot_dimension_numbers<[1], [0], [0], [1], [0, 0, 1, 1], [], []>} : vector<2x16xf32>, vector<16x64xf32>, vector<2x64xf32> -> vector<2x64xf32>
    %37 = arith.addf %33, %36 : vector<2x64xf32>
    %38 = vector.extract_strided_slice %14 {offsets = [12, 0], sizes = [2, 16], strides = [1, 1]} : vector<32x16xf32> to vector<2x16xf32>
    %c96 = arith.constant 96 : index
    %c0_19 = arith.constant 0 : index
    %39 = vector.load %arg3[%c96, %c0_19] : memref<256x64xf32, #tpu.memory_space<vmem>>, vector<16x64xf32>
    %cst_20 = arith.constant dense<0.000000e+00> : vector<2x64xf32>
    %40 = tpu.matmul %38, %39, %cst_20 {dimension_numbers = #tpu.dot_dimension_numbers<[1], [0], [0], [1], [0, 0, 1, 1], [], []>} : vector<2x16xf32>, vector<16x64xf32>, vector<2x64xf32> -> vector<2x64xf32>
    %41 = arith.addf %37, %40 : vector<2x64xf32>
    %42 = vector.extract_strided_slice %14 {offsets = [14, 0], sizes = [2, 16], strides = [1, 1]} : vector<32x16xf32> to vector<2x16xf32>
    %c112 = arith.constant 112 : index
    %c0_21 = arith.constant 0 : index
    %43 = vector.load %arg3[%c112, %c0_21] : memref<256x64xf32, #tpu.memory_space<vmem>>, vector<16x64xf32>
    %cst_22 = arith.constant dense<0.000000e+00> : vector<2x64xf32>
    %44 = tpu.matmul %42, %43, %cst_22 {dimension_numbers = #tpu.dot_dimension_numbers<[1], [0], [0], [1], [0, 0, 1, 1], [], []>} : vector<2x16xf32>, vector<16x64xf32>, vector<2x64xf32> -> vector<2x64xf32>
    %45 = arith.addf %41, %44 : vector<2x64xf32>
    %46 = vector.extract_strided_slice %14 {offsets = [16, 0], sizes = [2, 16], strides = [1, 1]} : vector<32x16xf32> to vector<2x16xf32>
    %c128 = arith.constant 128 : index
    %c0_23 = arith.constant 0 : index
    %47 = vector.load %arg3[%c128, %c0_23] : memref<256x64xf32, #tpu.memory_space<vmem>>, vector<16x64xf32>
    %cst_24 = arith.constant dense<0.000000e+00> : vector<2x64xf32>
    %48 = tpu.matmul %46, %47, %cst_24 {dimension_numbers = #tpu.dot_dimension_numbers<[1], [0], [0], [1], [0, 0, 1, 1], [], []>} : vector<2x16xf32>, vector<16x64xf32>, vector<2x64xf32> -> vector<2x64xf32>
    %49 = arith.addf %45, %48 : vector<2x64xf32>
    %50 = vector.extract_strided_slice %14 {offsets = [18, 0], sizes = [2, 16], strides = [1, 1]} : vector<32x16xf32> to vector<2x16xf32>
    %c144 = arith.constant 144 : index
    %c0_25 = arith.constant 0 : index
    %51 = vector.load %arg3[%c144, %c0_25] : memref<256x64xf32, #tpu.memory_space<vmem>>, vector<16x64xf32>
    %cst_26 = arith.constant dense<0.000000e+00> : vector<2x64xf32>
    %52 = tpu.matmul %50, %51, %cst_26 {dimension_numbers = #tpu.dot_dimension_numbers<[1], [0], [0], [1], [0, 0, 1, 1], [], []>} : vector<2x16xf32>, vector<16x64xf32>, vector<2x64xf32> -> vector<2x64xf32>
    %53 = arith.addf %49, %52 : vector<2x64xf32>
    %54 = vector.extract_strided_slice %14 {offsets = [20, 0], sizes = [2, 16], strides = [1, 1]} : vector<32x16xf32> to vector<2x16xf32>
    %c160 = arith.constant 160 : index
    %c0_27 = arith.constant 0 : index
    %55 = vector.load %arg3[%c160, %c0_27] : memref<256x64xf32, #tpu.memory_space<vmem>>, vector<16x64xf32>
    %cst_28 = arith.constant dense<0.000000e+00> : vector<2x64xf32>
    %56 = tpu.matmul %54, %55, %cst_28 {dimension_numbers = #tpu.dot_dimension_numbers<[1], [0], [0], [1], [0, 0, 1, 1], [], []>} : vector<2x16xf32>, vector<16x64xf32>, vector<2x64xf32> -> vector<2x64xf32>
    %57 = arith.addf %53, %56 : vector<2x64xf32>
    %58 = vector.extract_strided_slice %14 {offsets = [22, 0], sizes = [2, 16], strides = [1, 1]} : vector<32x16xf32> to vector<2x16xf32>
    %c176 = arith.constant 176 : index
    %c0_29 = arith.constant 0 : index
    %59 = vector.load %arg3[%c176, %c0_29] : memref<256x64xf32, #tpu.memory_space<vmem>>, vector<16x64xf32>
    %cst_30 = arith.constant dense<0.000000e+00> : vector<2x64xf32>
    %60 = tpu.matmul %58, %59, %cst_30 {dimension_numbers = #tpu.dot_dimension_numbers<[1], [0], [0], [1], [0, 0, 1, 1], [], []>} : vector<2x16xf32>, vector<16x64xf32>, vector<2x64xf32> -> vector<2x64xf32>
    %61 = arith.addf %57, %60 : vector<2x64xf32>
    %62 = vector.extract_strided_slice %14 {offsets = [24, 0], sizes = [2, 16], strides = [1, 1]} : vector<32x16xf32> to vector<2x16xf32>
    %c192 = arith.constant 192 : index
    %c0_31 = arith.constant 0 : index
    %63 = vector.load %arg3[%c192, %c0_31] : memref<256x64xf32, #tpu.memory_space<vmem>>, vector<16x64xf32>
    %cst_32 = arith.constant dense<0.000000e+00> : vector<2x64xf32>
    %64 = tpu.matmul %62, %63, %cst_32 {dimension_numbers = #tpu.dot_dimension_numbers<[1], [0], [0], [1], [0, 0, 1, 1], [], []>} : vector<2x16xf32>, vector<16x64xf32>, vector<2x64xf32> -> vector<2x64xf32>
    %65 = arith.addf %61, %64 : vector<2x64xf32>
    %66 = vector.extract_strided_slice %14 {offsets = [26, 0], sizes = [2, 16], strides = [1, 1]} : vector<32x16xf32> to vector<2x16xf32>
    %c208 = arith.constant 208 : index
    %c0_33 = arith.constant 0 : index
    %67 = vector.load %arg3[%c208, %c0_33] : memref<256x64xf32, #tpu.memory_space<vmem>>, vector<16x64xf32>
    %cst_34 = arith.constant dense<0.000000e+00> : vector<2x64xf32>
    %68 = tpu.matmul %66, %67, %cst_34 {dimension_numbers = #tpu.dot_dimension_numbers<[1], [0], [0], [1], [0, 0, 1, 1], [], []>} : vector<2x16xf32>, vector<16x64xf32>, vector<2x64xf32> -> vector<2x64xf32>
    %69 = arith.addf %65, %68 : vector<2x64xf32>
    %70 = vector.extract_strided_slice %14 {offsets = [28, 0], sizes = [2, 16], strides = [1, 1]} : vector<32x16xf32> to vector<2x16xf32>
    %c224 = arith.constant 224 : index
    %c0_35 = arith.constant 0 : index
    %71 = vector.load %arg3[%c224, %c0_35] : memref<256x64xf32, #tpu.memory_space<vmem>>, vector<16x64xf32>
    %cst_36 = arith.constant dense<0.000000e+00> : vector<2x64xf32>
    %72 = tpu.matmul %70, %71, %cst_36 {dimension_numbers = #tpu.dot_dimension_numbers<[1], [0], [0], [1], [0, 0, 1, 1], [], []>} : vector<2x16xf32>, vector<16x64xf32>, vector<2x64xf32> -> vector<2x64xf32>
    %73 = arith.addf %69, %72 : vector<2x64xf32>
    %74 = vector.extract_strided_slice %14 {offsets = [30, 0], sizes = [2, 16], strides = [1, 1]} : vector<32x16xf32> to vector<2x16xf32>
    %c240 = arith.constant 240 : index
    %c0_37 = arith.constant 0 : index
    %75 = vector.load %arg3[%c240, %c0_37] : memref<256x64xf32, #tpu.memory_space<vmem>>, vector<16x64xf32>
    %cst_38 = arith.constant dense<0.000000e+00> : vector<2x64xf32>
    %76 = tpu.matmul %74, %75, %cst_38 {dimension_numbers = #tpu.dot_dimension_numbers<[1], [0], [0], [1], [0, 0, 1, 1], [], []>} : vector<2x16xf32>, vector<16x64xf32>, vector<2x64xf32> -> vector<2x64xf32>
    %77 = arith.addf %73, %76 : vector<2x64xf32>
    %c0_39 = arith.constant 0 : index
    %c0_40 = arith.constant 0 : index
    %78 = vector.load %arg4[%c0_39, %c0_40] : memref<1x64xf32, #tpu.memory_space<vmem>>, vector<1x64xf32>
    %79 = vector.broadcast %78 : vector<1x64xf32> to vector<2x64xf32>
    %80 = arith.addf %77, %79 : vector<2x64xf32>
    %cst_41 = arith.constant 0.000000e+00 : f32
    %81 = vector.broadcast %cst_41 : f32 to vector<2x64xf32>
    %82 = arith.maximumf %80, %81 : vector<2x64xf32>
    %c0_42 = arith.constant 0 : index
    %c0_43 = arith.constant 0 : index
    %83 = vector.load %arg5[%c0_42, %c0_43] : memref<64x2xf32, #tpu.memory_space<vmem>>, vector<64x2xf32>
    %cst_44 = arith.constant dense<0.000000e+00> : vector<2x2xf32>
    %84 = tpu.matmul %82, %83, %cst_44 {dimension_numbers = #tpu.dot_dimension_numbers<[1], [0], [0], [1], [0, 0, 1, 1], [], []>} : vector<2x64xf32>, vector<64x2xf32>, vector<2x2xf32> -> vector<2x2xf32>
    %c0_45 = arith.constant 0 : index
    %c0_46 = arith.constant 0 : index
    %85 = vector.load %arg6[%c0_45, %c0_46] : memref<1x2xf32, #tpu.memory_space<vmem>>, vector<1x2xf32>
    %86 = vector.broadcast %85 : vector<1x2xf32> to vector<2x2xf32>
    %87 = arith.addf %84, %86 : vector<2x2xf32>
    %88 = vector.extract_strided_slice %87 {offsets = [0, 0], sizes = [2, 1], strides = [1, 1]} : vector<2x2xf32> to vector<2x1xf32>
    %89 = vector.extract_strided_slice %87 {offsets = [0, 1], sizes = [2, 1], strides = [1, 1]} : vector<2x2xf32> to vector<2x1xf32>
    %90 = tpu.iota {dimensions = array<i32: 1>} : vector<2x4xi32>
    %c1_i32 = arith.constant 1 : i32
    %91 = vector.broadcast %c1_i32 : i32 to vector<2x4xi32>
    %92 = arith.cmpi eq, %90, %91 : vector<2x4xi32>
    %c3_i32 = arith.constant 3 : i32
    %93 = vector.broadcast %c3_i32 : i32 to vector<2x4xi32>
    %94 = arith.cmpi eq, %90, %93 : vector<2x4xi32>
    %95 = arith.ori %92, %94 : vector<2x4xi1>
    %96 = arith.extui %95 : vector<2x4xi1> to vector<2x4xi32>
    %97 = arith.sitofp %96 : vector<2x4xi32> to vector<2x4xf32>
    %c2_i32 = arith.constant 2 : i32
    %98 = vector.broadcast %c2_i32 : i32 to vector<2x4xi32>
    %99 = arith.cmpi sge, %90, %98 : vector<2x4xi32>
    %100 = arith.extui %99 : vector<2x4xi1> to vector<2x4xi32>
    %101 = arith.sitofp %100 : vector<2x4xi32> to vector<2x4xf32>
    %c0_i32 = arith.constant 0 : i32
    %102 = vector.broadcast %c0_i32 : i32 to vector<2x4xi32>
    %103 = arith.cmpi eq, %90, %102 : vector<2x4xi32>
    %104 = arith.extui %103 : vector<2x4xi1> to vector<2x4xi32>
    %105 = arith.sitofp %104 : vector<2x4xi32> to vector<2x4xf32>
    %cst_47 = arith.constant 0.000000e+00 : f32
    %106 = vector.broadcast %cst_47 : f32 to vector<2x4xf32>
    %c0_48 = arith.constant 0 : index
    %c0_49 = arith.constant 0 : index
    %107 = vector.load %arg7[%c0_48, %c0_49] : memref<4x4xf32, #tpu.memory_space<vmem>>, vector<4x4xf32>
    %c0_50 = arith.constant 0 : index
    %c0_51 = arith.constant 0 : index
    %108 = vector.load %arg8[%c0_50, %c0_51] : memref<4x4xf32, #tpu.memory_space<vmem>>, vector<4x4xf32>
    %cst_52 = arith.constant dense<0.000000e+00> : vector<2x4xf32>
    %109 = tpu.matmul %105, %107, %cst_52 {dimension_numbers = #tpu.dot_dimension_numbers<[1], [0], [0], [1], [0, 0, 1, 1], [], []>} : vector<2x4xf32>, vector<4x4xf32>, vector<2x4xf32> -> vector<2x4xf32>
    %cst_53 = arith.constant dense<0.000000e+00> : vector<2x4xf32>
    %110 = tpu.matmul %106, %107, %cst_53 {dimension_numbers = #tpu.dot_dimension_numbers<[1], [0], [0], [1], [0, 0, 1, 1], [], []>} : vector<2x4xf32>, vector<4x4xf32>, vector<2x4xf32> -> vector<2x4xf32>
    %cst_54 = arith.constant 2.000000e+00 : f32
    %111 = vector.broadcast %cst_54 : f32 to vector<2x1xf32>
    %112 = arith.mulf %111, %88 : vector<2x1xf32>
    %113 = math.cos %112 : vector<2x1xf32>
    %114 = math.sin %112 : vector<2x1xf32>
    %cst_55 = arith.constant 1.000000e+00 : f32
    %115 = vector.broadcast %cst_55 : f32 to vector<2x1xf32>
    %116 = arith.subf %113, %115 : vector<2x1xf32>
    %117 = vector.broadcast %116 : vector<2x1xf32> to vector<2x4xf32>
    %118 = arith.mulf %97, %117 : vector<2x4xf32>
    %cst_56 = arith.constant 1.000000e+00 : f32
    %119 = vector.broadcast %cst_56 : f32 to vector<2x4xf32>
    %120 = arith.addf %119, %118 : vector<2x4xf32>
    %121 = vector.broadcast %114 : vector<2x1xf32> to vector<2x4xf32>
    %122 = arith.mulf %97, %121 : vector<2x4xf32>
    %123 = arith.mulf %109, %120 : vector<2x4xf32>
    %124 = arith.mulf %110, %122 : vector<2x4xf32>
    %125 = arith.subf %123, %124 : vector<2x4xf32>
    %126 = arith.mulf %109, %122 : vector<2x4xf32>
    %127 = arith.mulf %110, %120 : vector<2x4xf32>
    %128 = arith.addf %126, %127 : vector<2x4xf32>
    %cst_57 = arith.constant 2.000000e+00 : f32
    %129 = vector.broadcast %cst_57 : f32 to vector<2x1xf32>
    %130 = arith.mulf %129, %89 : vector<2x1xf32>
    %131 = math.cos %130 : vector<2x1xf32>
    %132 = math.sin %130 : vector<2x1xf32>
    %cst_58 = arith.constant 1.000000e+00 : f32
    %133 = vector.broadcast %cst_58 : f32 to vector<2x1xf32>
    %134 = arith.subf %131, %133 : vector<2x1xf32>
    %135 = vector.broadcast %134 : vector<2x1xf32> to vector<2x4xf32>
    %136 = arith.mulf %101, %135 : vector<2x4xf32>
    %cst_59 = arith.constant 1.000000e+00 : f32
    %137 = vector.broadcast %cst_59 : f32 to vector<2x4xf32>
    %138 = arith.addf %137, %136 : vector<2x4xf32>
    %139 = vector.broadcast %132 : vector<2x1xf32> to vector<2x4xf32>
    %140 = arith.mulf %101, %139 : vector<2x4xf32>
    %141 = arith.mulf %125, %138 : vector<2x4xf32>
    %142 = arith.mulf %128, %140 : vector<2x4xf32>
    %143 = arith.subf %141, %142 : vector<2x4xf32>
    %144 = arith.mulf %125, %140 : vector<2x4xf32>
    %145 = arith.mulf %128, %138 : vector<2x4xf32>
    %146 = arith.addf %144, %145 : vector<2x4xf32>
    %cst_60 = arith.constant dense<0.000000e+00> : vector<2x4xf32>
    %147 = tpu.matmul %143, %108, %cst_60 {dimension_numbers = #tpu.dot_dimension_numbers<[1], [0], [0], [1], [0, 0, 1, 1], [], []>} : vector<2x4xf32>, vector<4x4xf32>, vector<2x4xf32> -> vector<2x4xf32>
    %cst_61 = arith.constant dense<0.000000e+00> : vector<2x4xf32>
    %148 = tpu.matmul %146, %108, %cst_61 {dimension_numbers = #tpu.dot_dimension_numbers<[1], [0], [0], [1], [0, 0, 1, 1], [], []>} : vector<2x4xf32>, vector<4x4xf32>, vector<2x4xf32> -> vector<2x4xf32>
    %cst_62 = arith.constant 3.14159274 : f32
    %149 = vector.broadcast %cst_62 : f32 to vector<2x1xf32>
    %150 = arith.subf %149, %88 : vector<2x1xf32>
    %cst_63 = arith.constant 2.000000e+00 : f32
    %151 = vector.broadcast %cst_63 : f32 to vector<2x1xf32>
    %152 = arith.mulf %151, %150 : vector<2x1xf32>
    %cst_64 = arith.constant 3.14159274 : f32
    %153 = vector.broadcast %cst_64 : f32 to vector<2x1xf32>
    %154 = arith.subf %153, %89 : vector<2x1xf32>
    %155 = arith.mulf %152, %154 : vector<2x1xf32>
    %156 = math.cos %155 : vector<2x1xf32>
    %157 = math.sin %155 : vector<2x1xf32>
    %cst_65 = arith.constant 1.000000e+00 : f32
    %158 = vector.broadcast %cst_65 : f32 to vector<2x1xf32>
    %159 = arith.subf %156, %158 : vector<2x1xf32>
    %160 = vector.broadcast %159 : vector<2x1xf32> to vector<2x4xf32>
    %161 = arith.mulf %101, %160 : vector<2x4xf32>
    %cst_66 = arith.constant 1.000000e+00 : f32
    %162 = vector.broadcast %cst_66 : f32 to vector<2x4xf32>
    %163 = arith.addf %162, %161 : vector<2x4xf32>
    %164 = vector.broadcast %157 : vector<2x1xf32> to vector<2x4xf32>
    %165 = arith.mulf %101, %164 : vector<2x4xf32>
    %166 = arith.mulf %147, %163 : vector<2x4xf32>
    %167 = arith.mulf %148, %165 : vector<2x4xf32>
    %168 = arith.subf %166, %167 : vector<2x4xf32>
    %169 = arith.mulf %147, %165 : vector<2x4xf32>
    %170 = arith.mulf %148, %163 : vector<2x4xf32>
    %171 = arith.addf %169, %170 : vector<2x4xf32>
    %cst_67 = arith.constant dense<0.000000e+00> : vector<2x4xf32>
    %172 = tpu.matmul %168, %108, %cst_67 {dimension_numbers = #tpu.dot_dimension_numbers<[1], [0], [0], [1], [0, 0, 1, 1], [], []>} : vector<2x4xf32>, vector<4x4xf32>, vector<2x4xf32> -> vector<2x4xf32>
    %cst_68 = arith.constant dense<0.000000e+00> : vector<2x4xf32>
    %173 = tpu.matmul %171, %108, %cst_68 {dimension_numbers = #tpu.dot_dimension_numbers<[1], [0], [0], [1], [0, 0, 1, 1], [], []>} : vector<2x4xf32>, vector<4x4xf32>, vector<2x4xf32> -> vector<2x4xf32>
    %cst_69 = arith.constant dense<0.000000e+00> : vector<2x4xf32>
    %174 = tpu.matmul %172, %107, %cst_69 {dimension_numbers = #tpu.dot_dimension_numbers<[1], [0], [0], [1], [0, 0, 1, 1], [], []>} : vector<2x4xf32>, vector<4x4xf32>, vector<2x4xf32> -> vector<2x4xf32>
    %cst_70 = arith.constant dense<0.000000e+00> : vector<2x4xf32>
    %175 = tpu.matmul %173, %107, %cst_70 {dimension_numbers = #tpu.dot_dimension_numbers<[1], [0], [0], [1], [0, 0, 1, 1], [], []>} : vector<2x4xf32>, vector<4x4xf32>, vector<2x4xf32> -> vector<2x4xf32>
    %cst_71 = arith.constant 2.000000e+00 : f32
    %176 = vector.broadcast %cst_71 : f32 to vector<2x1xf32>
    %177 = arith.mulf %176, %88 : vector<2x1xf32>
    %178 = math.cos %177 : vector<2x1xf32>
    %179 = math.sin %177 : vector<2x1xf32>
    %cst_72 = arith.constant 1.000000e+00 : f32
    %180 = vector.broadcast %cst_72 : f32 to vector<2x1xf32>
    %181 = arith.subf %178, %180 : vector<2x1xf32>
    %182 = vector.broadcast %181 : vector<2x1xf32> to vector<2x4xf32>
    %183 = arith.mulf %97, %182 : vector<2x4xf32>
    %cst_73 = arith.constant 1.000000e+00 : f32
    %184 = vector.broadcast %cst_73 : f32 to vector<2x4xf32>
    %185 = arith.addf %184, %183 : vector<2x4xf32>
    %186 = vector.broadcast %179 : vector<2x1xf32> to vector<2x4xf32>
    %187 = arith.mulf %97, %186 : vector<2x4xf32>
    %188 = arith.mulf %174, %185 : vector<2x4xf32>
    %189 = arith.mulf %175, %187 : vector<2x4xf32>
    %190 = arith.subf %188, %189 : vector<2x4xf32>
    %191 = arith.mulf %174, %187 : vector<2x4xf32>
    %192 = arith.mulf %175, %185 : vector<2x4xf32>
    %193 = arith.addf %191, %192 : vector<2x4xf32>
    %cst_74 = arith.constant 2.000000e+00 : f32
    %194 = vector.broadcast %cst_74 : f32 to vector<2x1xf32>
    %195 = arith.mulf %194, %89 : vector<2x1xf32>
    %196 = math.cos %195 : vector<2x1xf32>
    %197 = math.sin %195 : vector<2x1xf32>
    %cst_75 = arith.constant 1.000000e+00 : f32
    %198 = vector.broadcast %cst_75 : f32 to vector<2x1xf32>
    %199 = arith.subf %196, %198 : vector<2x1xf32>
    %200 = vector.broadcast %199 : vector<2x1xf32> to vector<2x4xf32>
    %201 = arith.mulf %101, %200 : vector<2x4xf32>
    %cst_76 = arith.constant 1.000000e+00 : f32
    %202 = vector.broadcast %cst_76 : f32 to vector<2x4xf32>
    %203 = arith.addf %202, %201 : vector<2x4xf32>
    %204 = vector.broadcast %197 : vector<2x1xf32> to vector<2x4xf32>
    %205 = arith.mulf %101, %204 : vector<2x4xf32>
    %206 = arith.mulf %190, %203 : vector<2x4xf32>
    %207 = arith.mulf %193, %205 : vector<2x4xf32>
    %208 = arith.subf %206, %207 : vector<2x4xf32>
    %209 = arith.mulf %190, %205 : vector<2x4xf32>
    %210 = arith.mulf %193, %203 : vector<2x4xf32>
    %211 = arith.addf %209, %210 : vector<2x4xf32>
    %cst_77 = arith.constant dense<0.000000e+00> : vector<2x4xf32>
    %212 = tpu.matmul %208, %108, %cst_77 {dimension_numbers = #tpu.dot_dimension_numbers<[1], [0], [0], [1], [0, 0, 1, 1], [], []>} : vector<2x4xf32>, vector<4x4xf32>, vector<2x4xf32> -> vector<2x4xf32>
    %cst_78 = arith.constant dense<0.000000e+00> : vector<2x4xf32>
    %213 = tpu.matmul %211, %108, %cst_78 {dimension_numbers = #tpu.dot_dimension_numbers<[1], [0], [0], [1], [0, 0, 1, 1], [], []>} : vector<2x4xf32>, vector<4x4xf32>, vector<2x4xf32> -> vector<2x4xf32>
    %cst_79 = arith.constant 3.14159274 : f32
    %214 = vector.broadcast %cst_79 : f32 to vector<2x1xf32>
    %215 = arith.subf %214, %88 : vector<2x1xf32>
    %cst_80 = arith.constant 2.000000e+00 : f32
    %216 = vector.broadcast %cst_80 : f32 to vector<2x1xf32>
    %217 = arith.mulf %216, %215 : vector<2x1xf32>
    %cst_81 = arith.constant 3.14159274 : f32
    %218 = vector.broadcast %cst_81 : f32 to vector<2x1xf32>
    %219 = arith.subf %218, %89 : vector<2x1xf32>
    %220 = arith.mulf %217, %219 : vector<2x1xf32>
    %221 = math.cos %220 : vector<2x1xf32>
    %222 = math.sin %220 : vector<2x1xf32>
    %cst_82 = arith.constant 1.000000e+00 : f32
    %223 = vector.broadcast %cst_82 : f32 to vector<2x1xf32>
    %224 = arith.subf %221, %223 : vector<2x1xf32>
    %225 = vector.broadcast %224 : vector<2x1xf32> to vector<2x4xf32>
    %226 = arith.mulf %101, %225 : vector<2x4xf32>
    %cst_83 = arith.constant 1.000000e+00 : f32
    %227 = vector.broadcast %cst_83 : f32 to vector<2x4xf32>
    %228 = arith.addf %227, %226 : vector<2x4xf32>
    %229 = vector.broadcast %222 : vector<2x1xf32> to vector<2x4xf32>
    %230 = arith.mulf %101, %229 : vector<2x4xf32>
    %231 = arith.mulf %212, %228 : vector<2x4xf32>
    %232 = arith.mulf %213, %230 : vector<2x4xf32>
    %233 = arith.subf %231, %232 : vector<2x4xf32>
    %234 = arith.mulf %212, %230 : vector<2x4xf32>
    %235 = arith.mulf %213, %228 : vector<2x4xf32>
    %236 = arith.addf %234, %235 : vector<2x4xf32>
    %cst_84 = arith.constant dense<0.000000e+00> : vector<2x4xf32>
    %237 = tpu.matmul %233, %108, %cst_84 {dimension_numbers = #tpu.dot_dimension_numbers<[1], [0], [0], [1], [0, 0, 1, 1], [], []>} : vector<2x4xf32>, vector<4x4xf32>, vector<2x4xf32> -> vector<2x4xf32>
    %cst_85 = arith.constant dense<0.000000e+00> : vector<2x4xf32>
    %238 = tpu.matmul %236, %108, %cst_85 {dimension_numbers = #tpu.dot_dimension_numbers<[1], [0], [0], [1], [0, 0, 1, 1], [], []>} : vector<2x4xf32>, vector<4x4xf32>, vector<2x4xf32> -> vector<2x4xf32>
    %c0_86 = arith.constant 0 : index
    %c0_87 = arith.constant 0 : index
    %239 = vector.load %arg9[%c0_86, %c0_87] : memref<4x4xf32, #tpu.memory_space<vmem>>, vector<4x4xf32>
    %cst_88 = arith.constant dense<0.000000e+00> : vector<2x4xf32>
    %240 = tpu.matmul %237, %239, %cst_88 {dimension_numbers = #tpu.dot_dimension_numbers<[1], [0], [0], [1], [0, 0, 1, 1], [], []>} : vector<2x4xf32>, vector<4x4xf32>, vector<2x4xf32> -> vector<2x4xf32>
    %cst_89 = arith.constant dense<0.000000e+00> : vector<2x4xf32>
    %241 = tpu.matmul %238, %239, %cst_89 {dimension_numbers = #tpu.dot_dimension_numbers<[1], [0], [0], [1], [0, 0, 1, 1], [], []>} : vector<2x4xf32>, vector<4x4xf32>, vector<2x4xf32> -> vector<2x4xf32>
    %cst_90 = arith.constant 2.000000e+00 : f32
    %242 = vector.broadcast %cst_90 : f32 to vector<2x4xf32>
    %243 = arith.mulf %242, %97 : vector<2x4xf32>
    %cst_91 = arith.constant 1.000000e+00 : f32
    %244 = vector.broadcast %cst_91 : f32 to vector<2x4xf32>
    %245 = arith.subf %244, %243 : vector<2x4xf32>
    %cst_92 = arith.constant 2.000000e+00 : f32
    %246 = vector.broadcast %cst_92 : f32 to vector<2x4xf32>
    %247 = arith.mulf %246, %101 : vector<2x4xf32>
    %cst_93 = arith.constant 1.000000e+00 : f32
    %248 = vector.broadcast %cst_93 : f32 to vector<2x4xf32>
    %249 = arith.subf %248, %247 : vector<2x4xf32>
    %250 = arith.mulf %245, %249 : vector<2x4xf32>
    %251 = arith.mulf %240, %240 : vector<2x4xf32>
    %252 = arith.mulf %241, %241 : vector<2x4xf32>
    %253 = arith.addf %251, %252 : vector<2x4xf32>
    %254 = arith.mulf %253, %250 : vector<2x4xf32>
    %cst_94 = arith.constant dense<0.000000e+00> : vector<2xf32>
    %255 = vector.multi_reduction <add>, %254, %cst_94 [1] : vector<2x4xf32> to vector<2xf32>
    %256 = vector.shape_cast %255 : vector<2xf32> to vector<2x1xf32>
    %c0_95 = arith.constant 0 : index
    %257 = memref.load %arg10[%c0_95] : memref<2xf32, #tpu.memory_space<smem>>
    %258 = vector.broadcast %257 : f32 to vector<2x1xf32>
    %259 = arith.mulf %256, %258 : vector<2x1xf32>
    %c1 = arith.constant 1 : index
    %260 = memref.load %arg10[%c1] : memref<2xf32, #tpu.memory_space<smem>>
    %261 = vector.broadcast %260 : f32 to vector<2x1xf32>
    %262 = arith.addf %259, %261 : vector<2x1xf32>
    %263 = tpu.iota {dimensions = array<i32: 1>} : vector<2x2xi32>
    %c0_i32_96 = arith.constant 0 : i32
    %264 = vector.broadcast %c0_i32_96 : i32 to vector<2x2xi32>
    %265 = arith.cmpi eq, %263, %264 : vector<2x2xi32>
    %cst_97 = arith.constant 1.000000e+00 : f32
    %266 = vector.broadcast %cst_97 : f32 to vector<2x1xf32>
    %267 = arith.subf %266, %262 : vector<2x1xf32>
    %268 = vector.shape_cast %262 : vector<2x1xf32> to vector<2x1xf32>
    %269 = vector.broadcast %268 : vector<2x1xf32> to vector<2x2xf32>
    %270 = vector.shape_cast %267 : vector<2x1xf32> to vector<2x1xf32>
    %271 = vector.broadcast %270 : vector<2x1xf32> to vector<2x2xf32>
    %272 = arith.select %265, %269, %271 : vector<2x2xi1>, vector<2x2xf32>
    %c0_98 = arith.constant 0 : index
    %c0_99 = arith.constant 0 : index
    %273 = vector.load %arg11[%c0_98, %c0_99] : memref<2x2xf32, #tpu.memory_space<vmem>>, vector<2x2xf32>
    tpu.vector_store %arg11[%c0_98, %c0_99], %272 {strides = array<i32>} : memref<2x2xf32, #tpu.memory_space<vmem>>, vector<2x2xf32>,
    return
  }
}

</mosaic_0001>

<llo_original>
// kernel: net_forward.2
$region0: #{net_forward.2}
  #allocation0 [shape = 'u32[]', space=smem, size = 0x4, offset = 0x4, fixed_abs, tag = 'smem constant byte address 0x4 - core index']
  #allocation1 [shape = 'u32[72,128]{1,0:T(1,128)}', space=vmem, size = 0x9000, scoped, tag = 'internal scratch']
  %s0 = inlined_call_operand.vmem [shape: f32[1152,25], index: 0, kind: input, shape index: {}]
  %s1 = inlined_call_operand.vmem [shape: f32[25,2], index: 1, kind: input, shape index: {}]
  %s2 = inlined_call_operand.vmem [shape: f32[1,2], index: 2, kind: input, shape index: {}]
  %s3 = inlined_call_operand.vmem [shape: f32[288,2], index: 3, kind: output, shape index: {}]
  %s4 = sld [smem:[#allocation0]]
  $region22: #{net_forward.2} parent=0
    _
  %s6 = ssub.s32 1, %s4
  %s7 = scalar_select 0, %s6, %s4
  // Predicated region
  $region2: #{net_forward.2} parent=0 // pred_check
    _
  $region3: #{net_forward.2} parent=0 // pred_check_branch
    %9 = sbr.rel (0) target = $region5
  $region4: #{net_forward.2} parent=0 // pred_region
    _
  $region5: #{net_forward.2} parent=0 // pred_fallthru
    _
  // Predicated region
  $region6: #{net_forward.2} parent=0 // pred_check
    _
  $region7: #{net_forward.2} parent=0 // pred_check_branch
    %11 = sbr.rel (0) target = $region9
  $region8: #{net_forward.2} parent=0 // pred_region
    _
  $region9: #{net_forward.2} parent=0 // pred_fallthru
    _
  // Predicated region
  $region10: #{net_forward.2} parent=0 // pred_check
    _
  $region11: #{net_forward.2} parent=0 // pred_check_branch
    %13 = sbr.rel (0) target = $region13
  $region12: #{net_forward.2} parent=0 // pred_region
    _
  $region13: #{net_forward.2} parent=0 // pred_fallthru
    _
  %v14 = vld [vmem:[%s0] sm:$0xff]
  %v15 = vld [vmem:[%s0 + $0x8] sm:$0xff]
  %v16 = vld [vmem:[%s0 + $0x10] sm:$0xff]
  %v17 = vld [vmem:[%s0 + $0x18] sm:$0xff]
  %v18 = vld [vmem:[%s0 + $0x20] sm:$0xff]
  %v19 = vld [vmem:[%s0 + $0x28] sm:$0xff]
  %v20 = vld [vmem:[%s0 + $0x30] sm:$0xff]
  %v21 = vld [vmem:[%s0 + $0x38] sm:$0xff]
  %v22 = vld [vmem:[%s0 + $0x40] sm:$0xff]
  %v23 = vld [vmem:[%s0 + $0x48] sm:$0xff]
  %v24 = vld [vmem:[%s0 + $0x50] sm:$0xff]
  %v25 = vld [vmem:[%s0 + $0x58] sm:$0xff]
  %v26 = vld [vmem:[%s0 + $0x60] sm:$0xff]
  %v27 = vld [vmem:[%s0 + $0x68] sm:$0xff]
  %v28 = vld [vmem:[%s0 + $0x70] sm:$0xff]
  %v29 = vld [vmem:[%s0 + $0x78] sm:$0xff]
  %v30 = vld [vmem:[%s0 + $0x80] sm:$0xff]
  %v31 = vld [vmem:[%s0 + $0x88] sm:$0xff]
  %v32 = vld [vmem:[%s0 + $0x90] sm:$0xff]
  %v33 = vld [vmem:[%s0 + $0x98] sm:$0xff]
  %v34 = vld [vmem:[%s0 + $0xa0] sm:$0xff]
  %v35 = vld [vmem:[%s0 + $0xa8] sm:$0xff]
  %v36 = vld [vmem:[%s0 + $0xb0] sm:$0xff]
  %v37 = vld [vmem:[%s0 + $0xb8] sm:$0xff]
  %v38 = vld [vmem:[%s0 + $0xc0] sm:$0xff]
  %v39 = vld [vmem:[%s0 + $0xc8] sm:$0xff]
  %v40 = vld [vmem:[%s0 + $0xd0] sm:$0xff]
  %v41 = vld [vmem:[%s0 + $0xd8] sm:$0xff]
  %v42 = vld [vmem:[%s0 + $0xe0] sm:$0xff]
  %v43 = vld [vmem:[%s0 + $0xe8] sm:$0xff]
  %v44 = vld [vmem:[%s0 + $0xf0] sm:$0xff]
  %v45 = vld [vmem:[%s0 + $0xf8] sm:$0xff]
  %v46 = vld [vmem:[%s0 + $0x100] sm:$0xff]
  %v47 = vld [vmem:[%s0 + $0x108] sm:$0xff]
  %v48 = vld [vmem:[%s0 + $0x110] sm:$0xff]
  %v49 = vld [vmem:[%s0 + $0x118] sm:$0xff]
  %v50 = vld [vmem:[%s0 + $0x120] sm:$0xff]
  %v51 = vld [vmem:[%s0 + $0x128] sm:$0xff]
  %v52 = vld [vmem:[%s0 + $0x130] sm:$0xff]
  %v53 = vld [vmem:[%s0 + $0x138] sm:$0xff]
  %v54 = vld [vmem:[%s0 + $0x140] sm:$0xff]
  %v55 = vld [vmem:[%s0 + $0x148] sm:$0xff]
  %v56 = vld [vmem:[%s0 + $0x150] sm:$0xff]
  %v57 = vld [vmem:[%s0 + $0x158] sm:$0xff]
  %v58 = vld [vmem:[%s0 + $0x160] sm:$0xff]
  %v59 = vld [vmem:[%s0 + $0x168] sm:$0xff]
  %v60 = vld [vmem:[%s0 + $0x170] sm:$0xff]
  %v61 = vld [vmem:[%s0 + $0x178] sm:$0xff]
  %v62 = vld [vmem:[%s0 + $0x180] sm:$0xff]
  %v63 = vld [vmem:[%s0 + $0x188] sm:$0xff]
  %v64 = vld [vmem:[%s0 + $0x190] sm:$0xff]
  %v65 = vld [vmem:[%s0 + $0x198] sm:$0xff]
  %v66 = vld [vmem:[%s0 + $0x1a0] sm:$0xff]
  %v67 = vld [vmem:[%s0 + $0x1a8] sm:$0xff]
  %v68 = vld [vmem:[%s0 + $0x1b0] sm:$0xff]
  %v69 = vld [vmem:[%s0 + $0x1b8] sm:$0xff]
  %v70 = vld [vmem:[%s0 + $0x1c0] sm:$0xff]
  %v71 = vld [vmem:[%s0 + $0x1c8] sm:$0xff]
  %v72 = vld [vmem:[%s0 + $0x1d0] sm:$0xff]
  %v73 = vld [vmem:[%s0 + $0x1d8] sm:$0xff]
  %v74 = vld [vmem:[%s0 + $0x1e0] sm:$0xff]
  %v75 = vld [vmem:[%s0 + $0x1e8] sm:$0xff]
  %v76 = vld [vmem:[%s0 + $0x1f0] sm:$0xff]
  %v77 = vld [vmem:[%s0 + $0x1f8] sm:$0xff]
  %v78 = vld [vmem:[%s0 + $0x200] sm:$0xff]
  %v79 = vld [vmem:[%s0 + $0x208] sm:$0xff]
  %v80 = vld [vmem:[%s0 + $0x210] sm:$0xff]
  %v81 = vld [vmem:[%s0 + $0x218] sm:$0xff]
  %v82 = vld [vmem:[%s0 + $0x220] sm:$0xff]
  %v83 = vld [vmem:[%s0 + $0x228] sm:$0xff]
  %v84 = vld [vmem:[%s0 + $0x230] sm:$0xff]
  %v85 = vld [vmem:[%s0 + $0x238] sm:$0xff]
  %v86 = vld [vmem:[%s0 + $0x240] sm:$0xff]
  %v87 = vld [vmem:[%s0 + $0x248] sm:$0xff]
  %v88 = vld [vmem:[%s0 + $0x250] sm:$0xff]
  %v89 = vld [vmem:[%s0 + $0x258] sm:$0xff]
  %v90 = vld [vmem:[%s0 + $0x260] sm:$0xff]
  %v91 = vld [vmem:[%s0 + $0x268] sm:$0xff]
  %v92 = vld [vmem:[%s0 + $0x270] sm:$0xff]
  %v93 = vld [vmem:[%s0 + $0x278] sm:$0xff]
  %v94 = vld [vmem:[%s0 + $0x280] sm:$0xff]
  %v95 = vld [vmem:[%s0 + $0x288] sm:$0xff]
  %v96 = vld [vmem:[%s0 + $0x290] sm:$0xff]
  %v97 = vld [vmem:[%s0 + $0x298] sm:$0xff]
  %v98 = vld [vmem:[%s0 + $0x2a0] sm:$0xff]
  %v99 = vld [vmem:[%s0 + $0x2a8] sm:$0xff]
  %v100 = vld [vmem:[%s0 + $0x2b0] sm:$0xff]
  %v101 = vld [vmem:[%s0 + $0x2b8] sm:$0xff]
  %v102 = vld [vmem:[%s0 + $0x2c0] sm:$0xff]
  %v103 = vld [vmem:[%s0 + $0x2c8] sm:$0xff]
  %v104 = vld [vmem:[%s0 + $0x2d0] sm:$0xff]
  %v105 = vld [vmem:[%s0 + $0x2d8] sm:$0xff]
  %v106 = vld [vmem:[%s0 + $0x2e0] sm:$0xff]
  %v107 = vld [vmem:[%s0 + $0x2e8] sm:$0xff]
  %v108 = vld [vmem:[%s0 + $0x2f0] sm:$0xff]
  %v109 = vld [vmem:[%s0 + $0x2f8] sm:$0xff]
  %v110 = vld [vmem:[%s0 + $0x300] sm:$0xff]
  %v111 = vld [vmem:[%s0 + $0x308] sm:$0xff]
  %v112 = vld [vmem:[%s0 + $0x310] sm:$0xff]
  %v113 = vld [vmem:[%s0 + $0x318] sm:$0xff]
  %v114 = vld [vmem:[%s0 + $0x320] sm:$0xff]
  %v115 = vld [vmem:[%s0 + $0x328] sm:$0xff]
  %v116 = vld [vmem:[%s0 + $0x330] sm:$0xff]
  %v117 = vld [vmem:[%s0 + $0x338] sm:$0xff]
  %v118 = vld [vmem:[%s0 + $0x340] sm:$0xff]
  %v119 = vld [vmem:[%s0 + $0x348] sm:$0xff]
  %v120 = vld [vmem:[%s0 + $0x350] sm:$0xff]
  %v121 = vld [vmem:[%s0 + $0x358] sm:$0xff]
  %v122 = vld [vmem:[%s0 + $0x360] sm:$0xff]
  %v123 = vld [vmem:[%s0 + $0x368] sm:$0xff]
  %v124 = vld [vmem:[%s0 + $0x370] sm:$0xff]
  %v125 = vld [vmem:[%s0 + $0x378] sm:$0xff]
  %v126 = vld [vmem:[%s0 + $0x380] sm:$0xff]
  %v127 = vld [vmem:[%s0 + $0x388] sm:$0xff]
  %v128 = vld [vmem:[%s0 + $0x390] sm:$0xff]
  %v129 = vld [vmem:[%s0 + $0x398] sm:$0xff]
  %v130 = vld [vmem:[%s0 + $0x3a0] sm:$0xff]
  %v131 = vld [vmem:[%s0 + $0x3a8] sm:$0xff]
  %v132 = vld [vmem:[%s0 + $0x3b0] sm:$0xff]
  %v133 = vld [vmem:[%s0 + $0x3b8] sm:$0xff]
  %v134 = vld [vmem:[%s0 + $0x3c0] sm:$0xff]
  %v135 = vld [vmem:[%s0 + $0x3c8] sm:$0xff]
  %v136 = vld [vmem:[%s0 + $0x3d0] sm:$0xff]
  %v137 = vld [vmem:[%s0 + $0x3d8] sm:$0xff]
  %v138 = vld [vmem:[%s0 + $0x3e0] sm:$0xff]
  %v139 = vld [vmem:[%s0 + $0x3e8] sm:$0xff]
  %v140 = vld [vmem:[%s0 + $0x3f0] sm:$0xff]
  %v141 = vld [vmem:[%s0 + $0x3f8] sm:$0xff]
  %v142 = vld [vmem:[%s0 + $0x400] sm:$0xff]
  %v143 = vld [vmem:[%s0 + $0x408] sm:$0xff]
  %v144 = vld [vmem:[%s0 + $0x410] sm:$0xff]
  %v145 = vld [vmem:[%s0 + $0x418] sm:$0xff]
  %v146 = vld [vmem:[%s0 + $0x420] sm:$0xff]
  %v147 = vld [vmem:[%s0 + $0x428] sm:$0xff]
  %v148 = vld [vmem:[%s0 + $0x430] sm:$0xff]
  %v149 = vld [vmem:[%s0 + $0x438] sm:$0xff]
  %v150 = vld [vmem:[%s0 + $0x440] sm:$0xff]
  %v151 = vld [vmem:[%s0 + $0x448] sm:$0xff]
  %v152 = vld [vmem:[%s0 + $0x450] sm:$0xff]
  %v153 = vld [vmem:[%s0 + $0x458] sm:$0xff]
  %v154 = vld [vmem:[%s0 + $0x460] sm:$0xff]
  %v155 = vld [vmem:[%s0 + $0x468] sm:$0xff]
  %v156 = vld [vmem:[%s0 + $0x470] sm:$0xff]
  %v157 = vld [vmem:[%s0 + $0x478] sm:$0xff]
  %v158 = vld [vmem:[%s1] sm:$0xff]
  %v159 = vld [vmem:[%s1 + $0x8] sm:$0xff]
  %v160 = vld [vmem:[%s1 + $0x10] sm:$0xff]
  %v161 = vld [vmem:[%s1 + $0x18] sm:$0x1]
  %vm162 = vcmask 203776
  %v164 = vsel %vm162, %v14, 0
  %v167 = vsel %vm162, %v15, 0
  %v170 = vsel %vm162, %v16, 0
  %v173 = vsel %vm162, %v17, 0
  %v176 = vsel %vm162, %v18, 0
  %v179 = vsel %vm162, %v19, 0
  %v182 = vsel %vm162, %v20, 0
  %v185 = vsel %vm162, %v21, 0
  %v188 = vsel %vm162, %v22, 0
  %v191 = vsel %vm162, %v23, 0
  %v194 = vsel %vm162, %v24, 0
  %v197 = vsel %vm162, %v25, 0
  %v200 = vsel %vm162, %v26, 0
  %v203 = vsel %vm162, %v27, 0
  %v206 = vsel %vm162, %v28, 0
  %v209 = vsel %vm162, %v29, 0
  %v212 = vsel %vm162, %v30, 0
  %v215 = vsel %vm162, %v31, 0
  %v218 = vsel %vm162, %v32, 0
  %v221 = vsel %vm162, %v33, 0
  %v224 = vsel %vm162, %v34, 0
  %v227 = vsel %vm162, %v35, 0
  %v230 = vsel %vm162, %v36, 0
  %v233 = vsel %vm162, %v37, 0
  %v236 = vsel %vm162, %v38, 0
  %v239 = vsel %vm162, %v39, 0
  %v242 = vsel %vm162, %v40, 0
  %v245 = vsel %vm162, %v41, 0
  %v248 = vsel %vm162, %v42, 0
  %v251 = vsel %vm162, %v43, 0
  %v254 = vsel %vm162, %v44, 0
  %v257 = vsel %vm162, %v45, 0
  %v260 = vsel %vm162, %v46, 0
  %v263 = vsel %vm162, %v47, 0
  %v266 = vsel %vm162, %v48, 0
  %v269 = vsel %vm162, %v49, 0
  %v272 = vsel %vm162, %v50, 0
  %v275 = vsel %vm162, %v51, 0
  %v278 = vsel %vm162, %v52, 0
  %v281 = vsel %vm162, %v53, 0
  %v284 = vsel %vm162, %v54, 0
  %v287 = vsel %vm162, %v55, 0
  %v290 = vsel %vm162, %v56, 0
  %v293 = vsel %vm162, %v57, 0
  %v296 = vsel %vm162, %v58, 0
  %v299 = vsel %vm162, %v59, 0
  %v302 = vsel %vm162, %v60, 0
  %v305 = vsel %vm162, %v61, 0
  %v308 = vsel %vm162, %v62, 0
  %v311 = vsel %vm162, %v63, 0
  %v314 = vsel %vm162, %v64, 0
  %v317 = vsel %vm162, %v65, 0
  %v320 = vsel %vm162, %v66, 0
  %v323 = vsel %vm162, %v67, 0
  %v326 = vsel %vm162, %v68, 0
  %v329 = vsel %vm162, %v69, 0
  %v332 = vsel %vm162, %v70, 0
  %v335 = vsel %vm162, %v71, 0
  %v338 = vsel %vm162, %v72, 0
  %v341 = vsel %vm162, %v73, 0
  %v344 = vsel %vm162, %v74, 0
  %v347 = vsel %vm162, %v75, 0
  %v350 = vsel %vm162, %v76, 0
  %v353 = vsel %vm162, %v77, 0
  %v356 = vsel %vm162, %v78, 0
  %v359 = vsel %vm162, %v79, 0
  %v362 = vsel %vm162, %v80, 0
  %v365 = vsel %vm162, %v81, 0
  %v368 = vsel %vm162, %v82, 0
  %v371 = vsel %vm162, %v83, 0
  %v374 = vsel %vm162, %v84, 0
  %v377 = vsel %vm162, %v85, 0
  %v380 = vsel %vm162, %v86, 0
  %v383 = vsel %vm162, %v87, 0
  %v386 = vsel %vm162, %v88, 0
  %v389 = vsel %vm162, %v89, 0
  %v392 = vsel %vm162, %v90, 0
  %v395 = vsel %vm162, %v91, 0
  %v398 = vsel %vm162, %v92, 0
  %v401 = vsel %vm162, %v93, 0
  %v404 = vsel %vm162, %v94, 0
  %v407 = vsel %vm162, %v95, 0
  %v410 = vsel %vm162, %v96, 0
  %v413 = vsel %vm162, %v97, 0
  %v416 = vsel %vm162, %v98, 0
  %v419 = vsel %vm162, %v99, 0
  %v422 = vsel %vm162, %v100, 0
  %v425 = vsel %vm162, %v101, 0
  %v428 = vsel %vm162, %v102, 0
  %v431 = vsel %vm162, %v103, 0
  %v434 = vsel %vm162, %v104, 0
  %v437 = vsel %vm162, %v105, 0
  %v440 = vsel %vm162, %v106, 0
  %v443 = vsel %vm162, %v107, 0
  %v446 = vsel %vm162, %v108, 0
  %v449 = vsel %vm162, %v109, 0
  %v452 = vsel %vm162, %v110, 0
  %v455 = vsel %vm162, %v111, 0
  %v458 = vsel %vm162, %v112, 0
  %v461 = vsel %vm162, %v113, 0
  %v464 = vsel %vm162, %v114, 0
  %v467 = vsel %vm162, %v115, 0
  %v470 = vsel %vm162, %v116, 0
  %v473 = vsel %vm162, %v117, 0
  %v476 = vsel %vm162, %v118, 0
  %v479 = vsel %vm162, %v119, 0
  %v482 = vsel %vm162, %v120, 0
  %v485 = vsel %vm162, %v121, 0
  %v488 = vsel %vm162, %v122, 0
  %v491 = vsel %vm162, %v123, 0
  %v494 = vsel %vm162, %v124, 0
  %v497 = vsel %vm162, %v125, 0
  %v500 = vsel %vm162, %v126, 0
  %v503 = vsel %vm162, %v127, 0
  %v506 = vsel %vm162, %v128, 0
  %v509 = vsel %vm162, %v129, 0
  %v512 = vsel %vm162, %v130, 0
  %v515 = vsel %vm162, %v131, 0
  %v518 = vsel %vm162, %v132, 0
  %v521 = vsel %vm162, %v133, 0
  %v524 = vsel %vm162, %v134, 0
  %v527 = vsel %vm162, %v135, 0
  %v530 = vsel %vm162, %v136, 0
  %v533 = vsel %vm162, %v137, 0
  %v536 = vsel %vm162, %v138, 0
  %v539 = vsel %vm162, %v139, 0
  %v542 = vsel %vm162, %v140, 0
  %v545 = vsel %vm162, %v141, 0
  %v548 = vsel %vm162, %v142, 0
  %v551 = vsel %vm162, %v143, 0
  %v554 = vsel %vm162, %v144, 0
  %v557 = vsel %vm162, %v145, 0
  %v560 = vsel %vm162, %v146, 0
  %v563 = vsel %vm162, %v147, 0
  %v566 = vsel %vm162, %v148, 0
  %v569 = vsel %vm162, %v149, 0
  %v572 = vsel %vm162, %v150, 0
  %v575 = vsel %vm162, %v151, 0
  %v578 = vsel %vm162, %v152, 0
  %v581 = vsel %vm162, %v153, 0
  %v584 = vsel %vm162, %v154, 0
  %v587 = vsel %vm162, %v155, 0
  %v590 = vsel %vm162, %v156, 0
  %v593 = vsel %vm162, %v157, 0
  %vm595 = vcmask 1040384
  %v597 = vsel %vm595, %v161, 0
  %599 = vmatpush.msra.mxu0 0.0
  %600 = vmatpush.msra.mxu0 0.0
  %601 = vmatpush.msra.mxu0 0.0
  %602 = vmatpush.msra.mxu0 0.0
  %603 = vmatpush.msra.mxu0 0.0
  %604 = vmatpush.msra.mxu0 0.0
  %605 = vmatpush.msra.mxu0 0.0
  %606 = vmatpush.msra.mxu0 0.0
  %607 = vmatpush.msra.mxu0 0.0
  %608 = vmatpush.msra.mxu0 0.0
  %609 = vmatpush.msra.mxu0 0.0
  %610 = vmatpush.msra.mxu0 0.0
  %611 = vmatpush.msra.mxu0 %v597
  %612 = vmatpush.msra.mxu0 %v160
  %613 = vmatpush.msra.mxu0 %v159
  %614 = vmatpush.msra.mxu0 %v158
  %615 = vmatmul.f32.gmra.mxu0 %v164
  %v616 = vpop.f32.mrf.mxu0
  %v617 = vadd.f32 0.0, %v616
  %618 = vmatmul.f32.gmra.mxu0 %v167
  %v619 = vpop.f32.mrf.mxu0
  %v620 = vadd.f32 0.0, %v619
  %621 = vmatmul.f32.gmra.mxu0 %v170
  %v622 = vpop.f32.mrf.mxu0
  %v623 = vadd.f32 0.0, %v622
  %624 = vmatmul.f32.gmra.mxu0 %v173
  %v625 = vpop.f32.mrf.mxu0
  %v626 = vadd.f32 0.0, %v625
  %627 = vmatmul.f32.gmra.mxu0 %v176
  %v628 = vpop.f32.mrf.mxu0
  %v629 = vadd.f32 0.0, %v628
  %630 = vmatmul.f32.gmra.mxu0 %v179
  %v631 = vpop.f32.mrf.mxu0
  %v632 = vadd.f32 0.0, %v631
  %633 = vmatmul.f32.gmra.mxu0 %v182
  %v634 = vpop.f32.mrf.mxu0
  %v635 = vadd.f32 0.0, %v634
  %636 = vmatmul.f32.gmra.mxu0 %v185
  %v637 = vpop.f32.mrf.mxu0
  %v638 = vadd.f32 0.0, %v637
  %639 = vmatmul.f32.gmra.mxu0 %v188
  %v640 = vpop.f32.mrf.mxu0
  %v641 = vadd.f32 0.0, %v640
  %642 = vmatmul.f32.gmra.mxu0 %v191
  %v643 = vpop.f32.mrf.mxu0
  %v644 = vadd.f32 0.0, %v643
  %645 = vmatmul.f32.gmra.mxu0 %v194
  %v646 = vpop.f32.mrf.mxu0
  %v647 = vadd.f32 0.0, %v646
  %648 = vmatmul.f32.gmra.mxu0 %v197
  %v649 = vpop.f32.mrf.mxu0
  %v650 = vadd.f32 0.0, %v649
  %651 = vmatmul.f32.gmra.mxu0 %v200
  %v652 = vpop.f32.mrf.mxu0
  %v653 = vadd.f32 0.0, %v652
  %654 = vmatmul.f32.gmra.mxu0 %v203
  %v655 = vpop.f32.mrf.mxu0
  %v656 = vadd.f32 0.0, %v655
  %657 = vmatmul.f32.gmra.mxu0 %v206
  %v658 = vpop.f32.mrf.mxu0
  %v659 = vadd.f32 0.0, %v658
  %660 = vmatmul.f32.gmra.mxu0 %v209
  %v661 = vpop.f32.mrf.mxu0
  %v662 = vadd.f32 0.0, %v661
  %663 = vmatmul.f32.gmra.mxu0 %v212
  %v664 = vpop.f32.mrf.mxu0
  %v665 = vadd.f32 0.0, %v664
  %666 = vmatmul.f32.gmra.mxu0 %v215
  %v667 = vpop.f32.mrf.mxu0
  %v668 = vadd.f32 0.0, %v667
  %669 = vmatmul.f32.gmra.mxu0 %v218
  %v670 = vpop.f32.mrf.mxu0
  %v671 = vadd.f32 0.0, %v670
  %672 = vmatmul.f32.gmra.mxu0 %v221
  %v673 = vpop.f32.mrf.mxu0
  %v674 = vadd.f32 0.0, %v673
  %675 = vmatmul.f32.gmra.mxu0 %v224
  %v676 = vpop.f32.mrf.mxu0
  %v677 = vadd.f32 0.0, %v676
  %678 = vmatmul.f32.gmra.mxu0 %v227
  %v679 = vpop.f32.mrf.mxu0
  %v680 = vadd.f32 0.0, %v679
  %681 = vmatmul.f32.gmra.mxu0 %v230
  %v682 = vpop.f32.mrf.mxu0
  %v683 = vadd.f32 0.0, %v682
  %684 = vmatmul.f32.gmra.mxu0 %v233
  %v685 = vpop.f32.mrf.mxu0
  %v686 = vadd.f32 0.0, %v685
  %687 = vmatmul.f32.gmra.mxu0 %v236
  %v688 = vpop.f32.mrf.mxu0
  %v689 = vadd.f32 0.0, %v688
  %690 = vmatmul.f32.gmra.mxu0 %v239
  %v691 = vpop.f32.mrf.mxu0
  %v692 = vadd.f32 0.0, %v691
  %693 = vmatmul.f32.gmra.mxu0 %v242
  %v694 = vpop.f32.mrf.mxu0
  %v695 = vadd.f32 0.0, %v694
  %696 = vmatmul.f32.gmra.mxu0 %v245
  %v697 = vpop.f32.mrf.mxu0
  %v698 = vadd.f32 0.0, %v697
  %699 = vmatmul.f32.gmra.mxu0 %v248
  %v700 = vpop.f32.mrf.mxu0
  %v701 = vadd.f32 0.0, %v700
  %702 = vmatmul.f32.gmra.mxu0 %v251
  %v703 = vpop.f32.mrf.mxu0
  %v704 = vadd.f32 0.0, %v703
  %705 = vmatmul.f32.gmra.mxu0 %v254
  %v706 = vpop.f32.mrf.mxu0
  %v707 = vadd.f32 0.0, %v706
  %708 = vmatmul.f32.gmra.mxu0 %v257
  %v709 = vpop.f32.mrf.mxu0
  %v710 = vadd.f32 0.0, %v709
  %711 = vmatmul.f32.gmra.mxu0 %v260
  %v712 = vpop.f32.mrf.mxu0
  %v713 = vadd.f32 0.0, %v712
  %714 = vmatmul.f32.gmra.mxu0 %v263
  %v715 = vpop.f32.mrf.mxu0
  %v716 = vadd.f32 0.0, %v715
  %717 = vmatmul.f32.gmra.mxu0 %v266
  %v718 = vpop.f32.mrf.mxu0
  %v719 = vadd.f32 0.0, %v718
  %720 = vmatmul.f32.gmra.mxu0 %v269
  %v721 = vpop.f32.mrf.mxu0
  %v722 = vadd.f32 0.0, %v721
  %723 = vmatmul.f32.gmra.mxu0 %v272
  %v724 = vpop.f32.mrf.mxu0
  %v725 = vadd.f32 0.0, %v724
  %726 = vmatmul.f32.gmra.mxu0 %v275
  %v727 = vpop.f32.mrf.mxu0
  %v728 = vadd.f32 0.0, %v727
  %729 = vmatmul.f32.gmra.mxu0 %v278
  %v730 = vpop.f32.mrf.mxu0
  %v731 = vadd.f32 0.0, %v730
  %732 = vmatmul.f32.gmra.mxu0 %v281
  %v733 = vpop.f32.mrf.mxu0
  %v734 = vadd.f32 0.0, %v733
  %735 = vmatmul.f32.gmra.mxu0 %v284
  %v736 = vpop.f32.mrf.mxu0
  %v737 = vadd.f32 0.0, %v736
  %738 = vmatmul.f32.gmra.mxu0 %v287
  %v739 = vpop.f32.mrf.mxu0
  %v740 = vadd.f32 0.0, %v739
  %741 = vmatmul.f32.gmra.mxu0 %v290
  %v742 = vpop.f32.mrf.mxu0
  %v743 = vadd.f32 0.0, %v742
  %744 = vmatmul.f32.gmra.mxu0 %v293
  %v745 = vpop.f32.mrf.mxu0
  %v746 = vadd.f32 0.0, %v745
  %747 = vmatmul.f32.gmra.mxu0 %v296
  %v748 = vpop.f32.mrf.mxu0
  %v749 = vadd.f32 0.0, %v748
  %750 = vmatmul.f32.gmra.mxu0 %v299
  %v751 = vpop.f32.mrf.mxu0
  %v752 = vadd.f32 0.0, %v751
  %753 = vmatmul.f32.gmra.mxu0 %v302
  %v754 = vpop.f32.mrf.mxu0
  %v755 = vadd.f32 0.0, %v754
  %756 = vmatmul.f32.gmra.mxu0 %v305
  %v757 = vpop.f32.mrf.mxu0
  %v758 = vadd.f32 0.0, %v757
  %759 = vmatmul.f32.gmra.mxu0 %v308
  %v760 = vpop.f32.mrf.mxu0
  %v761 = vadd.f32 0.0, %v760
  %762 = vmatmul.f32.gmra.mxu0 %v311
  %v763 = vpop.f32.mrf.mxu0
  %v764 = vadd.f32 0.0, %v763
  %765 = vmatmul.f32.gmra.mxu0 %v314
  %v766 = vpop.f32.mrf.mxu0
  %v767 = vadd.f32 0.0, %v766
  %768 = vmatmul.f32.gmra.mxu0 %v317
  %v769 = vpop.f32.mrf.mxu0
  %v770 = vadd.f32 0.0, %v769
  %771 = vmatmul.f32.gmra.mxu0 %v320
  %v772 = vpop.f32.mrf.mxu0
  %v773 = vadd.f32 0.0, %v772
  %774 = vmatmul.f32.gmra.mxu0 %v323
  %v775 = vpop.f32.mrf.mxu0
  %v776 = vadd.f32 0.0, %v775
  %777 = vmatmul.f32.gmra.mxu0 %v326
  %v778 = vpop.f32.mrf.mxu0
  %v779 = vadd.f32 0.0, %v778
  %780 = vmatmul.f32.gmra.mxu0 %v329
  %v781 = vpop.f32.mrf.mxu0
  %v782 = vadd.f32 0.0, %v781
  %783 = vmatmul.f32.gmra.mxu0 %v332
  %v784 = vpop.f32.mrf.mxu0
  %v785 = vadd.f32 0.0, %v784
  %786 = vmatmul.f32.gmra.mxu0 %v335
  %v787 = vpop.f32.mrf.mxu0
  %v788 = vadd.f32 0.0, %v787
  %789 = vmatmul.f32.gmra.mxu0 %v338
  %v790 = vpop.f32.mrf.mxu0
  %v791 = vadd.f32 0.0, %v790
  %792 = vmatmul.f32.gmra.mxu0 %v341
  %v793 = vpop.f32.mrf.mxu0
  %v794 = vadd.f32 0.0, %v793
  %795 = vmatmul.f32.gmra.mxu0 %v344
  %v796 = vpop.f32.mrf.mxu0
  %v797 = vadd.f32 0.0, %v796
  %798 = vmatmul.f32.gmra.mxu0 %v347
  %v799 = vpop.f32.mrf.mxu0
  %v800 = vadd.f32 0.0, %v799
  %801 = vmatmul.f32.gmra.mxu0 %v350
  %v802 = vpop.f32.mrf.mxu0
  %v803 = vadd.f32 0.0, %v802
  %804 = vmatmul.f32.gmra.mxu0 %v353
  %v805 = vpop.f32.mrf.mxu0
  %v806 = vadd.f32 0.0, %v805
  %807 = vmatmul.f32.gmra.mxu0 %v356
  %v808 = vpop.f32.mrf.mxu0
  %v809 = vadd.f32 0.0, %v808
  %810 = vmatmul.f32.gmra.mxu0 %v359
  %v811 = vpop.f32.mrf.mxu0
  %v812 = vadd.f32 0.0, %v811
  %813 = vmatmul.f32.gmra.mxu0 %v362
  %v814 = vpop.f32.mrf.mxu0
  %v815 = vadd.f32 0.0, %v814
  %816 = vmatmul.f32.gmra.mxu0 %v365
  %v817 = vpop.f32.mrf.mxu0
  %v818 = vadd.f32 0.0, %v817
  %819 = vmatmul.f32.gmra.mxu0 %v368
  %v820 = vpop.f32.mrf.mxu0
  %v821 = vadd.f32 0.0, %v820
  %822 = vmatmul.f32.gmra.mxu0 %v371
  %v823 = vpop.f32.mrf.mxu0
  %v824 = vadd.f32 0.0, %v823
  %825 = vmatmul.f32.gmra.mxu0 %v374
  %v826 = vpop.f32.mrf.mxu0
  %v827 = vadd.f32 0.0, %v826
  %828 = vmatmul.f32.gmra.mxu0 %v377
  %v829 = vpop.f32.mrf.mxu0
  %v830 = vadd.f32 0.0, %v829
  %831 = vmatmul.f32.gmra.mxu0 %v380
  %v832 = vpop.f32.mrf.mxu0
  %v833 = vadd.f32 0.0, %v832
  %834 = vmatmul.f32.gmra.mxu0 %v383
  %v835 = vpop.f32.mrf.mxu0
  %v836 = vadd.f32 0.0, %v835
  %837 = vmatmul.f32.gmra.mxu0 %v386
  %v838 = vpop.f32.mrf.mxu0
  %v839 = vadd.f32 0.0, %v838
  %840 = vmatmul.f32.gmra.mxu0 %v389
  %v841 = vpop.f32.mrf.mxu0
  %v842 = vadd.f32 0.0, %v841
  %843 = vmatmul.f32.gmra.mxu0 %v392
  %v844 = vpop.f32.mrf.mxu0
  %v845 = vadd.f32 0.0, %v844
  %846 = vmatmul.f32.gmra.mxu0 %v395
  %v847 = vpop.f32.mrf.mxu0
  %v848 = vadd.f32 0.0, %v847
  %849 = vmatmul.f32.gmra.mxu0 %v398
  %v850 = vpop.f32.mrf.mxu0
  %v851 = vadd.f32 0.0, %v850
  %852 = vmatmul.f32.gmra.mxu0 %v401
  %v853 = vpop.f32.mrf.mxu0
  %v854 = vadd.f32 0.0, %v853
  %855 = vmatmul.f32.gmra.mxu0 %v404
  %v856 = vpop.f32.mrf.mxu0
  %v857 = vadd.f32 0.0, %v856
  %858 = vmatmul.f32.gmra.mxu0 %v407
  %v859 = vpop.f32.mrf.mxu0
  %v860 = vadd.f32 0.0, %v859
  %861 = vmatmul.f32.gmra.mxu0 %v410
  %v862 = vpop.f32.mrf.mxu0
  %v863 = vadd.f32 0.0, %v862
  %864 = vmatmul.f32.gmra.mxu0 %v413
  %v865 = vpop.f32.mrf.mxu0
  %v866 = vadd.f32 0.0, %v865
  %867 = vmatmul.f32.gmra.mxu0 %v416
  %v868 = vpop.f32.mrf.mxu0
  %v869 = vadd.f32 0.0, %v868
  %870 = vmatmul.f32.gmra.mxu0 %v419
  %v871 = vpop.f32.mrf.mxu0
  %v872 = vadd.f32 0.0, %v871
  %873 = vmatmul.f32.gmra.mxu0 %v422
  %v874 = vpop.f32.mrf.mxu0
  %v875 = vadd.f32 0.0, %v874
  %876 = vmatmul.f32.gmra.mxu0 %v425
  %v877 = vpop.f32.mrf.mxu0
  %v878 = vadd.f32 0.0, %v877
  %879 = vmatmul.f32.gmra.mxu0 %v428
  %v880 = vpop.f32.mrf.mxu0
  %v881 = vadd.f32 0.0, %v880
  %882 = vmatmul.f32.gmra.mxu0 %v431
  %v883 = vpop.f32.mrf.mxu0
  %v884 = vadd.f32 0.0, %v883
  %885 = vmatmul.f32.gmra.mxu0 %v434
  %v886 = vpop.f32.mrf.mxu0
  %v887 = vadd.f32 0.0, %v886
  %888 = vmatmul.f32.gmra.mxu0 %v437
  %v889 = vpop.f32.mrf.mxu0
  %v890 = vadd.f32 0.0, %v889
  %891 = vmatmul.f32.gmra.mxu0 %v440
  %v892 = vpop.f32.mrf.mxu0
  %v893 = vadd.f32 0.0, %v892
  %894 = vmatmul.f32.gmra.mxu0 %v443
  %v895 = vpop.f32.mrf.mxu0
  %v896 = vadd.f32 0.0, %v895
  %897 = vmatmul.f32.gmra.mxu0 %v446
  %v898 = vpop.f32.mrf.mxu0
  %v899 = vadd.f32 0.0, %v898
  %900 = vmatmul.f32.gmra.mxu0 %v449
  %v901 = vpop.f32.mrf.mxu0
  %v902 = vadd.f32 0.0, %v901
  %903 = vmatmul.f32.gmra.mxu0 %v452
  %v904 = vpop.f32.mrf.mxu0
  %v905 = vadd.f32 0.0, %v904
  %906 = vmatmul.f32.gmra.mxu0 %v455
  %v907 = vpop.f32.mrf.mxu0
  %v908 = vadd.f32 0.0, %v907
  %909 = vmatmul.f32.gmra.mxu0 %v458
  %v910 = vpop.f32.mrf.mxu0
  %v911 = vadd.f32 0.0, %v910
  %912 = vmatmul.f32.gmra.mxu0 %v461
  %v913 = vpop.f32.mrf.mxu0
  %v914 = vadd.f32 0.0, %v913
  %915 = vmatmul.f32.gmra.mxu0 %v464
  %v916 = vpop.f32.mrf.mxu0
  %v917 = vadd.f32 0.0, %v916
  %918 = vmatmul.f32.gmra.mxu0 %v467
  %v919 = vpop.f32.mrf.mxu0
  %v920 = vadd.f32 0.0, %v919
  %921 = vmatmul.f32.gmra.mxu0 %v470
  %v922 = vpop.f32.mrf.mxu0
  %v923 = vadd.f32 0.0, %v922
  %924 = vmatmul.f32.gmra.mxu0 %v473
  %v925 = vpop.f32.mrf.mxu0
  %v926 = vadd.f32 0.0, %v925
  %927 = vmatmul.f32.gmra.mxu0 %v476
  %v928 = vpop.f32.mrf.mxu0
  %v929 = vadd.f32 0.0, %v928
  %930 = vmatmul.f32.gmra.mxu0 %v479
  %v931 = vpop.f32.mrf.mxu0
  %v932 = vadd.f32 0.0, %v931
  %933 = vmatmul.f32.gmra.mxu0 %v482
  %v934 = vpop.f32.mrf.mxu0
  %v935 = vadd.f32 0.0, %v934
  %936 = vmatmul.f32.gmra.mxu0 %v485
  %v937 = vpop.f32.mrf.mxu0
  %v938 = vadd.f32 0.0, %v937
  %939 = vmatmul.f32.gmra.mxu0 %v488
  %v940 = vpop.f32.mrf.mxu0
  %v941 = vadd.f32 0.0, %v940
  %942 = vmatmul.f32.gmra.mxu0 %v491
  %v943 = vpop.f32.mrf.mxu0
  %v944 = vadd.f32 0.0, %v943
  %945 = vmatmul.f32.gmra.mxu0 %v494
  %v946 = vpop.f32.mrf.mxu0
  %v947 = vadd.f32 0.0, %v946
  %948 = vmatmul.f32.gmra.mxu0 %v497
  %v949 = vpop.f32.mrf.mxu0
  %v950 = vadd.f32 0.0, %v949
  %951 = vmatmul.f32.gmra.mxu0 %v500
  %v952 = vpop.f32.mrf.mxu0
  %v953 = vadd.f32 0.0, %v952
  %954 = vmatmul.f32.gmra.mxu0 %v503
  %v955 = vpop.f32.mrf.mxu0
  %v956 = vadd.f32 0.0, %v955
  %957 = vmatmul.f32.gmra.mxu0 %v506
  %v958 = vpop.f32.mrf.mxu0
  %v959 = vadd.f32 0.0, %v958
  %960 = vmatmul.f32.gmra.mxu0 %v509
  %v961 = vpop.f32.mrf.mxu0
  %v962 = vadd.f32 0.0, %v961
  %963 = vmatmul.f32.gmra.mxu0 %v512
  %v964 = vpop.f32.mrf.mxu0
  %v965 = vadd.f32 0.0, %v964
  %966 = vmatmul.f32.gmra.mxu0 %v515
  %v967 = vpop.f32.mrf.mxu0
  %v968 = vadd.f32 0.0, %v967
  %969 = vmatmul.f32.gmra.mxu0 %v518
  %v970 = vpop.f32.mrf.mxu0
  %v971 = vadd.f32 0.0, %v970
  %972 = vmatmul.f32.gmra.mxu0 %v521
  %v973 = vpop.f32.mrf.mxu0
  %v974 = vadd.f32 0.0, %v973
  %975 = vmatmul.f32.gmra.mxu0 %v524
  %v976 = vpop.f32.mrf.mxu0
  %v977 = vadd.f32 0.0, %v976
  %978 = vmatmul.f32.gmra.mxu0 %v527
  %v979 = vpop.f32.mrf.mxu0
  %v980 = vadd.f32 0.0, %v979
  %981 = vmatmul.f32.gmra.mxu0 %v530
  %v982 = vpop.f32.mrf.mxu0
  %v983 = vadd.f32 0.0, %v982
  %984 = vmatmul.f32.gmra.mxu0 %v533
  %v985 = vpop.f32.mrf.mxu0
  %v986 = vadd.f32 0.0, %v985
  %987 = vmatmul.f32.gmra.mxu0 %v536
  %v988 = vpop.f32.mrf.mxu0
  %v989 = vadd.f32 0.0, %v988
  %990 = vmatmul.f32.gmra.mxu0 %v539
  %v991 = vpop.f32.mrf.mxu0
  %v992 = vadd.f32 0.0, %v991
  %993 = vmatmul.f32.gmra.mxu0 %v542
  %v994 = vpop.f32.mrf.mxu0
  %v995 = vadd.f32 0.0, %v994
  %996 = vmatmul.f32.gmra.mxu0 %v545
  %v997 = vpop.f32.mrf.mxu0
  %v998 = vadd.f32 0.0, %v997
  %999 = vmatmul.f32.gmra.mxu0 %v548
  %v1000 = vpop.f32.mrf.mxu0
  %v1001 = vadd.f32 0.0, %v1000
  %1002 = vmatmul.f32.gmra.mxu0 %v551
  %v1003 = vpop.f32.mrf.mxu0
  %v1004 = vadd.f32 0.0, %v1003
  %1005 = vmatmul.f32.gmra.mxu0 %v554
  %v1006 = vpop.f32.mrf.mxu0
  %v1007 = vadd.f32 0.0, %v1006
  %1008 = vmatmul.f32.gmra.mxu0 %v557
  %v1009 = vpop.f32.mrf.mxu0
  %v1010 = vadd.f32 0.0, %v1009
  %1011 = vmatmul.f32.gmra.mxu0 %v560
  %v1012 = vpop.f32.mrf.mxu0
  %v1013 = vadd.f32 0.0, %v1012
  %1014 = vmatmul.f32.gmra.mxu0 %v563
  %v1015 = vpop.f32.mrf.mxu0
  %v1016 = vadd.f32 0.0, %v1015
  %1017 = vmatmul.f32.gmra.mxu0 %v566
  %v1018 = vpop.f32.mrf.mxu0
  %v1019 = vadd.f32 0.0, %v1018
  %1020 = vmatmul.f32.gmra.mxu0 %v569
  %v1021 = vpop.f32.mrf.mxu0
  %v1022 = vadd.f32 0.0, %v1021
  %1023 = vmatmul.f32.gmra.mxu0 %v572
  %v1024 = vpop.f32.mrf.mxu0
  %v1025 = vadd.f32 0.0, %v1024
  %1026 = vmatmul.f32.gmra.mxu0 %v575
  %v1027 = vpop.f32.mrf.mxu0
  %v1028 = vadd.f32 0.0, %v1027
  %1029 = vmatmul.f32.gmra.mxu0 %v578
  %v1030 = vpop.f32.mrf.mxu0
  %v1031 = vadd.f32 0.0, %v1030
  %1032 = vmatmul.f32.gmra.mxu0 %v581
  %v1033 = vpop.f32.mrf.mxu0
  %v1034 = vadd.f32 0.0, %v1033
  %1035 = vmatmul.f32.gmra.mxu0 %v584
  %v1036 = vpop.f32.mrf.mxu0
  %v1037 = vadd.f32 0.0, %v1036
  %1038 = vmatmul.f32.gmra.mxu0 %v587
  %v1039 = vpop.f32.mrf.mxu0
  %v1040 = vadd.f32 0.0, %v1039
  %1041 = vmatmul.f32.gmra.mxu0 %v590
  %v1042 = vpop.f32.mrf.mxu0
  %v1043 = vadd.f32 0.0, %v1042
  %1044 = vmatmul.f32.gmra.mxu0 %v593
  %v1045 = vpop.f32.mrf.mxu0
  %v1046 = vadd.f32 0.0, %v1045
  %1047 = vdwg.mxu0
  %v1048 = vmax.f32 %v617, %v725
  %v1049 = vmax.f32 %v620, %v728
  %v1050 = vmax.f32 %v623, %v731
  %v1051 = vmax.f32 %v626, %v734
  %v1052 = vmax.f32 %v629, %v737
  %v1053 = vmax.f32 %v632, %v740
  %v1054 = vmax.f32 %v635, %v743
  %v1055 = vmax.f32 %v638, %v746
  %v1056 = vmax.f32 %v641, %v749
  %v1057 = vmax.f32 %v644, %v752
  %v1058 = vmax.f32 %v647, %v755
  %v1059 = vmax.f32 %v650, %v758
  %v1060 = vmax.f32 %v653, %v761
  %v1061 = vmax.f32 %v656, %v764
  %v1062 = vmax.f32 %v659, %v767
  %v1063 = vmax.f32 %v662, %v770
  %v1064 = vmax.f32 %v665, %v773
  %v1065 = vmax.f32 %v668, %v776
  %v1066 = vmax.f32 %v671, %v779
  %v1067 = vmax.f32 %v674, %v782
  %v1068 = vmax.f32 %v677, %v785
  %v1069 = vmax.f32 %v680, %v788
  %v1070 = vmax.f32 %v683, %v791
  %v1071 = vmax.f32 %v686, %v794
  %v1072 = vmax.f32 %v689, %v797
  %v1073 = vmax.f32 %v692, %v800
  %v1074 = vmax.f32 %v695, %v803
  %v1075 = vmax.f32 %v698, %v806
  %v1076 = vmax.f32 %v701, %v809
  %v1077 = vmax.f32 %v704, %v812
  %v1078 = vmax.f32 %v707, %v815
  %v1079 = vmax.f32 %v710, %v818
  %v1080 = vmax.f32 %v713, %v821
  %v1081 = vmax.f32 %v716, %v824
  %v1082 = vmax.f32 %v719, %v827
  %v1083 = vmax.f32 %v722, %v830
  %v1084 = vmax.f32 %v833, %v941
  %v1085 = vmax.f32 %v836, %v944
  %v1086 = vmax.f32 %v839, %v947
  %v1087 = vmax.f32 %v842, %v950
  %v1088 = vmax.f32 %v845, %v953
  %v1089 = vmax.f32 %v848, %v956
  %v1090 = vmax.f32 %v851, %v959
  %v1091 = vmax.f32 %v854, %v962
  %v1092 = vmax.f32 %v857, %v965
  %v1093 = vmax.f32 %v860, %v968
  %v1094 = vmax.f32 %v863, %v971
  %v1095 = vmax.f32 %v866, %v974
  %v1096 = vmax.f32 %v869, %v977
  %v1097 = vmax.f32 %v872, %v980
  %v1098 = vmax.f32 %v875, %v983
  %v1099 = vmax.f32 %v878, %v986
  %v1100 = vmax.f32 %v881, %v989
  %v1101 = vmax.f32 %v884, %v992
  %v1102 = vmax.f32 %v887, %v995
  %v1103 = vmax.f32 %v890, %v998
  %v1104 = vmax.f32 %v893, %v1001
  %v1105 = vmax.f32 %v896, %v1004
  %v1106 = vmax.f32 %v899, %v1007
  %v1107 = vmax.f32 %v902, %v1010
  %v1108 = vmax.f32 %v905, %v1013
  %v1109 = vmax.f32 %v908, %v1016
  %v1110 = vmax.f32 %v911, %v1019
  %v1111 = vmax.f32 %v914, %v1022
  %v1112 = vmax.f32 %v917, %v1025
  %v1113 = vmax.f32 %v920, %v1028
  %v1114 = vmax.f32 %v923, %v1031
  %v1115 = vmax.f32 %v926, %v1034
  %v1116 = vmax.f32 %v929, %v1037
  %v1117 = vmax.f32 %v932, %v1040
  %v1118 = vmax.f32 %v935, %v1043
  %v1119 = vmax.f32 %v938, %v1046
  %v1120 = vmax.f32 %v1048, %v1084
  %v1121 = vmax.f32 %v1049, %v1085
  %v1122 = vmax.f32 %v1050, %v1086
  %v1123 = vmax.f32 %v1051, %v1087
  %v1124 = vmax.f32 %v1052, %v1088
  %v1125 = vmax.f32 %v1053, %v1089
  %v1126 = vmax.f32 %v1054, %v1090
  %v1127 = vmax.f32 %v1055, %v1091
  %v1128 = vmax.f32 %v1056, %v1092
  %v1129 = vmax.f32 %v1057, %v1093
  %v1130 = vmax.f32 %v1058, %v1094
  %v1131 = vmax.f32 %v1059, %v1095
  %v1132 = vmax.f32 %v1060, %v1096
  %v1133 = vmax.f32 %v1061, %v1097
  %v1134 = vmax.f32 %v1062, %v1098
  %v1135 = vmax.f32 %v1063, %v1099
  %v1136 = vmax.f32 %v1064, %v1100
  %v1137 = vmax.f32 %v1065, %v1101
  %v1138 = vmax.f32 %v1066, %v1102
  %v1139 = vmax.f32 %v1067, %v1103
  %v1140 = vmax.f32 %v1068, %v1104
  %v1141 = vmax.f32 %v1069, %v1105
  %v1142 = vmax.f32 %v1070, %v1106
  %v1143 = vmax.f32 %v1071, %v1107
  %v1144 = vmax.f32 %v1072, %v1108
  %v1145 = vmax.f32 %v1073, %v1109
  %v1146 = vmax.f32 %v1074, %v1110
  %v1147 = vmax.f32 %v1075, %v1111
  %v1148 = vmax.f32 %v1076, %v1112
  %v1149 = vmax.f32 %v1077, %v1113
  %v1150 = vmax.f32 %v1078, %v1114
  %v1151 = vmax.f32 %v1079, %v1115
  %v1152 = vmax.f32 %v1080, %v1116
  %v1153 = vmax.f32 %v1081, %v1117
  %v1154 = vmax.f32 %v1082, %v1118
  %v1155 = vmax.f32 %v1083, %v1119
  %v1156 = vld [vmem:[%s2] sm:$0x1]
  %v1158 = vperm.slane %v1156, 0
  %v1160 = vadd.f32 %v1120, %v1158
  %v1161 = vadd.f32 %v1121, %v1158
  %v1162 = vadd.f32 %v1122, %v1158
  %v1163 = vadd.f32 %v1123, %v1158
  %v1164 = vadd.f32 %v1124, %v1158
  %v1165 = vadd.f32 %v1125, %v1158
  %v1166 = vadd.f32 %v1126, %v1158
  %v1167 = vadd.f32 %v1127, %v1158
  %v1168 = vadd.f32 %v1128, %v1158
  %v1169 = vadd.f32 %v1129, %v1158
  %v1170 = vadd.f32 %v1130, %v1158
  %v1171 = vadd.f32 %v1131, %v1158
  %v1172 = vadd.f32 %v1132, %v1158
  %v1173 = vadd.f32 %v1133, %v1158
  %v1174 = vadd.f32 %v1134, %v1158
  %v1175 = vadd.f32 %v1135, %v1158
  %v1176 = vadd.f32 %v1136, %v1158
  %v1177 = vadd.f32 %v1137, %v1158
  %v1178 = vadd.f32 %v1138, %v1158
  %v1179 = vadd.f32 %v1139, %v1158
  %v1180 = vadd.f32 %v1140, %v1158
  %v1181 = vadd.f32 %v1141, %v1158
  %v1182 = vadd.f32 %v1142, %v1158
  %v1183 = vadd.f32 %v1143, %v1158
  %v1184 = vadd.f32 %v1144, %v1158
  %v1185 = vadd.f32 %v1145, %v1158
  %v1186 = vadd.f32 %v1146, %v1158
  %v1187 = vadd.f32 %v1147, %v1158
  %v1188 = vadd.f32 %v1148, %v1158
  %v1189 = vadd.f32 %v1149, %v1158
  %v1190 = vadd.f32 %v1150, %v1158
  %v1191 = vadd.f32 %v1151, %v1158
  %v1192 = vadd.f32 %v1152, %v1158
  %v1193 = vadd.f32 %v1153, %v1158
  %v1194 = vadd.f32 %v1154, %v1158
  %v1195 = vadd.f32 %v1155, %v1158
  %v1196 = vmax.f32 %v1160, 0.0
  %v1197 = vmax.f32 %v1161, 0.0
  %v1198 = vmax.f32 %v1162, 0.0
  %v1199 = vmax.f32 %v1163, 0.0
  %v1200 = vmax.f32 %v1164, 0.0
  %v1201 = vmax.f32 %v1165, 0.0
  %v1202 = vmax.f32 %v1166, 0.0
  %v1203 = vmax.f32 %v1167, 0.0
  %v1204 = vmax.f32 %v1168, 0.0
  %v1205 = vmax.f32 %v1169, 0.0
  %v1206 = vmax.f32 %v1170, 0.0
  %v1207 = vmax.f32 %v1171, 0.0
  %v1208 = vmax.f32 %v1172, 0.0
  %v1209 = vmax.f32 %v1173, 0.0
  %v1210 = vmax.f32 %v1174, 0.0
  %v1211 = vmax.f32 %v1175, 0.0
  %v1212 = vmax.f32 %v1176, 0.0
  %v1213 = vmax.f32 %v1177, 0.0
  %v1214 = vmax.f32 %v1178, 0.0
  %v1215 = vmax.f32 %v1179, 0.0
  %v1216 = vmax.f32 %v1180, 0.0
  %v1217 = vmax.f32 %v1181, 0.0
  %v1218 = vmax.f32 %v1182, 0.0
  %v1219 = vmax.f32 %v1183, 0.0
  %v1220 = vmax.f32 %v1184, 0.0
  %v1221 = vmax.f32 %v1185, 0.0
  %v1222 = vmax.f32 %v1186, 0.0
  %v1223 = vmax.f32 %v1187, 0.0
  %v1224 = vmax.f32 %v1188, 0.0
  %v1225 = vmax.f32 %v1189, 0.0
  %v1226 = vmax.f32 %v1190, 0.0
  %v1227 = vmax.f32 %v1191, 0.0
  %v1228 = vmax.f32 %v1192, 0.0
  %v1229 = vmax.f32 %v1193, 0.0
  %v1230 = vmax.f32 %v1194, 0.0
  %v1231 = vmax.f32 %v1195, 0.0
  %vm1232 = vcmask 15360
  %1233 = vst.msk [vmem:[%s3] sm:$0xff] %vm1232, %v1196
  %1234 = vst.msk [vmem:[%s3 + $0x8] sm:$0xff] %vm1232, %v1197
  %1235 = vst.msk [vmem:[%s3 + $0x10] sm:$0xff] %vm1232, %v1198
  %1236 = vst.msk [vmem:[%s3 + $0x18] sm:$0xff] %vm1232, %v1199
  %1237 = vst.msk [vmem:[%s3 + $0x20] sm:$0xff] %vm1232, %v1200
  %1238 = vst.msk [vmem:[%s3 + $0x28] sm:$0xff] %vm1232, %v1201
  %1239 = vst.msk [vmem:[%s3 + $0x30] sm:$0xff] %vm1232, %v1202
  %1240 = vst.msk [vmem:[%s3 + $0x38] sm:$0xff] %vm1232, %v1203
  %1241 = vst.msk [vmem:[%s3 + $0x40] sm:$0xff] %vm1232, %v1204
  %1242 = vst.msk [vmem:[%s3 + $0x48] sm:$0xff] %vm1232, %v1205
  %1243 = vst.msk [vmem:[%s3 + $0x50] sm:$0xff] %vm1232, %v1206
  %1244 = vst.msk [vmem:[%s3 + $0x58] sm:$0xff] %vm1232, %v1207
  %1245 = vst.msk [vmem:[%s3 + $0x60] sm:$0xff] %vm1232, %v1208
  %1246 = vst.msk [vmem:[%s3 + $0x68] sm:$0xff] %vm1232, %v1209
  %1247 = vst.msk [vmem:[%s3 + $0x70] sm:$0xff] %vm1232, %v1210
  %1248 = vst.msk [vmem:[%s3 + $0x78] sm:$0xff] %vm1232, %v1211
  %1249 = vst.msk [vmem:[%s3 + $0x80] sm:$0xff] %vm1232, %v1212
  %1250 = vst.msk [vmem:[%s3 + $0x88] sm:$0xff] %vm1232, %v1213
  %1251 = vst.msk [vmem:[%s3 + $0x90] sm:$0xff] %vm1232, %v1214
  %1252 = vst.msk [vmem:[%s3 + $0x98] sm:$0xff] %vm1232, %v1215
  %1253 = vst.msk [vmem:[%s3 + $0xa0] sm:$0xff] %vm1232, %v1216
  %1254 = vst.msk [vmem:[%s3 + $0xa8] sm:$0xff] %vm1232, %v1217
  %1255 = vst.msk [vmem:[%s3 + $0xb0] sm:$0xff] %vm1232, %v1218
  %1256 = vst.msk [vmem:[%s3 + $0xb8] sm:$0xff] %vm1232, %v1219
  %1257 = vst.msk [vmem:[%s3 + $0xc0] sm:$0xff] %vm1232, %v1220
  %1258 = vst.msk [vmem:[%s3 + $0xc8] sm:$0xff] %vm1232, %v1221
  %1259 = vst.msk [vmem:[%s3 + $0xd0] sm:$0xff] %vm1232, %v1222
  %1260 = vst.msk [vmem:[%s3 + $0xd8] sm:$0xff] %vm1232, %v1223
  %1261 = vst.msk [vmem:[%s3 + $0xe0] sm:$0xff] %vm1232, %v1224
  %1262 = vst.msk [vmem:[%s3 + $0xe8] sm:$0xff] %vm1232, %v1225
  %1263 = vst.msk [vmem:[%s3 + $0xf0] sm:$0xff] %vm1232, %v1226
  %1264 = vst.msk [vmem:[%s3 + $0xf8] sm:$0xff] %vm1232, %v1227
  %1265 = vst.msk [vmem:[%s3 + $0x100] sm:$0xff] %vm1232, %v1228
  %1266 = vst.msk [vmem:[%s3 + $0x108] sm:$0xff] %vm1232, %v1229
  %1267 = vst.msk [vmem:[%s3 + $0x110] sm:$0xff] %vm1232, %v1230
  %1268 = vst.msk [vmem:[%s3 + $0x118] sm:$0xff] %vm1232, %v1231
  // Predicated region
  $region14: #{net_forward.2} parent=0 // pred_check
    _
  $region15: #{net_forward.2} parent=0 // pred_check_branch
    %1270 = sbr.rel (0) target = $region17
  $region16: #{net_forward.2} parent=0 // pred_region
    _
  $region17: #{net_forward.2} parent=0 // pred_fallthru
    _
  // Predicated region
  $region18: #{net_forward.2} parent=0 // pred_check
    _
  $region19: #{net_forward.2} parent=0 // pred_check_branch
    %1272 = sbr.rel (0) target = $region21
  $region20: #{net_forward.2} parent=0 // pred_region
    _
  $region21: #{net_forward.2} parent=0 // pred_fallthru
    _

// kernel: net_forward.3
$region0: #{net_forward.3}
  #allocation0 [shape = 'u32[]', space=smem, size = 0x4, offset = 0x4, fixed_abs, tag = 'smem constant byte address 0x4 - core index']
  #allocation1 [shape = 'u32[72,128]{1,0:T(1,128)}', space=vmem, size = 0x9000, scoped, tag = 'internal scratch']
  %s0 = inlined_call_operand.vmem [shape: f32[128,50], index: 0, kind: input, shape index: {}]
  %s1 = inlined_call_operand.vmem [shape: f32[50,16], index: 1, kind: input, shape index: {}]
  %s2 = inlined_call_operand.vmem [shape: f32[1,16], index: 2, kind: input, shape index: {}]
  %s3 = inlined_call_operand.vmem [shape: f32[256,64], index: 3, kind: input, shape index: {}]
  %s4 = inlined_call_operand.vmem [shape: f32[1,64], index: 4, kind: input, shape index: {}]
  %s5 = inlined_call_operand.vmem [shape: f32[64,2], index: 5, kind: input, shape index: {}]
  %s6 = inlined_call_operand.vmem [shape: f32[1,2], index: 6, kind: input, shape index: {}]
  %s7 = inlined_call_operand.vmem [shape: f32[4,4], index: 7, kind: input, shape index: {}]
  %s8 = inlined_call_operand.vmem [shape: f32[4,4], index: 8, kind: input, shape index: {}]
  %s9 = inlined_call_operand.vmem [shape: f32[4,4], index: 9, kind: input, shape index: {}]
  %s10 = inlined_call_operand.vmem [shape: f32[2], index: 10, kind: input, shape index: {}]
  %s11 = inlined_call_operand.hbm [shape: f32[2,2], index: 11, kind: output, shape index: {}]
  %s12 = sld [smem:[#allocation0]]
  $region58: #{net_forward.3} parent=0
    _
  %s14 = ssub.s32 1, %s12
  %s15 = scalar_select 0, %s14, %s12
  $region1: #{net_forward.3} parent=0
    #allocation2 [shape = 'u8[512]{0}', space=smem, size = 0x200, scoped, tag = 'input window, operand 10, single buffered']
    #allocation3 [shape = 's32[1]{0}', space=sflag, size = 0x4, scoped, tag = 'scoped memory for net_forward.3']
    #allocation4 [shape = 's32[1]{0}', space=sflag, size = 0x4, scoped, tag = 'scoped memory for net_forward.3']
    #allocation5 [shape = 'u8[1024]{0}', space=vmem, size = 0x400, scoped, tag = 'output window, operand 0, single buffered']
    %16 = vsyncpa [#allocation4], 0
    %17 = vsyncpa [#allocation3], 0
    // Predicated region
    $region2: #{net_forward.3} parent=1 // pred_check
      _
    $region3: #{net_forward.3} parent=1 // pred_check_branch
      %19 = sbr.rel (0) target = $region5
    $region4: #{net_forward.3} parent=1 // pred_region
      _
    $region5: #{net_forward.3} parent=1 // pred_fallthru
      _
    // Predicated region
    $region6: #{net_forward.3} parent=1 // pred_check
      _
    $region7: #{net_forward.3} parent=1 // pred_check_branch
      %21 = sbr.rel (0) target = $region9
    $region8: #{net_forward.3} parent=1 // pred_region
      _
    $region9: #{net_forward.3} parent=1 // pred_fallthru
      _
    // Predicated region
    $region10: #{net_forward.3} parent=1 // pred_check
      _
    $region11: #{net_forward.3} parent=1 // pred_check_branch
      %23 = sbr.rel (0) target = $region13
    $region12: #{net_forward.3} parent=1 // pred_region
      _
    $region13: #{net_forward.3} parent=1 // pred_fallthru
      _
    // Predicated region
    $region14: #{net_forward.3} parent=1 // pred_check
      _
    $region15: #{net_forward.3} parent=1 // pred_check_branch
      %25 = sbr.rel (0) target = $region17
    $region16: #{net_forward.3} parent=1 // pred_region
      _
    $region17: #{net_forward.3} parent=1 // pred_fallthru
      _
    // Predicated region
    $region18: #{net_forward.3} parent=1 // pred_check
      _
    $region19: #{net_forward.3} parent=1 // pred_check_branch
      %27 = sbr.rel (0) target = $region21
    $region20: #{net_forward.3} parent=1 // pred_region
      _
    $region21: #{net_forward.3} parent=1 // pred_fallthru
      _
    // Predicated region
    $region22: #{net_forward.3} parent=1 // pred_check
      _
    $region23: #{net_forward.3} parent=1 // pred_check_branch
      %29 = sbr.rel (0) target = $region25
    $region24: #{net_forward.3} parent=1 // pred_region
      _
    $region25: #{net_forward.3} parent=1 // pred_fallthru
      _
    // Predicated region
    $region26: #{net_forward.3} parent=1 // pred_check
      _
    $region27: #{net_forward.3} parent=1 // pred_check_branch
      %31 = sbr.rel (0) target = $region29
    $region28: #{net_forward.3} parent=1 // pred_region
      _
    $region29: #{net_forward.3} parent=1 // pred_fallthru
      _
    // Predicated region
    $region30: #{net_forward.3} parent=1 // pred_check
      _
    $region31: #{net_forward.3} parent=1 // pred_check_branch
      %33 = sbr.rel (0) target = $region33
    $region32: #{net_forward.3} parent=1 // pred_region
      _
    $region33: #{net_forward.3} parent=1 // pred_fallthru
      _
    // Predicated region
    $region34: #{net_forward.3} parent=1 // pred_check
      _
    $region35: #{net_forward.3} parent=1 // pred_check_branch
      %35 = sbr.rel (0) target = $region37
    $region36: #{net_forward.3} parent=1 // pred_region
      _
    $region37: #{net_forward.3} parent=1 // pred_fallthru
      _
    // Predicated region
    $region38: #{net_forward.3} parent=1 // pred_check
      _
    $region39: #{net_forward.3} parent=1 // pred_check_branch
      %37 = sbr.rel (0) target = $region41
    $region40: #{net_forward.3} parent=1 // pred_region
      _
    $region41: #{net_forward.3} parent=1 // pred_fallthru
      _
    // Predicated region
    $region42: #{net_forward.3} parent=1 // pred_check
      _
    $region43: #{net_forward.3} parent=1 // pred_check_branch
      %39 = sbr.rel (0) target = $region45
    $region44: #{net_forward.3} parent=1 // pred_region
      %41 = vsyncadd [#allocation4], 0
      %s43 = sshll.u32 %s10, 4
      %s44 = int_to_ptr.vmem [resolvable:$true] %s43
      %46 = dma.vmem_to_smem %s44, 16, [#allocation2], [#allocation4]
    $region45: #{net_forward.3} parent=1 // pred_fallthru
      _
    // Predicated region
    $region46: #{net_forward.3} parent=1 // pred_check
      _
    $region47: #{net_forward.3} parent=1 // pred_check_branch
      %48 = sbr.rel (0) target = $region49
    $region48: #{net_forward.3} parent=1 // pred_region
      %50 = dma.done [#allocation4], 16
    $region49: #{net_forward.3} parent=1 // pred_fallthru
      _
    %51 = sfence
    %v52 = vld [vmem:[%s0] sm:$0xff]
    %v53 = vld [vmem:[%s0 + $0x8] sm:$0xff]
    %v54 = vld [vmem:[%s0 + $0x10] sm:$0xff]
    %v55 = vld [vmem:[%s0 + $0x18] sm:$0xff]
    %v56 = vld [vmem:[%s0 + $0x20] sm:$0xff]
    %v57 = vld [vmem:[%s0 + $0x28] sm:$0xff]
    %v58 = vld [vmem:[%s0 + $0x30] sm:$0xff]
    %v59 = vld [vmem:[%s0 + $0x38] sm:$0xff]
    %v60 = vld [vmem:[%s0 + $0x40] sm:$0xff]
    %v61 = vld [vmem:[%s0 + $0x48] sm:$0xff]
    %v62 = vld [vmem:[%s0 + $0x50] sm:$0xff]
    %v63 = vld [vmem:[%s0 + $0x58] sm:$0xff]
    %v64 = vld [vmem:[%s0 + $0x60] sm:$0xff]
    %v65 = vld [vmem:[%s0 + $0x68] sm:$0xff]
    %v66 = vld [vmem:[%s0 + $0x70] sm:$0xff]
    %v67 = vld [vmem:[%s0 + $0x78] sm:$0xff]
    %v68 = vld [vmem:[%s1] sm:$0xff]
    %v69 = vld [vmem:[%s1 + $0x8] sm:$0xff]
    %v70 = vld [vmem:[%s1 + $0x10] sm:$0xff]
    %v71 = vld [vmem:[%s1 + $0x18] sm:$0xff]
    %v72 = vld [vmem:[%s1 + $0x20] sm:$0xff]
    %v73 = vld [vmem:[%s1 + $0x28] sm:$0xff]
    %v74 = vld [vmem:[%s1 + $0x30] sm:$0x3]
    %vm75 = vcmask 408576
    %v77 = vsel %vm75, %v52, 0
    %v80 = vsel %vm75, %v53, 0
    %v83 = vsel %vm75, %v54, 0
    %v86 = vsel %vm75, %v55, 0
    %v89 = vsel %vm75, %v56, 0
    %v92 = vsel %vm75, %v57, 0
    %v95 = vsel %vm75, %v58, 0
    %v98 = vsel %vm75, %v59, 0
    %v101 = vsel %vm75, %v60, 0
    %v104 = vsel %vm75, %v61, 0
    %v107 = vsel %vm75, %v62, 0
    %v110 = vsel %vm75, %v63, 0
    %v113 = vsel %vm75, %v64, 0
    %v116 = vsel %vm75, %v65, 0
    %v119 = vsel %vm75, %v66, 0
    %v122 = vsel %vm75, %v67, 0
    %vm124 = vcmask 1041408
    %v126 = vsel %vm124, %v74, 0
    %128 = vmatpush.msra.mxu0 0.0
    %129 = vmatpush.msra.mxu0 0.0
    %130 = vmatpush.msra.mxu0 0.0
    %131 = vmatpush.msra.mxu0 0.0
    %132 = vmatpush.msra.mxu0 0.0
    %133 = vmatpush.msra.mxu0 0.0
    %134 = vmatpush.msra.mxu0 0.0
    %135 = vmatpush.msra.mxu0 0.0
    %136 = vmatpush.msra.mxu0 0.0
    %137 = vmatpush.msra.mxu0 %v126
    %138 = vmatpush.msra.mxu0 %v73
    %139 = vmatpush.msra.mxu0 %v72
    %140 = vmatpush.msra.mxu0 %v71
    %141 = vmatpush.msra.mxu0 %v70
    %142 = vmatpush.msra.mxu0 %v69
    %143 = vmatpush.msra.mxu0 %v68
    %144 = vmatmul.f32.gmra.mxu0 %v77
    %v145 = vpop.f32.mrf.mxu0
    %v146 = vadd.f32 0.0, %v145
    %147 = vmatmul.f32.gmra.mxu0 %v80
    %v148 = vpop.f32.mrf.mxu0
    %v149 = vadd.f32 0.0, %v148
    %150 = vmatmul.f32.gmra.mxu0 %v83
    %v151 = vpop.f32.mrf.mxu0
    %v152 = vadd.f32 0.0, %v151
    %153 = vmatmul.f32.gmra.mxu0 %v86
    %v154 = vpop.f32.mrf.mxu0
    %v155 = vadd.f32 0.0, %v154
    %156 = vmatmul.f32.gmra.mxu0 %v89
    %v157 = vpop.f32.mrf.mxu0
    %v158 = vadd.f32 0.0, %v157
    %159 = vmatmul.f32.gmra.mxu0 %v92
    %v160 = vpop.f32.mrf.mxu0
    %v161 = vadd.f32 0.0, %v160
    %162 = vmatmul.f32.gmra.mxu0 %v95
    %v163 = vpop.f32.mrf.mxu0
    %v164 = vadd.f32 0.0, %v163
    %165 = vmatmul.f32.gmra.mxu0 %v98
    %v166 = vpop.f32.mrf.mxu0
    %v167 = vadd.f32 0.0, %v166
    %168 = vmatmul.f32.gmra.mxu0 %v101
    %v169 = vpop.f32.mrf.mxu0
    %v170 = vadd.f32 0.0, %v169
    %171 = vmatmul.f32.gmra.mxu0 %v104
    %v172 = vpop.f32.mrf.mxu0
    %v173 = vadd.f32 0.0, %v172
    %174 = vmatmul.f32.gmra.mxu0 %v107
    %v175 = vpop.f32.mrf.mxu0
    %v176 = vadd.f32 0.0, %v175
    %177 = vmatmul.f32.gmra.mxu0 %v110
    %v178 = vpop.f32.mrf.mxu0
    %v179 = vadd.f32 0.0, %v178
    %180 = vmatmul.f32.gmra.mxu0 %v113
    %v181 = vpop.f32.mrf.mxu0
    %v182 = vadd.f32 0.0, %v181
    %183 = vmatmul.f32.gmra.mxu0 %v116
    %v184 = vpop.f32.mrf.mxu0
    %v185 = vadd.f32 0.0, %v184
    %186 = vmatmul.f32.gmra.mxu0 %v119
    %v187 = vpop.f32.mrf.mxu0
    %v188 = vadd.f32 0.0, %v187
    %189 = vmatmul.f32.gmra.mxu0 %v122
    %v190 = vpop.f32.mrf.mxu0
    %v191 = vadd.f32 0.0, %v190
    %192 = vdwg.mxu0
    %v193 = vmax.f32 %v146, %v158
    %v194 = vmax.f32 %v149, %v161
    %v195 = vmax.f32 %v152, %v164
    %v196 = vmax.f32 %v155, %v167
    %v197 = vmax.f32 %v170, %v182
    %v198 = vmax.f32 %v173, %v185
    %v199 = vmax.f32 %v176, %v188
    %v200 = vmax.f32 %v179, %v191
    %v201 = vmax.f32 %v193, %v197
    %v202 = vmax.f32 %v194, %v198
    %v203 = vmax.f32 %v195, %v199
    %v204 = vmax.f32 %v196, %v200
    %v205 = vld [vmem:[%s2] sm:$0x1]
    %v207 = vperm.slane %v205, 0
    %v209 = vadd.f32 %v201, %v207
    %v210 = vadd.f32 %v202, %v207
    %v211 = vadd.f32 %v203, %v207
    %v212 = vadd.f32 %v204, %v207
    %v213 = vmax.f32 %v209, 0.0
    %v214 = vmax.f32 %v210, 0.0
    %v215 = vmax.f32 %v211, 0.0
    %v216 = vmax.f32 %v212, 0.0
    %v217 = vld [vmem:[%s3] sm:$0xff]
    %v218 = vld [vmem:[%s3 + $0x8] sm:$0xff]
    %v219 = vld [vmem:[%s3 + $0x10] sm:$0xff]
    %v220 = vld [vmem:[%s3 + $0x18] sm:$0xff]
    %v222 = vrot.slane %v213, 2
    %vm223 = vcmask 130048
    %v224 = vsel %vm223, %v222, 0
    %226 = vmatpush.msra.mxu0 0.0
    %227 = vmatpush.msra.mxu0 0.0
    %228 = vmatpush.msra.mxu0 0.0
    %229 = vmatpush.msra.mxu0 0.0
    %230 = vmatpush.msra.mxu0 0.0
    %231 = vmatpush.msra.mxu0 0.0
    %232 = vmatpush.msra.mxu0 0.0
    %233 = vmatpush.msra.mxu0 0.0
    %234 = vmatpush.msra.mxu0 0.0
    %235 = vmatpush.msra.mxu0 0.0
    %236 = vmatpush.msra.mxu0 0.0
    %237 = vmatpush.msra.mxu0 0.0
    %238 = vmatpush.msra.mxu0 0.0
    %239 = vmatpush.msra.mxu0 0.0
    %240 = vmatpush.msra.mxu0 %v220
    %241 = vmatpush.msra.mxu0 %v219
    %242 = vmatmul.f32.gmra.mxu0 %v224
    %v243 = vpop.f32.mrf.mxu0
    %v244 = vadd.f32 0.0, %v243
    %245 = vdwg.mxu0
    %v246 = vsel %vm223, %v213, 0
    %248 = vmatpush.msra.mxu0 0.0
    %249 = vmatpush.msra.mxu0 0.0
    %250 = vmatpush.msra.mxu0 0.0
    %251 = vmatpush.msra.mxu0 0.0
    %252 = vmatpush.msra.mxu0 0.0
    %253 = vmatpush.msra.mxu0 0.0
    %254 = vmatpush.msra.mxu0 0.0
    %255 = vmatpush.msra.mxu0 0.0
    %256 = vmatpush.msra.mxu0 0.0
    %257 = vmatpush.msra.mxu0 0.0
    %258 = vmatpush.msra.mxu0 0.0
    %259 = vmatpush.msra.mxu0 0.0
    %260 = vmatpush.msra.mxu0 0.0
    %261 = vmatpush.msra.mxu0 0.0
    %262 = vmatpush.msra.mxu0 %v218
    %263 = vmatpush.msra.mxu0 %v217
    %264 = vmatmul.f32.gmra.mxu0 %v246
    %v265 = vpop.f32.mrf.mxu0
    %v266 = vadd.f32 %v244, %v265
    %267 = vdwg.mxu0
    %v268 = vld [vmem:[%s3 + $0x20] sm:$0xff]
    %v269 = vld [vmem:[%s3 + $0x28] sm:$0xff]
    %v270 = vrot.slane %v213, 4
    %v271 = vsel %vm223, %v270, 0
    %273 = vmatpush.msra.mxu0 0.0
    %274 = vmatpush.msra.mxu0 0.0
    %275 = vmatpush.msra.mxu0 0.0
    %276 = vmatpush.msra.mxu0 0.0
    %277 = vmatpush.msra.mxu0 0.0
    %278 = vmatpush.msra.mxu0 0.0
    %279 = vmatpush.msra.mxu0 0.0
    %280 = vmatpush.msra.mxu0 0.0
    %281 = vmatpush.msra.mxu0 0.0
    %282 = vmatpush.msra.mxu0 0.0
    %283 = vmatpush.msra.mxu0 0.0
    %284 = vmatpush.msra.mxu0 0.0
    %285 = vmatpush.msra.mxu0 0.0
    %286 = vmatpush.msra.mxu0 0.0
    %287 = vmatpush.msra.mxu0 %v269
    %288 = vmatpush.msra.mxu0 %v268
    %289 = vmatmul.f32.gmra.mxu0 %v271
    %v290 = vpop.f32.mrf.mxu0
    %v291 = vadd.f32 0.0, %v290
    %292 = vdwg.mxu0
    %v293 = vadd.f32 %v266, %v291
    %v294 = vld [vmem:[%s3 + $0x30] sm:$0xff]
    %v295 = vld [vmem:[%s3 + $0x38] sm:$0xff]
    %v296 = vrot.slane %v213, 6
    %v297 = vsel %vm223, %v296, 0
    %299 = vmatpush.msra.mxu0 0.0
    %300 = vmatpush.msra.mxu0 0.0
    %301 = vmatpush.msra.mxu0 0.0
    %302 = vmatpush.msra.mxu0 0.0
    %303 = vmatpush.msra.mxu0 0.0
    %304 = vmatpush.msra.mxu0 0.0
    %305 = vmatpush.msra.mxu0 0.0
    %306 = vmatpush.msra.mxu0 0.0
    %307 = vmatpush.msra.mxu0 0.0
    %308 = vmatpush.msra.mxu0 0.0
    %309 = vmatpush.msra.mxu0 0.0
    %310 = vmatpush.msra.mxu0 0.0
    %311 = vmatpush.msra.mxu0 0.0
    %312 = vmatpush.msra.mxu0 0.0
    %313 = vmatpush.msra.mxu0 %v295
    %314 = vmatpush.msra.mxu0 %v294
    %315 = vmatmul.f32.gmra.mxu0 %v297
    %v316 = vpop.f32.mrf.mxu0
    %v317 = vadd.f32 0.0, %v316
    %318 = vdwg.mxu0
    %v319 = vadd.f32 %v293, %v317
    %v320 = vld [vmem:[%s3 + $0x40] sm:$0xff]
    %v321 = vld [vmem:[%s3 + $0x48] sm:$0xff]
    %v323 = vsel %vm223, %v214, 0
    %325 = vmatpush.msra.mxu0 0.0
    %326 = vmatpush.msra.mxu0 0.0
    %327 = vmatpush.msra.mxu0 0.0
    %328 = vmatpush.msra.mxu0 0.0
    %329 = vmatpush.msra.mxu0 0.0
    %330 = vmatpush.msra.mxu0 0.0
    %331 = vmatpush.msra.mxu0 0.0
    %332 = vmatpush.msra.mxu0 0.0
    %333 = vmatpush.msra.mxu0 0.0
    %334 = vmatpush.msra.mxu0 0.0
    %335 = vmatpush.msra.mxu0 0.0
    %336 = vmatpush.msra.mxu0 0.0
    %337 = vmatpush.msra.mxu0 0.0
    %338 = vmatpush.msra.mxu0 0.0
    %339 = vmatpush.msra.mxu0 %v321
    %340 = vmatpush.msra.mxu0 %v320
    %341 = vmatmul.f32.gmra.mxu0 %v323
    %v342 = vpop.f32.mrf.mxu0
    %v343 = vadd.f32 0.0, %v342
    %344 = vdwg.mxu0
    %v345 = vadd.f32 %v319, %v343
    %v346 = vld [vmem:[%s3 + $0x50] sm:$0xff]
    %v347 = vld [vmem:[%s3 + $0x58] sm:$0xff]
    %v348 = vrot.slane %v214, 2
    %v349 = vsel %vm223, %v348, 0
    %351 = vmatpush.msra.mxu0 0.0
    %352 = vmatpush.msra.mxu0 0.0
    %353 = vmatpush.msra.mxu0 0.0
    %354 = vmatpush.msra.mxu0 0.0
    %355 = vmatpush.msra.mxu0 0.0
    %356 = vmatpush.msra.mxu0 0.0
    %357 = vmatpush.msra.mxu0 0.0
    %358 = vmatpush.msra.mxu0 0.0
    %359 = vmatpush.msra.mxu0 0.0
    %360 = vmatpush.msra.mxu0 0.0
    %361 = vmatpush.msra.mxu0 0.0
    %362 = vmatpush.msra.mxu0 0.0
    %363 = vmatpush.msra.mxu0 0.0
    %364 = vmatpush.msra.mxu0 0.0
    %365 = vmatpush.msra.mxu0 %v347
    %366 = vmatpush.msra.mxu0 %v346
    %367 = vmatmul.f32.gmra.mxu0 %v349
    %v368 = vpop.f32.mrf.mxu0
    %v369 = vadd.f32 0.0, %v368
    %370 = vdwg.mxu0
    %v371 = vadd.f32 %v345, %v369
    %v372 = vld [vmem:[%s3 + $0x60] sm:$0xff]
    %v373 = vld [vmem:[%s3 + $0x68] sm:$0xff]
    %v374 = vrot.slane %v214, 4
    %v375 = vsel %vm223, %v374, 0
    %377 = vmatpush.msra.mxu0 0.0
    %378 = vmatpush.msra.mxu0 0.0
    %379 = vmatpush.msra.mxu0 0.0
    %380 = vmatpush.msra.mxu0 0.0
    %381 = vmatpush.msra.mxu0 0.0
    %382 = vmatpush.msra.mxu0 0.0
    %383 = vmatpush.msra.mxu0 0.0
    %384 = vmatpush.msra.mxu0 0.0
    %385 = vmatpush.msra.mxu0 0.0
    %386 = vmatpush.msra.mxu0 0.0
    %387 = vmatpush.msra.mxu0 0.0
    %388 = vmatpush.msra.mxu0 0.0
    %389 = vmatpush.msra.mxu0 0.0
    %390 = vmatpush.msra.mxu0 0.0
    %391 = vmatpush.msra.mxu0 %v373
    %392 = vmatpush.msra.mxu0 %v372
    %393 = vmatmul.f32.gmra.mxu0 %v375
    %v394 = vpop.f32.mrf.mxu0
    %v395 = vadd.f32 0.0, %v394
    %396 = vdwg.mxu0
    %v397 = vadd.f32 %v371, %v395
    %v398 = vld [vmem:[%s3 + $0x70] sm:$0xff]
    %v399 = vld [vmem:[%s3 + $0x78] sm:$0xff]
    %v400 = vrot.slane %v214, 6
    %v401 = vsel %vm223, %v400, 0
    %403 = vmatpush.msra.mxu0 0.0
    %404 = vmatpush.msra.mxu0 0.0
    %405 = vmatpush.msra.mxu0 0.0
    %406 = vmatpush.msra.mxu0 0.0
    %407 = vmatpush.msra.mxu0 0.0
    %408 = vmatpush.msra.mxu0 0.0
    %409 = vmatpush.msra.mxu0 0.0
    %410 = vmatpush.msra.mxu0 0.0
    %411 = vmatpush.msra.mxu0 0.0
    %412 = vmatpush.msra.mxu0 0.0
    %413 = vmatpush.msra.mxu0 0.0
    %414 = vmatpush.msra.mxu0 0.0
    %415 = vmatpush.msra.mxu0 0.0
    %416 = vmatpush.msra.mxu0 0.0
    %417 = vmatpush.msra.mxu0 %v399
    %418 = vmatpush.msra.mxu0 %v398
    %419 = vmatmul.f32.gmra.mxu0 %v401
    %v420 = vpop.f32.mrf.mxu0
    %v421 = vadd.f32 0.0, %v420
    %422 = vdwg.mxu0
    %v423 = vadd.f32 %v397, %v421
    %v424 = vld [vmem:[%s3 + $0x80] sm:$0xff]
    %v425 = vld [vmem:[%s3 + $0x88] sm:$0xff]
    %v427 = vsel %vm223, %v215, 0
    %429 = vmatpush.msra.mxu0 0.0
    %430 = vmatpush.msra.mxu0 0.0
    %431 = vmatpush.msra.mxu0 0.0
    %432 = vmatpush.msra.mxu0 0.0
    %433 = vmatpush.msra.mxu0 0.0
    %434 = vmatpush.msra.mxu0 0.0
    %435 = vmatpush.msra.mxu0 0.0
    %436 = vmatpush.msra.mxu0 0.0
    %437 = vmatpush.msra.mxu0 0.0
    %438 = vmatpush.msra.mxu0 0.0
    %439 = vmatpush.msra.mxu0 0.0
    %440 = vmatpush.msra.mxu0 0.0
    %441 = vmatpush.msra.mxu0 0.0
    %442 = vmatpush.msra.mxu0 0.0
    %443 = vmatpush.msra.mxu0 %v425
    %444 = vmatpush.msra.mxu0 %v424
    %445 = vmatmul.f32.gmra.mxu0 %v427
    %v446 = vpop.f32.mrf.mxu0
    %v447 = vadd.f32 0.0, %v446
    %448 = vdwg.mxu0
    %v449 = vadd.f32 %v423, %v447
    %v450 = vld [vmem:[%s3 + $0x90] sm:$0xff]
    %v451 = vld [vmem:[%s3 + $0x98] sm:$0xff]
    %v452 = vrot.slane %v215, 2
    %v453 = vsel %vm223, %v452, 0
    %455 = vmatpush.msra.mxu0 0.0
    %456 = vmatpush.msra.mxu0 0.0
    %457 = vmatpush.msra.mxu0 0.0
    %458 = vmatpush.msra.mxu0 0.0
    %459 = vmatpush.msra.mxu0 0.0
    %460 = vmatpush.msra.mxu0 0.0
    %461 = vmatpush.msra.mxu0 0.0
    %462 = vmatpush.msra.mxu0 0.0
    %463 = vmatpush.msra.mxu0 0.0
    %464 = vmatpush.msra.mxu0 0.0
    %465 = vmatpush.msra.mxu0 0.0
    %466 = vmatpush.msra.mxu0 0.0
    %467 = vmatpush.msra.mxu0 0.0
    %468 = vmatpush.msra.mxu0 0.0
    %469 = vmatpush.msra.mxu0 %v451
    %470 = vmatpush.msra.mxu0 %v450
    %471 = vmatmul.f32.gmra.mxu0 %v453
    %v472 = vpop.f32.mrf.mxu0
    %v473 = vadd.f32 0.0, %v472
    %474 = vdwg.mxu0
    %v475 = vadd.f32 %v449, %v473
    %v476 = vld [vmem:[%s3 + $0xa0] sm:$0xff]
    %v477 = vld [vmem:[%s3 + $0xa8] sm:$0xff]
    %v478 = vrot.slane %v215, 4
    %v479 = vsel %vm223, %v478, 0
    %481 = vmatpush.msra.mxu0 0.0
    %482 = vmatpush.msra.mxu0 0.0
    %483 = vmatpush.msra.mxu0 0.0
    %484 = vmatpush.msra.mxu0 0.0
    %485 = vmatpush.msra.mxu0 0.0
    %486 = vmatpush.msra.mxu0 0.0
    %487 = vmatpush.msra.mxu0 0.0
    %488 = vmatpush.msra.mxu0 0.0
    %489 = vmatpush.msra.mxu0 0.0
    %490 = vmatpush.msra.mxu0 0.0
    %491 = vmatpush.msra.mxu0 0.0
    %492 = vmatpush.msra.mxu0 0.0
    %493 = vmatpush.msra.mxu0 0.0
    %494 = vmatpush.msra.mxu0 0.0
    %495 = vmatpush.msra.mxu0 %v477
    %496 = vmatpush.msra.mxu0 %v476
    %497 = vmatmul.f32.gmra.mxu0 %v479
    %v498 = vpop.f32.mrf.mxu0
    %v499 = vadd.f32 0.0, %v498
    %500 = vdwg.mxu0
    %v501 = vadd.f32 %v475, %v499
    %v502 = vld [vmem:[%s3 + $0xb0] sm:$0xff]
    %v503 = vld [vmem:[%s3 + $0xb8] sm:$0xff]
    %v504 = vrot.slane %v215, 6
    %v505 = vsel %vm223, %v504, 0
    %507 = vmatpush.msra.mxu0 0.0
    %508 = vmatpush.msra.mxu0 0.0
    %509 = vmatpush.msra.mxu0 0.0
    %510 = vmatpush.msra.mxu0 0.0
    %511 = vmatpush.msra.mxu0 0.0
    %512 = vmatpush.msra.mxu0 0.0
    %513 = vmatpush.msra.mxu0 0.0
    %514 = vmatpush.msra.mxu0 0.0
    %515 = vmatpush.msra.mxu0 0.0
    %516 = vmatpush.msra.mxu0 0.0
    %517 = vmatpush.msra.mxu0 0.0
    %518 = vmatpush.msra.mxu0 0.0
    %519 = vmatpush.msra.mxu0 0.0
    %520 = vmatpush.msra.mxu0 0.0
    %521 = vmatpush.msra.mxu0 %v503
    %522 = vmatpush.msra.mxu0 %v502
    %523 = vmatmul.f32.gmra.mxu0 %v505
    %v524 = vpop.f32.mrf.mxu0
    %v525 = vadd.f32 0.0, %v524
    %526 = vdwg.mxu0
    %v527 = vadd.f32 %v501, %v525
    %v528 = vld [vmem:[%s3 + $0xc0] sm:$0xff]
    %v529 = vld [vmem:[%s3 + $0xc8] sm:$0xff]
    %v531 = vsel %vm223, %v216, 0
    %533 = vmatpush.msra.mxu0 0.0
    %534 = vmatpush.msra.mxu0 0.0
    %535 = vmatpush.msra.mxu0 0.0
    %536 = vmatpush.msra.mxu0 0.0
    %537 = vmatpush.msra.mxu0 0.0
    %538 = vmatpush.msra.mxu0 0.0
    %539 = vmatpush.msra.mxu0 0.0
    %540 = vmatpush.msra.mxu0 0.0
    %541 = vmatpush.msra.mxu0 0.0
    %542 = vmatpush.msra.mxu0 0.0
    %543 = vmatpush.msra.mxu0 0.0
    %544 = vmatpush.msra.mxu0 0.0
    %545 = vmatpush.msra.mxu0 0.0
    %546 = vmatpush.msra.mxu0 0.0
    %547 = vmatpush.msra.mxu0 %v529
    %548 = vmatpush.msra.mxu0 %v528
    %549 = vmatmul.f32.gmra.mxu0 %v531
    %v550 = vpop.f32.mrf.mxu0
    %v551 = vadd.f32 0.0, %v550
    %552 = vdwg.mxu0
    %v553 = vadd.f32 %v527, %v551
    %v554 = vld [vmem:[%s3 + $0xd0] sm:$0xff]
    %v555 = vld [vmem:[%s3 + $0xd8] sm:$0xff]
    %v556 = vrot.slane %v216, 2
    %v557 = vsel %vm223, %v556, 0
    %559 = vmatpush.msra.mxu0 0.0
    %560 = vmatpush.msra.mxu0 0.0
    %561 = vmatpush.msra.mxu0 0.0
    %562 = vmatpush.msra.mxu0 0.0
    %563 = vmatpush.msra.mxu0 0.0
    %564 = vmatpush.msra.mxu0 0.0
    %565 = vmatpush.msra.mxu0 0.0
    %566 = vmatpush.msra.mxu0 0.0
    %567 = vmatpush.msra.mxu0 0.0
    %568 = vmatpush.msra.mxu0 0.0
    %569 = vmatpush.msra.mxu0 0.0
    %570 = vmatpush.msra.mxu0 0.0
    %571 = vmatpush.msra.mxu0 0.0
    %572 = vmatpush.msra.mxu0 0.0
    %573 = vmatpush.msra.mxu0 %v555
    %574 = vmatpush.msra.mxu0 %v554
    %575 = vmatmul.f32.gmra.mxu0 %v557
    %v576 = vpop.f32.mrf.mxu0
    %v577 = vadd.f32 0.0, %v576
    %578 = vdwg.mxu0
    %v579 = vadd.f32 %v553, %v577
    %v580 = vld [vmem:[%s3 + $0xe0] sm:$0xff]
    %v581 = vld [vmem:[%s3 + $0xe8] sm:$0xff]
    %v582 = vrot.slane %v216, 4
    %v583 = vsel %vm223, %v582, 0
    %585 = vmatpush.msra.mxu0 0.0
    %586 = vmatpush.msra.mxu0 0.0
    %587 = vmatpush.msra.mxu0 0.0
    %588 = vmatpush.msra.mxu0 0.0
    %589 = vmatpush.msra.mxu0 0.0
    %590 = vmatpush.msra.mxu0 0.0
    %591 = vmatpush.msra.mxu0 0.0
    %592 = vmatpush.msra.mxu0 0.0
    %593 = vmatpush.msra.mxu0 0.0
    %594 = vmatpush.msra.mxu0 0.0
    %595 = vmatpush.msra.mxu0 0.0
    %596 = vmatpush.msra.mxu0 0.0
    %597 = vmatpush.msra.mxu0 0.0
    %598 = vmatpush.msra.mxu0 0.0
    %599 = vmatpush.msra.mxu0 %v581
    %600 = vmatpush.msra.mxu0 %v580
    %601 = vmatmul.f32.gmra.mxu0 %v583
    %v602 = vpop.f32.mrf.mxu0
    %v603 = vadd.f32 0.0, %v602
    %604 = vdwg.mxu0
    %v605 = vadd.f32 %v579, %v603
    %v606 = vld [vmem:[%s3 + $0xf0] sm:$0xff]
    %v607 = vld [vmem:[%s3 + $0xf8] sm:$0xff]
    %v608 = vrot.slane %v216, 6
    %v609 = vsel %vm223, %v608, 0
    %611 = vmatpush.msra.mxu0 0.0
    %612 = vmatpush.msra.mxu0 0.0
    %613 = vmatpush.msra.mxu0 0.0
    %614 = vmatpush.msra.mxu0 0.0
    %615 = vmatpush.msra.mxu0 0.0
    %616 = vmatpush.msra.mxu0 0.0
    %617 = vmatpush.msra.mxu0 0.0
    %618 = vmatpush.msra.mxu0 0.0
    %619 = vmatpush.msra.mxu0 0.0
    %620 = vmatpush.msra.mxu0 0.0
    %621 = vmatpush.msra.mxu0 0.0
    %622 = vmatpush.msra.mxu0 0.0
    %623 = vmatpush.msra.mxu0 0.0
    %624 = vmatpush.msra.mxu0 0.0
    %625 = vmatpush.msra.mxu0 %v607
    %626 = vmatpush.msra.mxu0 %v606
    %627 = vmatmul.f32.gmra.mxu0 %v609
    %v628 = vpop.f32.mrf.mxu0
    %v629 = vadd.f32 0.0, %v628
    %630 = vdwg.mxu0
    %v631 = vadd.f32 %v605, %v629
    %v632 = vld [vmem:[%s4] sm:$0x1]
    %v634 = vperm.slane %v632, 0
    %v636 = vadd.f32 %v631, %v634
    %v637 = vmax.f32 %v636, 0.0
    %v638 = vld [vmem:[%s5] sm:$0xff]
    %v639 = vld [vmem:[%s5 + $0x8] sm:$0xff]
    %v640 = vld [vmem:[%s5 + $0x10] sm:$0xff]
    %v641 = vld [vmem:[%s5 + $0x18] sm:$0xff]
    %v642 = vld [vmem:[%s5 + $0x20] sm:$0xff]
    %v643 = vld [vmem:[%s5 + $0x28] sm:$0xff]
    %v644 = vld [vmem:[%s5 + $0x30] sm:$0xff]
    %v645 = vld [vmem:[%s5 + $0x38] sm:$0xff]
    %v646 = vld [vmem:[%s6] sm:$0x1]
    %v648 = vperm.slane %v646, 0
    %vm650 = vcmask 523264
    %v652 = vsel %vm650, %v637, 0
    %654 = vmatpush.msra.mxu0 0.0
    %655 = vmatpush.msra.mxu0 0.0
    %656 = vmatpush.msra.mxu0 0.0
    %657 = vmatpush.msra.mxu0 0.0
    %658 = vmatpush.msra.mxu0 0.0
    %659 = vmatpush.msra.mxu0 0.0
    %660 = vmatpush.msra.mxu0 0.0
    %661 = vmatpush.msra.mxu0 0.0
    %662 = vmatpush.msra.mxu0 %v645
    %663 = vmatpush.msra.mxu0 %v644
    %664 = vmatpush.msra.mxu0 %v643
    %665 = vmatpush.msra.mxu0 %v642
    %666 = vmatpush.msra.mxu0 %v641
    %667 = vmatpush.msra.mxu0 %v640
    %668 = vmatpush.msra.mxu0 %v639
    %669 = vmatpush.msra.mxu0 %v638
    %670 = vmatmul.f32.gmra.mxu0 %v652
    %v671 = vpop.f32.mrf.mxu0
    %v672 = vadd.f32 %v648, %v671
    %673 = vdwg.mxu0
    %v674 = vlaneseq
    %v675 = vand.u32 %v674, 127
    %vm676 = vcmp.eq.s32.totalorder %v675, 1
    %vm677 = vcmp.eq.s32.totalorder %v675, 3
    %vm678 = vmor %vm676, %vm677
    %v679 = vsel %vm678, 1, 0
    %v680 = vcvt.s32.f32 %v679
    %vm681 = vcmp.ge.s32.totalorder %v675, 2
    %v682 = vsel %vm681, 1, 0
    %v683 = vcvt.s32.f32 %v682
    %vm684 = vcmp.eq.s32.totalorder %v675, 0
    %v685 = vsel %vm684, 1, 0
    %v686 = vcvt.s32.f32 %v685
    %v687 = vld [vmem:[%s7] sm:$0xf]
    %v688 = vld [vmem:[%s8] sm:$0xf]
    %vm689 = vcmask 31744
    %v691 = vsel %vm689, %v686, 0
    %vm693 = vcmask 1043456
    %v695 = vsel %vm693, %v687, 0
    %697 = vmatpush.msra.mxu0 0.0
    %698 = vmatpush.msra.mxu0 0.0
    %699 = vmatpush.msra.mxu0 0.0
    %700 = vmatpush.msra.mxu0 0.0
    %701 = vmatpush.msra.mxu0 0.0
    %702 = vmatpush.msra.mxu0 0.0
    %703 = vmatpush.msra.mxu0 0.0
    %704 = vmatpush.msra.mxu0 0.0
    %705 = vmatpush.msra.mxu0 0.0
    %706 = vmatpush.msra.mxu0 0.0
    %707 = vmatpush.msra.mxu0 0.0
    %708 = vmatpush.msra.mxu0 0.0
    %709 = vmatpush.msra.mxu0 0.0
    %710 = vmatpush.msra.mxu0 0.0
    %711 = vmatpush.msra.mxu0 0.0
    %712 = vmatpush.msra.mxu0 %v695
    %713 = vmatmul.f32.gmra.mxu0 %v691
    %v714 = vpop.f32.mrf.mxu0
    %v715 = vadd.f32 0.0, %v714
    %716 = vdwg.mxu0
    %v718 = vsel %vm689, 0.0, 0
    %720 = vmatpush.msra.mxu0 0.0
    %721 = vmatpush.msra.mxu0 0.0
    %722 = vmatpush.msra.mxu0 0.0
    %723 = vmatpush.msra.mxu0 0.0
    %724 = vmatpush.msra.mxu0 0.0
    %725 = vmatpush.msra.mxu0 0.0
    %726 = vmatpush.msra.mxu0 0.0
    %727 = vmatpush.msra.mxu0 0.0
    %728 = vmatpush.msra.mxu0 0.0
    %729 = vmatpush.msra.mxu0 0.0
    %730 = vmatpush.msra.mxu0 0.0
    %731 = vmatpush.msra.mxu0 0.0
    %732 = vmatpush.msra.mxu0 0.0
    %733 = vmatpush.msra.mxu0 0.0
    %734 = vmatpush.msra.mxu0 0.0
    %735 = vmatpush.msra.mxu0 %v695
    %736 = vmatmul.f32.gmra.mxu0 %v718
    %v737 = vpop.f32.mrf.mxu0
    %v738 = vadd.f32 0.0, %v737
    %739 = vdwg.mxu0
    %v740 = vmul.f32 %v672, 2.0
    %v741 = vand.u32 2147483647, %v740
    %vm742 = vcmp.le.f32.partialorder %v741, 0.7853982
    %vm743 = vcmp.lt.s32.totalorder %v740, 0
    %v744 = vand.u32 %v740, 2139095040
    %v745 = vshrl.u32 %v744, 23
    %v746 = vsub.s32 %v745, 127
    %v747 = vand.u32 2147483647, %v740
    %v748 = vand.u32 %v747, 8388607
    %v749 = vor.u32 %v748, 8388608
    %v750 = vsub.s32 0, %v749
    %v751 = vadd.s32 %v746, 1
    %vm752 = vcmp.gt.s32.totalorder %v751, 0
    %v753 = vsel %vm752, %v751, 0
    %v754 = vshrl.u32 %v753, 5
    %v755 = vand.u32 %v753, 31
    %v756 = vsub.s32 32, %v755
    %v757 = vshrl.u32 683565275, %v756
    %v758 = vshll.u32 683565275, %v755
    %v759 = vshrl.u32 2475754826, %v756
    %v760 = vor.u32 %v758, %v759
    %v761 = vshll.u32 2475754826, %v755
    %v762 = vshrl.u32 2131351028, %v756
    %v763 = vor.u32 %v761, %v762
    %v764 = vshll.u32 2131351028, %v755
    %v765 = vshrl.u32 2102212464, %v756
    %v766 = vor.u32 %v764, %v765
    %v767 = vshll.u32 2102212464, %v755
    %v768 = vshrl.u32 920167782, %v756
    %v769 = vor.u32 %v767, %v768
    %v770 = vshll.u32 920167782, %v755
    %v771 = vshrl.u32 1326507024, %v756
    %v772 = vor.u32 %v770, %v771
    %vm773 = vcmp.lt.s32.totalorder %v754, 1
    %vm774 = vcmp.lt.s32.totalorder %v754, 2
    %vm775 = vcmp.lt.s32.totalorder %v754, 3
    %vm776 = vcmp.lt.s32.totalorder %v754, 4
    %v777 = vsel %vm773, %v757, %v760
    %v778 = vsel %vm776, %v766, 2102212464
    %v779 = vsel %vm775, %v763, %v778
    %v780 = vsel %vm774, %v777, %v779
    %v781 = vsel %vm773, %v760, %v763
    %v782 = vsel %vm776, %v769, 920167782
    %v783 = vsel %vm775, %v766, %v782
    %v784 = vsel %vm774, %v781, %v783
    %v785 = vsel %vm773, %v763, %v766
    %v786 = vsel %vm776, %v772, 1326507024
    %v787 = vsel %vm775, %v769, %v786
    %v788 = vsel %vm774, %v785, %v787
    %v789 = vshll.u32 %v749, 8
    %v790 = vand.u32 %v789, 65535
    %v791 = vshrl.u32 %v789, 16
    %v792 = vand.u32 %v788, 65535
    %v793 = vshrl.u32 %v788, 16
    %v794 = vmul.u32 %v790, %v792
    %v795 = vmul.u32 %v790, %v793
    %v796 = vmul.u32 %v791, %v792
    %v797 = vmul.u32 %v791, %v793
    %v798 = vshll.u32 %v795, 16
    %v799 = vshrl.u32 %v795, 16
    %v800 = vshll.u32 %v796, 16
    %v801 = vshrl.u32 %v796, 16
    %vm802 = vc.u32 %v794, %v798
    %v803 = vsel %vm802, 1, 0
    %v804 = vadd.s32 %v794, %v798
    %v805 = vadd.s32 %v797, %v803
    %vm806 = vc.u32 %v804, %v800
    %v807 = vsel %vm806, 1, 0
    %v808 = vadd.s32 %v804, %v800
    %v809 = vadd.s32 %v805, %v807
    %v810 = vadd.s32 %v809, %v799
    %v811 = vadd.s32 %v810, %v801
    %v812 = vand.u32 %v789, 65535
    %v813 = vshrl.u32 %v789, 16
    %v814 = vand.u32 %v784, 65535
    %v815 = vshrl.u32 %v784, 16
    %v816 = vmul.u32 %v812, %v814
    %v817 = vmul.u32 %v812, %v815
    %v818 = vmul.u32 %v813, %v814
    %v819 = vmul.u32 %v813, %v815
    %v820 = vshll.u32 %v817, 16
    %v821 = vshrl.u32 %v817, 16
    %v822 = vshll.u32 %v818, 16
    %v823 = vshrl.u32 %v818, 16
    %vm824 = vc.u32 %v816, %v820
    %v825 = vsel %vm824, 1, 0
    %v826 = vadd.s32 %v816, %v820
    %v827 = vadd.s32 %v819, %v825
    %vm828 = vc.u32 %v826, %v822
    %v829 = vsel %vm828, 1, 0
    %v830 = vadd.s32 %v826, %v822
    %v831 = vadd.s32 %v827, %v829
    %v832 = vadd.s32 %v831, %v821
    %v833 = vadd.s32 %v832, %v823
    %v834 = vmul.u32 %v789, %v780
    %v835 = vadd.s32 %v811, %v830
    %vm836 = vc.u32 %v811, %v830
    %v837 = vadd.s32 %v833, 1
    %v838 = vsel %vm836, %v837, %v833
    %v839 = vadd.s32 %v834, %v838
    %v840 = vadd.s32 %v839, 536870912
    %v841 = vshrl.u32 %v840, 30
    %v842 = vshll.u32 %v841, 30
    %v843 = vsub.s32 %v839, %v842
    %vm844 = vcmp.lt.s32.totalorder %v843, 0
    %v845 = vsub.s32 0, %v843
    %v846 = vsel %vm844, %v845, %v843
    %v847 = vclz %v846
    %v848 = vsub.s32 %v847, 2
    %vm849 = vcmp.gt.s32.totalorder 0, %v848
    %v850 = vsel %vm849, 0, %v848
    %v851 = vsub.s32 32, %v850
    %v852 = vshll.u32 %v843, %v850
    %v853 = vshrl.u32 %v835, %v851
    %v854 = vor.u32 %v852, %v853
    %v855 = vsub.s32 4294967266, %v850
    %v856 = vadd.s32 %v855, 127
    %v857 = vshll.u32 %v856, 23
    %v858 = vor.u32 4788187, %v857
    %v859 = vand.u32 2147483647, %v858
    %v861 = vcvt.s32.f32 %v854
    %v862 = vmul.f32 %v861, %v859
    %v863 = vxor.u32 %v862, 2147483648
    %v864 = vsel %vm743, %v863, %v862
    %v865 = vsub.s32 4, %v841
    %v866 = vsel %vm743, %v865, %v841
    %v867 = vsel %vm742, %v740, %v864
    %v868 = vsel %vm742, 0, %v866
    %v869 = vmul.f32 %v867, %v867
    %v870 = vmul.f32 %v869, -0.001358992
    %v871 = vadd.f32 %v870, 0.041655596
    %v872 = vmul.f32 %v869, %v871
    %v873 = vadd.f32 %v872, -0.4999988
    %v874 = vmul.f32 %v869, %v873
    %v875 = vadd.f32 1.0, %v874
    %v876 = vmul.f32 %v867, %v867
    %v877 = vmul.f32 %v876, -0.00019511016
    %v878 = vadd.f32 %v877, 0.008332121
    %v879 = vmul.f32 %v876, %v878
    %v880 = vadd.f32 %v879, -0.16666654
    %v881 = vmul.f32 %v876, %v880
    %v882 = vadd.f32 %v881, 1.0
    %v883 = vmul.f32 %v882, %v867
    %vm884 = vweird.f32 %v740
    %v885 = vand.u32 %v868, 3
    %vm886 = vcmp.lt.s32.totalorder %v885, 2
    %vm887 = vcmp.eq.s32.totalorder %v885, 0
    %v888 = vxor.u32 %v883, 2147483648
    %v889 = vsel %vm887, %v875, %v888
    %vm890 = vcmp.eq.s32.totalorder %v885, 2
    %v891 = vxor.u32 %v875, 2147483648
    %v892 = vsel %vm890, %v891, %v883
    %v893 = vsel %vm886, %v889, %v892
    %v894 = vsel %vm884, nan, %v893
    %v895 = vand.u32 2147483647, %v740
    %vm896 = vcmp.le.f32.partialorder %v895, 0.7853982
    %vm897 = vcmp.lt.s32.totalorder %v740, 0
    %v898 = vand.u32 %v740, 2139095040
    %v899 = vshrl.u32 %v898, 23
    %v900 = vsub.s32 %v899, 127
    %v901 = vand.u32 2147483647, %v740
    %v902 = vand.u32 %v901, 8388607
    %v903 = vor.u32 %v902, 8388608
    %v904 = vsub.s32 0, %v903
    %v905 = vadd.s32 %v900, 1
    %vm906 = vcmp.gt.s32.totalorder %v905, 0
    %v907 = vsel %vm906, %v905, 0
    %v908 = vshrl.u32 %v907, 5
    %v909 = vand.u32 %v907, 31
    %v910 = vsub.s32 32, %v909
    %v911 = vshrl.u32 683565275, %v910
    %v912 = vshll.u32 683565275, %v909
    %v913 = vshrl.u32 2475754826, %v910
    %v914 = vor.u32 %v912, %v913
    %v915 = vshll.u32 2475754826, %v909
    %v916 = vshrl.u32 2131351028, %v910
    %v917 = vor.u32 %v915, %v916
    %v918 = vshll.u32 2131351028, %v909
    %v919 = vshrl.u32 2102212464, %v910
    %v920 = vor.u32 %v918, %v919
    %v921 = vshll.u32 2102212464, %v909
    %v922 = vshrl.u32 920167782, %v910
    %v923 = vor.u32 %v921, %v922
    %v924 = vshll.u32 920167782, %v909
    %v925 = vshrl.u32 1326507024, %v910
    %v926 = vor.u32 %v924, %v925
    %vm927 = vcmp.lt.s32.totalorder %v908, 1
    %vm928 = vcmp.lt.s32.totalorder %v908, 2
    %vm929 = vcmp.lt.s32.totalorder %v908, 3
    %vm930 = vcmp.lt.s32.totalorder %v908, 4
    %v931 = vsel %vm927, %v911, %v914
    %v932 = vsel %vm930, %v920, 2102212464
    %v933 = vsel %vm929, %v917, %v932
    %v934 = vsel %vm928, %v931, %v933
    %v935 = vsel %vm927, %v914, %v917
    %v936 = vsel %vm930, %v923, 920167782
    %v937 = vsel %vm929, %v920, %v936
    %v938 = vsel %vm928, %v935, %v937
    %v939 = vsel %vm927, %v917, %v920
    %v940 = vsel %vm930, %v926, 1326507024
    %v941 = vsel %vm929, %v923, %v940
    %v942 = vsel %vm928, %v939, %v941
    %v943 = vshll.u32 %v903, 8
    %v944 = vand.u32 %v943, 65535
    %v945 = vshrl.u32 %v943, 16
    %v946 = vand.u32 %v942, 65535
    %v947 = vshrl.u32 %v942, 16
    %v948 = vmul.u32 %v944, %v946
    %v949 = vmul.u32 %v944, %v947
    %v950 = vmul.u32 %v945, %v946
    %v951 = vmul.u32 %v945, %v947
    %v952 = vshll.u32 %v949, 16
    %v953 = vshrl.u32 %v949, 16
    %v954 = vshll.u32 %v950, 16
    %v955 = vshrl.u32 %v950, 16
    %vm956 = vc.u32 %v948, %v952
    %v957 = vsel %vm956, 1, 0
    %v958 = vadd.s32 %v948, %v952
    %v959 = vadd.s32 %v951, %v957
    %vm960 = vc.u32 %v958, %v954
    %v961 = vsel %vm960, 1, 0
    %v962 = vadd.s32 %v958, %v954
    %v963 = vadd.s32 %v959, %v961
    %v964 = vadd.s32 %v963, %v953
    %v965 = vadd.s32 %v964, %v955
    %v966 = vand.u32 %v943, 65535
    %v967 = vshrl.u32 %v943, 16
    %v968 = vand.u32 %v938, 65535
    %v969 = vshrl.u32 %v938, 16
    %v970 = vmul.u32 %v966, %v968
    %v971 = vmul.u32 %v966, %v969
    %v972 = vmul.u32 %v967, %v968
    %v973 = vmul.u32 %v967, %v969
    %v974 = vshll.u32 %v971, 16
    %v975 = vshrl.u32 %v971, 16
    %v976 = vshll.u32 %v972, 16
    %v977 = vshrl.u32 %v972, 16
    %vm978 = vc.u32 %v970, %v974
    %v979 = vsel %vm978, 1, 0
    %v980 = vadd.s32 %v970, %v974
    %v981 = vadd.s32 %v973, %v979
    %vm982 = vc.u32 %v980, %v976
    %v983 = vsel %vm982, 1, 0
    %v984 = vadd.s32 %v980, %v976
    %v985 = vadd.s32 %v981, %v983
    %v986 = vadd.s32 %v985, %v975
    %v987 = vadd.s32 %v986, %v977
    %v988 = vmul.u32 %v943, %v934
    %v989 = vadd.s32 %v965, %v984
    %vm990 = vc.u32 %v965, %v984
    %v991 = vadd.s32 %v987, 1
    %v992 = vsel %vm990, %v991, %v987
    %v993 = vadd.s32 %v988, %v992
    %v994 = vadd.s32 %v993, 536870912
    %v995 = vshrl.u32 %v994, 30
    %v996 = vshll.u32 %v995, 30
    %v997 = vsub.s32 %v993, %v996
    %vm998 = vcmp.lt.s32.totalorder %v997, 0
    %v999 = vsub.s32 0, %v997
    %v1000 = vsel %vm998, %v999, %v997
    %v1001 = vclz %v1000
    %v1002 = vsub.s32 %v1001, 2
    %vm1003 = vcmp.gt.s32.totalorder 0, %v1002
    %v1004 = vsel %vm1003, 0, %v1002
    %v1005 = vsub.s32 32, %v1004
    %v1006 = vshll.u32 %v997, %v1004
    %v1007 = vshrl.u32 %v989, %v1005
    %v1008 = vor.u32 %v1006, %v1007
    %v1009 = vsub.s32 4294967266, %v1004
    %v1010 = vadd.s32 %v1009, 127
    %v1011 = vshll.u32 %v1010, 23
    %v1012 = vor.u32 4788187, %v1011
    %v1013 = vand.u32 2147483647, %v1012
    %v1015 = vcvt.s32.f32 %v1008
    %v1016 = vmul.f32 %v1015, %v1013
    %v1017 = vxor.u32 %v1016, 2147483648
    %v1018 = vsel %vm897, %v1017, %v1016
    %v1019 = vsub.s32 4, %v995
    %v1020 = vsel %vm897, %v1019, %v995
    %v1021 = vsel %vm896, %v740, %v1018
    %v1022 = vsel %vm896, 0, %v1020
    %v1023 = vmul.f32 %v1021, %v1021
    %v1024 = vmul.f32 %v1023, -0.001358992
    %v1025 = vadd.f32 %v1024, 0.041655596
    %v1026 = vmul.f32 %v1023, %v1025
    %v1027 = vadd.f32 %v1026, -0.4999988
    %v1028 = vmul.f32 %v1023, %v1027
    %v1029 = vadd.f32 1.0, %v1028
    %v1030 = vmul.f32 %v1021, %v1021
    %v1031 = vmul.f32 %v1030, -0.00019511016
    %v1032 = vadd.f32 %v1031, 0.008332121
    %v1033 = vmul.f32 %v1030, %v1032
    %v1034 = vadd.f32 %v1033, -0.16666654
    %v1035 = vmul.f32 %v1030, %v1034
    %v1036 = vadd.f32 %v1035, 1.0
    %v1037 = vmul.f32 %v1036, %v1021
    %vm1038 = vweird.f32 %v740
    %v1039 = vadd.s32 %v1022, 3
    %v1040 = vand.u32 %v1039, 3
    %vm1041 = vcmp.lt.s32.totalorder %v1040, 2
    %vm1042 = vcmp.eq.s32.totalorder %v1040, 0
    %v1043 = vxor.u32 %v1037, 2147483648
    %v1044 = vsel %vm1042, %v1029, %v1043
    %vm1045 = vcmp.eq.s32.totalorder %v1040, 2
    %v1046 = vxor.u32 %v1029, 2147483648
    %v1047 = vsel %vm1045, %v1046, %v1037
    %v1048 = vsel %vm1041, %v1044, %v1047
    %v1049 = vsel %vm1038, nan, %v1048
    %v1050 = vsub.f32 %v894, 1.0
    %1052 = vset.pattern.permute.xlu0 0
    %1053 = vperm.xlu0 %1052, %v1050
    %v1054 = vpop.permute.xlu0 %1053
    %v1056 = vmul.f32 %v680, %v1054
    %v1057 = vadd.f32 %v1056, 1.0
    %1059 = vset.pattern.permute.xlu0 0
    %1060 = vperm.xlu0 %1059, %v1049
    %v1061 = vpop.permute.xlu0 %1060
    %v1063 = vmul.f32 %v680, %v1061
    %v1064 = vmul.f32 %v715, %v1057
    %v1065 = vmul.f32 %v738, %v1063
    %v1066 = vsub.f32 %v1064, %v1065
    %v1067 = vmul.f32 %v715, %v1063
    %v1068 = vmul.f32 %v738, %v1057
    %v1069 = vadd.f32 %v1067, %v1068
    %1070 = vset.pattern.permute.xlu0 1
    %1071 = vperm.xlu0 %1070, %v1050
    %v1072 = vpop.permute.xlu0 %1071
    %v1074 = vmul.f32 %v683, %v1072
    %v1075 = vadd.f32 %v1074, 1.0
    %1076 = vset.pattern.permute.xlu0 1
    %1077 = vperm.xlu0 %1076, %v1049
    %v1078 = vpop.permute.xlu0 %1077
    %v1080 = vmul.f32 %v683, %v1078
    %v1081 = vmul.f32 %v1066, %v1075
    %v1082 = vmul.f32 %v1069, %v1080
    %v1083 = vsub.f32 %v1081, %v1082
    %v1084 = vmul.f32 %v1066, %v1080
    %v1085 = vmul.f32 %v1069, %v1075
    %v1086 = vadd.f32 %v1084, %v1085
    %v1088 = vsel %vm689, %v1083, 0
    %v1091 = vsel %vm693, %v688, 0
    %1093 = vmatpush.msra.mxu0 0.0
    %1094 = vmatpush.msra.mxu0 0.0
    %1095 = vmatpush.msra.mxu0 0.0
    %1096 = vmatpush.msra.mxu0 0.0
    %1097 = vmatpush.msra.mxu0 0.0
    %1098 = vmatpush.msra.mxu0 0.0
    %1099 = vmatpush.msra.mxu0 0.0
    %1100 = vmatpush.msra.mxu0 0.0
    %1101 = vmatpush.msra.mxu0 0.0
    %1102 = vmatpush.msra.mxu0 0.0
    %1103 = vmatpush.msra.mxu0 0.0
    %1104 = vmatpush.msra.mxu0 0.0
    %1105 = vmatpush.msra.mxu0 0.0
    %1106 = vmatpush.msra.mxu0 0.0
    %1107 = vmatpush.msra.mxu0 0.0
    %1108 = vmatpush.msra.mxu0 %v1091
    %1109 = vmatmul.f32.gmra.mxu0 %v1088
    %v1110 = vpop.f32.mrf.mxu0
    %v1111 = vadd.f32 0.0, %v1110
    %1112 = vdwg.mxu0
    %v1114 = vsel %vm689, %v1086, 0
    %1116 = vmatpush.msra.mxu0 0.0
    %1117 = vmatpush.msra.mxu0 0.0
    %1118 = vmatpush.msra.mxu0 0.0
    %1119 = vmatpush.msra.mxu0 0.0
    %1120 = vmatpush.msra.mxu0 0.0
    %1121 = vmatpush.msra.mxu0 0.0
    %1122 = vmatpush.msra.mxu0 0.0
    %1123 = vmatpush.msra.mxu0 0.0
    %1124 = vmatpush.msra.mxu0 0.0
    %1125 = vmatpush.msra.mxu0 0.0
    %1126 = vmatpush.msra.mxu0 0.0
    %1127 = vmatpush.msra.mxu0 0.0
    %1128 = vmatpush.msra.mxu0 0.0
    %1129 = vmatpush.msra.mxu0 0.0
    %1130 = vmatpush.msra.mxu0 0.0
    %1131 = vmatpush.msra.mxu0 %v1091
    %1132 = vmatmul.f32.gmra.mxu0 %v1114
    %v1133 = vpop.f32.mrf.mxu0
    %v1134 = vadd.f32 0.0, %v1133
    %1135 = vdwg.mxu0
    %v1136 = vsub.f32 3.1415927, %v672
    %v1137 = vmul.f32 %v1136, 2.0
    %1139 = vrot.lane.b32.xlu0 %v1136, 127
    %v1140 = vpop.permute.xlu0 %1139
    %v1142 = vmul.f32 %v1137, %v1140
    %v1143 = vand.u32 2147483647, %v1142
    %vm1144 = vcmp.le.f32.partialorder %v1143, 0.7853982
    %vm1145 = vcmp.lt.s32.totalorder %v1142, 0
    %v1146 = vand.u32 %v1142, 2139095040
    %v1147 = vshrl.u32 %v1146, 23
    %v1148 = vsub.s32 %v1147, 127
    %v1149 = vand.u32 2147483647, %v1142
    %v1150 = vand.u32 %v1149, 8388607
    %v1151 = vor.u32 %v1150, 8388608
    %v1152 = vsub.s32 0, %v1151
    %v1153 = vadd.s32 %v1148, 1
    %vm1154 = vcmp.gt.s32.totalorder %v1153, 0
    %v1155 = vsel %vm1154, %v1153, 0
    %v1156 = vshrl.u32 %v1155, 5
    %v1157 = vand.u32 %v1155, 31
    %v1158 = vsub.s32 32, %v1157
    %v1159 = vshrl.u32 683565275, %v1158
    %v1160 = vshll.u32 683565275, %v1157
    %v1161 = vshrl.u32 2475754826, %v1158
    %v1162 = vor.u32 %v1160, %v1161
    %v1163 = vshll.u32 2475754826, %v1157
    %v1164 = vshrl.u32 2131351028, %v1158
    %v1165 = vor.u32 %v1163, %v1164
    %v1166 = vshll.u32 2131351028, %v1157
    %v1167 = vshrl.u32 2102212464, %v1158
    %v1168 = vor.u32 %v1166, %v1167
    %v1169 = vshll.u32 2102212464, %v1157
    %v1170 = vshrl.u32 920167782, %v1158
    %v1171 = vor.u32 %v1169, %v1170
    %v1172 = vshll.u32 920167782, %v1157
    %v1173 = vshrl.u32 1326507024, %v1158
    %v1174 = vor.u32 %v1172, %v1173
    %vm1175 = vcmp.lt.s32.totalorder %v1156, 1
    %vm1176 = vcmp.lt.s32.totalorder %v1156, 2
    %vm1177 = vcmp.lt.s32.totalorder %v1156, 3
    %vm1178 = vcmp.lt.s32.totalorder %v1156, 4
    %v1179 = vsel %vm1175, %v1159, %v1162
    %v1180 = vsel %vm1178, %v1168, 2102212464
    %v1181 = vsel %vm1177, %v1165, %v1180
    %v1182 = vsel %vm1176, %v1179, %v1181
    %v1183 = vsel %vm1175, %v1162, %v1165
    %v1184 = vsel %vm1178, %v1171, 920167782
    %v1185 = vsel %vm1177, %v1168, %v1184
    %v1186 = vsel %vm1176, %v1183, %v1185
    %v1187 = vsel %vm1175, %v1165, %v1168
    %v1188 = vsel %vm1178, %v1174, 1326507024
    %v1189 = vsel %vm1177, %v1171, %v1188
    %v1190 = vsel %vm1176, %v1187, %v1189
    %v1191 = vshll.u32 %v1151, 8
    %v1192 = vand.u32 %v1191, 65535
    %v1193 = vshrl.u32 %v1191, 16
    %v1194 = vand.u32 %v1190, 65535
    %v1195 = vshrl.u32 %v1190, 16
    %v1196 = vmul.u32 %v1192, %v1194
    %v1197 = vmul.u32 %v1192, %v1195
    %v1198 = vmul.u32 %v1193, %v1194
    %v1199 = vmul.u32 %v1193, %v1195
    %v1200 = vshll.u32 %v1197, 16
    %v1201 = vshrl.u32 %v1197, 16
    %v1202 = vshll.u32 %v1198, 16
    %v1203 = vshrl.u32 %v1198, 16
    %vm1204 = vc.u32 %v1196, %v1200
    %v1205 = vsel %vm1204, 1, 0
    %v1206 = vadd.s32 %v1196, %v1200
    %v1207 = vadd.s32 %v1199, %v1205
    %vm1208 = vc.u32 %v1206, %v1202
    %v1209 = vsel %vm1208, 1, 0
    %v1210 = vadd.s32 %v1206, %v1202
    %v1211 = vadd.s32 %v1207, %v1209
    %v1212 = vadd.s32 %v1211, %v1201
    %v1213 = vadd.s32 %v1212, %v1203
    %v1214 = vand.u32 %v1191, 65535
    %v1215 = vshrl.u32 %v1191, 16
    %v1216 = vand.u32 %v1186, 65535
    %v1217 = vshrl.u32 %v1186, 16
    %v1218 = vmul.u32 %v1214, %v1216
    %v1219 = vmul.u32 %v1214, %v1217
    %v1220 = vmul.u32 %v1215, %v1216
    %v1221 = vmul.u32 %v1215, %v1217
    %v1222 = vshll.u32 %v1219, 16
    %v1223 = vshrl.u32 %v1219, 16
    %v1224 = vshll.u32 %v1220, 16
    %v1225 = vshrl.u32 %v1220, 16
    %vm1226 = vc.u32 %v1218, %v1222
    %v1227 = vsel %vm1226, 1, 0
    %v1228 = vadd.s32 %v1218, %v1222
    %v1229 = vadd.s32 %v1221, %v1227
    %vm1230 = vc.u32 %v1228, %v1224
    %v1231 = vsel %vm1230, 1, 0
    %v1232 = vadd.s32 %v1228, %v1224
    %v1233 = vadd.s32 %v1229, %v1231
    %v1234 = vadd.s32 %v1233, %v1223
    %v1235 = vadd.s32 %v1234, %v1225
    %v1236 = vmul.u32 %v1191, %v1182
    %v1237 = vadd.s32 %v1213, %v1232
    %vm1238 = vc.u32 %v1213, %v1232
    %v1239 = vadd.s32 %v1235, 1
    %v1240 = vsel %vm1238, %v1239, %v1235
    %v1241 = vadd.s32 %v1236, %v1240
    %v1242 = vadd.s32 %v1241, 536870912
    %v1243 = vshrl.u32 %v1242, 30
    %v1244 = vshll.u32 %v1243, 30
    %v1245 = vsub.s32 %v1241, %v1244
    %vm1246 = vcmp.lt.s32.totalorder %v1245, 0
    %v1247 = vsub.s32 0, %v1245
    %v1248 = vsel %vm1246, %v1247, %v1245
    %v1249 = vclz %v1248
    %v1250 = vsub.s32 %v1249, 2
    %vm1251 = vcmp.gt.s32.totalorder 0, %v1250
    %v1252 = vsel %vm1251, 0, %v1250
    %v1253 = vsub.s32 32, %v1252
    %v1254 = vshll.u32 %v1245, %v1252
    %v1255 = vshrl.u32 %v1237, %v1253
    %v1256 = vor.u32 %v1254, %v1255
    %v1257 = vsub.s32 4294967266, %v1252
    %v1258 = vadd.s32 %v1257, 127
    %v1259 = vshll.u32 %v1258, 23
    %v1260 = vor.u32 4788187, %v1259
    %v1261 = vand.u32 2147483647, %v1260
    %v1263 = vcvt.s32.f32 %v1256
    %v1264 = vmul.f32 %v1263, %v1261
    %v1265 = vxor.u32 %v1264, 2147483648
    %v1266 = vsel %vm1145, %v1265, %v1264
    %v1267 = vsub.s32 4, %v1243
    %v1268 = vsel %vm1145, %v1267, %v1243
    %v1269 = vsel %vm1144, %v1142, %v1266
    %v1270 = vsel %vm1144, 0, %v1268
    %v1271 = vmul.f32 %v1269, %v1269
    %v1272 = vmul.f32 %v1271, -0.001358992
    %v1273 = vadd.f32 %v1272, 0.041655596
    %v1274 = vmul.f32 %v1271, %v1273
    %v1275 = vadd.f32 %v1274, -0.4999988
    %v1276 = vmul.f32 %v1271, %v1275
    %v1277 = vadd.f32 1.0, %v1276
    %v1278 = vmul.f32 %v1269, %v1269
    %v1279 = vmul.f32 %v1278, -0.00019511016
    %v1280 = vadd.f32 %v1279, 0.008332121
    %v1281 = vmul.f32 %v1278, %v1280
    %v1282 = vadd.f32 %v1281, -0.16666654
    %v1283 = vmul.f32 %v1278, %v1282
    %v1284 = vadd.f32 %v1283, 1.0
    %v1285 = vmul.f32 %v1284, %v1269
    %vm1286 = vweird.f32 %v1142
    %v1287 = vand.u32 %v1270, 3
    %vm1288 = vcmp.lt.s32.totalorder %v1287, 2
    %vm1289 = vcmp.eq.s32.totalorder %v1287, 0
    %v1290 = vxor.u32 %v1285, 2147483648
    %v1291 = vsel %vm1289, %v1277, %v1290
    %vm1292 = vcmp.eq.s32.totalorder %v1287, 2
    %v1293 = vxor.u32 %v1277, 2147483648
    %v1294 = vsel %vm1292, %v1293, %v1285
    %v1295 = vsel %vm1288, %v1291, %v1294
    %v1296 = vsel %vm1286, nan, %v1295
    %v1297 = vand.u32 2147483647, %v1142
    %vm1298 = vcmp.le.f32.partialorder %v1297, 0.7853982
    %vm1299 = vcmp.lt.s32.totalorder %v1142, 0
    %v1300 = vand.u32 %v1142, 2139095040
    %v1301 = vshrl.u32 %v1300, 23
    %v1302 = vsub.s32 %v1301, 127
    %v1303 = vand.u32 2147483647, %v1142
    %v1304 = vand.u32 %v1303, 8388607
    %v1305 = vor.u32 %v1304, 8388608
    %v1306 = vsub.s32 0, %v1305
    %v1307 = vadd.s32 %v1302, 1
    %vm1308 = vcmp.gt.s32.totalorder %v1307, 0
    %v1309 = vsel %vm1308, %v1307, 0
    %v1310 = vshrl.u32 %v1309, 5
    %v1311 = vand.u32 %v1309, 31
    %v1312 = vsub.s32 32, %v1311
    %v1313 = vshrl.u32 683565275, %v1312
    %v1314 = vshll.u32 683565275, %v1311
    %v1315 = vshrl.u32 2475754826, %v1312
    %v1316 = vor.u32 %v1314, %v1315
    %v1317 = vshll.u32 2475754826, %v1311
    %v1318 = vshrl.u32 2131351028, %v1312
    %v1319 = vor.u32 %v1317, %v1318
    %v1320 = vshll.u32 2131351028, %v1311
    %v1321 = vshrl.u32 2102212464, %v1312
    %v1322 = vor.u32 %v1320, %v1321
    %v1323 = vshll.u32 2102212464, %v1311
    %v1324 = vshrl.u32 920167782, %v1312
    %v1325 = vor.u32 %v1323, %v1324
    %v1326 = vshll.u32 920167782, %v1311
    %v1327 = vshrl.u32 1326507024, %v1312
    %v1328 = vor.u32 %v1326, %v1327
    %vm1329 = vcmp.lt.s32.totalorder %v1310, 1
    %vm1330 = vcmp.lt.s32.totalorder %v1310, 2
    %vm1331 = vcmp.lt.s32.totalorder %v1310, 3
    %vm1332 = vcmp.lt.s32.totalorder %v1310, 4
    %v1333 = vsel %vm1329, %v1313, %v1316
    %v1334 = vsel %vm1332, %v1322, 2102212464
    %v1335 = vsel %vm1331, %v1319, %v1334
    %v1336 = vsel %vm1330, %v1333, %v1335
    %v1337 = vsel %vm1329, %v1316, %v1319
    %v1338 = vsel %vm1332, %v1325, 920167782
    %v1339 = vsel %vm1331, %v1322, %v1338
    %v1340 = vsel %vm1330, %v1337, %v1339
    %v1341 = vsel %vm1329, %v1319, %v1322
    %v1342 = vsel %vm1332, %v1328, 1326507024
    %v1343 = vsel %vm1331, %v1325, %v1342
    %v1344 = vsel %vm1330, %v1341, %v1343
    %v1345 = vshll.u32 %v1305, 8
    %v1346 = vand.u32 %v1345, 65535
    %v1347 = vshrl.u32 %v1345, 16
    %v1348 = vand.u32 %v1344, 65535
    %v1349 = vshrl.u32 %v1344, 16
    %v1350 = vmul.u32 %v1346, %v1348
    %v1351 = vmul.u32 %v1346, %v1349
    %v1352 = vmul.u32 %v1347, %v1348
    %v1353 = vmul.u32 %v1347, %v1349
    %v1354 = vshll.u32 %v1351, 16
    %v1355 = vshrl.u32 %v1351, 16
    %v1356 = vshll.u32 %v1352, 16
    %v1357 = vshrl.u32 %v1352, 16
    %vm1358 = vc.u32 %v1350, %v1354
    %v1359 = vsel %vm1358, 1, 0
    %v1360 = vadd.s32 %v1350, %v1354
    %v1361 = vadd.s32 %v1353, %v1359
    %vm1362 = vc.u32 %v1360, %v1356
    %v1363 = vsel %vm1362, 1, 0
    %v1364 = vadd.s32 %v1360, %v1356
    %v1365 = vadd.s32 %v1361, %v1363
    %v1366 = vadd.s32 %v1365, %v1355
    %v1367 = vadd.s32 %v1366, %v1357
    %v1368 = vand.u32 %v1345, 65535
    %v1369 = vshrl.u32 %v1345, 16
    %v1370 = vand.u32 %v1340, 65535
    %v1371 = vshrl.u32 %v1340, 16
    %v1372 = vmul.u32 %v1368, %v1370
    %v1373 = vmul.u32 %v1368, %v1371
    %v1374 = vmul.u32 %v1369, %v1370
    %v1375 = vmul.u32 %v1369, %v1371
    %v1376 = vshll.u32 %v1373, 16
    %v1377 = vshrl.u32 %v1373, 16
    %v1378 = vshll.u32 %v1374, 16
    %v1379 = vshrl.u32 %v1374, 16
    %vm1380 = vc.u32 %v1372, %v1376
    %v1381 = vsel %vm1380, 1, 0
    %v1382 = vadd.s32 %v1372, %v1376
    %v1383 = vadd.s32 %v1375, %v1381
    %vm1384 = vc.u32 %v1382, %v1378
    %v1385 = vsel %vm1384, 1, 0
    %v1386 = vadd.s32 %v1382, %v1378
    %v1387 = vadd.s32 %v1383, %v1385
    %v1388 = vadd.s32 %v1387, %v1377
    %v1389 = vadd.s32 %v1388, %v1379
    %v1390 = vmul.u32 %v1345, %v1336
    %v1391 = vadd.s32 %v1367, %v1386
    %vm1392 = vc.u32 %v1367, %v1386
    %v1393 = vadd.s32 %v1389, 1
    %v1394 = vsel %vm1392, %v1393, %v1389
    %v1395 = vadd.s32 %v1390, %v1394
    %v1396 = vadd.s32 %v1395, 536870912
    %v1397 = vshrl.u32 %v1396, 30
    %v1398 = vshll.u32 %v1397, 30
    %v1399 = vsub.s32 %v1395, %v1398
    %vm1400 = vcmp.lt.s32.totalorder %v1399, 0
    %v1401 = vsub.s32 0, %v1399
    %v1402 = vsel %vm1400, %v1401, %v1399
    %v1403 = vclz %v1402
    %v1404 = vsub.s32 %v1403, 2
    %vm1405 = vcmp.gt.s32.totalorder 0, %v1404
    %v1406 = vsel %vm1405, 0, %v1404
    %v1407 = vsub.s32 32, %v1406
    %v1408 = vshll.u32 %v1399, %v1406
    %v1409 = vshrl.u32 %v1391, %v1407
    %v1410 = vor.u32 %v1408, %v1409
    %v1411 = vsub.s32 4294967266, %v1406
    %v1412 = vadd.s32 %v1411, 127
    %v1413 = vshll.u32 %v1412, 23
    %v1414 = vor.u32 4788187, %v1413
    %v1415 = vand.u32 2147483647, %v1414
    %v1417 = vcvt.s32.f32 %v1410
    %v1418 = vmul.f32 %v1417, %v1415
    %v1419 = vxor.u32 %v1418, 2147483648
    %v1420 = vsel %vm1299, %v1419, %v1418
    %v1421 = vsub.s32 4, %v1397
    %v1422 = vsel %vm1299, %v1421, %v1397
    %v1423 = vsel %vm1298, %v1142, %v1420
    %v1424 = vsel %vm1298, 0, %v1422
    %v1425 = vmul.f32 %v1423, %v1423
    %v1426 = vmul.f32 %v1425, -0.001358992
    %v1427 = vadd.f32 %v1426, 0.041655596
    %v1428 = vmul.f32 %v1425, %v1427
    %v1429 = vadd.f32 %v1428, -0.4999988
    %v1430 = vmul.f32 %v1425, %v1429
    %v1431 = vadd.f32 1.0, %v1430
    %v1432 = vmul.f32 %v1423, %v1423
    %v1433 = vmul.f32 %v1432, -0.00019511016
    %v1434 = vadd.f32 %v1433, 0.008332121
    %v1435 = vmul.f32 %v1432, %v1434
    %v1436 = vadd.f32 %v1435, -0.16666654
    %v1437 = vmul.f32 %v1432, %v1436
    %v1438 = vadd.f32 %v1437, 1.0
    %v1439 = vmul.f32 %v1438, %v1423
    %vm1440 = vweird.f32 %v1142
    %v1441 = vadd.s32 %v1424, 3
    %v1442 = vand.u32 %v1441, 3
    %vm1443 = vcmp.lt.s32.totalorder %v1442, 2
    %vm1444 = vcmp.eq.s32.totalorder %v1442, 0
    %v1445 = vxor.u32 %v1439, 2147483648
    %v1446 = vsel %vm1444, %v1431, %v1445
    %vm1447 = vcmp.eq.s32.totalorder %v1442, 2
    %v1448 = vxor.u32 %v1431, 2147483648
    %v1449 = vsel %vm1447, %v1448, %v1439
    %v1450 = vsel %vm1443, %v1446, %v1449
    %v1451 = vsel %vm1440, nan, %v1450
    %v1452 = vsub.f32 %v1296, 1.0
    %1454 = vset.pattern.permute.xlu0 0
    %1455 = vperm.xlu0 %1454, %v1452
    %v1456 = vpop.permute.xlu0 %1455
    %v1458 = vmul.f32 %v683, %v1456
    %v1459 = vadd.f32 %v1458, 1.0
    %1461 = vset.pattern.permute.xlu0 0
    %1462 = vperm.xlu0 %1461, %v1451
    %v1463 = vpop.permute.xlu0 %1462
    %v1465 = vmul.f32 %v683, %v1463
    %v1466 = vmul.f32 %v1111, %v1459
    %v1467 = vmul.f32 %v1134, %v1465
    %v1468 = vsub.f32 %v1466, %v1467
    %v1469 = vmul.f32 %v1111, %v1465
    %v1470 = vmul.f32 %v1134, %v1459
    %v1471 = vadd.f32 %v1469, %v1470
    %v1473 = vsel %vm689, %v1468, 0
    %1475 = vmatpush.msra.mxu0 0.0
    %1476 = vmatpush.msra.mxu0 0.0
    %1477 = vmatpush.msra.mxu0 0.0
    %1478 = vmatpush.msra.mxu0 0.0
    %1479 = vmatpush.msra.mxu0 0.0
    %1480 = vmatpush.msra.mxu0 0.0
    %1481 = vmatpush.msra.mxu0 0.0
    %1482 = vmatpush.msra.mxu0 0.0
    %1483 = vmatpush.msra.mxu0 0.0
    %1484 = vmatpush.msra.mxu0 0.0
    %1485 = vmatpush.msra.mxu0 0.0
    %1486 = vmatpush.msra.mxu0 0.0
    %1487 = vmatpush.msra.mxu0 0.0
    %1488 = vmatpush.msra.mxu0 0.0
    %1489 = vmatpush.msra.mxu0 0.0
    %1490 = vmatpush.msra.mxu0 %v1091
    %1491 = vmatmul.f32.gmra.mxu0 %v1473
    %v1492 = vpop.f32.mrf.mxu0
    %v1493 = vadd.f32 0.0, %v1492
    %1494 = vdwg.mxu0
    %v1496 = vsel %vm689, %v1471, 0
    %1498 = vmatpush.msra.mxu0 0.0
    %1499 = vmatpush.msra.mxu0 0.0
    %1500 = vmatpush.msra.mxu0 0.0
    %1501 = vmatpush.msra.mxu0 0.0
    %1502 = vmatpush.msra.mxu0 0.0
    %1503 = vmatpush.msra.mxu0 0.0
    %1504 = vmatpush.msra.mxu0 0.0
    %1505 = vmatpush.msra.mxu0 0.0
    %1506 = vmatpush.msra.mxu0 0.0
    %1507 = vmatpush.msra.mxu0 0.0
    %1508 = vmatpush.msra.mxu0 0.0
    %1509 = vmatpush.msra.mxu0 0.0
    %1510 = vmatpush.msra.mxu0 0.0
    %1511 = vmatpush.msra.mxu0 0.0
    %1512 = vmatpush.msra.mxu0 0.0
    %1513 = vmatpush.msra.mxu0 %v1091
    %1514 = vmatmul.f32.gmra.mxu0 %v1496
    %v1515 = vpop.f32.mrf.mxu0
    %v1516 = vadd.f32 0.0, %v1515
    %1517 = vdwg.mxu0
    %v1519 = vsel %vm689, %v1493, 0
    %1521 = vmatpush.msra.mxu0 0.0
    %1522 = vmatpush.msra.mxu0 0.0
    %1523 = vmatpush.msra.mxu0 0.0
    %1524 = vmatpush.msra.mxu0 0.0
    %1525 = vmatpush.msra.mxu0 0.0
    %1526 = vmatpush.msra.mxu0 0.0
    %1527 = vmatpush.msra.mxu0 0.0
    %1528 = vmatpush.msra.mxu0 0.0
    %1529 = vmatpush.msra.mxu0 0.0
    %1530 = vmatpush.msra.mxu0 0.0
    %1531 = vmatpush.msra.mxu0 0.0
    %1532 = vmatpush.msra.mxu0 0.0
    %1533 = vmatpush.msra.mxu0 0.0
    %1534 = vmatpush.msra.mxu0 0.0
    %1535 = vmatpush.msra.mxu0 0.0
    %1536 = vmatpush.msra.mxu0 %v695
    %1537 = vmatmul.f32.gmra.mxu0 %v1519
    %v1538 = vpop.f32.mrf.mxu0
    %v1539 = vadd.f32 0.0, %v1538
    %1540 = vdwg.mxu0
    %v1542 = vsel %vm689, %v1516, 0
    %1544 = vmatpush.msra.mxu0 0.0
    %1545 = vmatpush.msra.mxu0 0.0
    %1546 = vmatpush.msra.mxu0 0.0
    %1547 = vmatpush.msra.mxu0 0.0
    %1548 = vmatpush.msra.mxu0 0.0
    %1549 = vmatpush.msra.mxu0 0.0
    %1550 = vmatpush.msra.mxu0 0.0
    %1551 = vmatpush.msra.mxu0 0.0
    %1552 = vmatpush.msra.mxu0 0.0
    %1553 = vmatpush.msra.mxu0 0.0
    %1554 = vmatpush.msra.mxu0 0.0
    %1555 = vmatpush.msra.mxu0 0.0
    %1556 = vmatpush.msra.mxu0 0.0
    %1557 = vmatpush.msra.mxu0 0.0
    %1558 = vmatpush.msra.mxu0 0.0
    %1559 = vmatpush.msra.mxu0 %v695
    %1560 = vmatmul.f32.gmra.mxu0 %v1542
    %v1561 = vpop.f32.mrf.mxu0
    %v1562 = vadd.f32 0.0, %v1561
    %1563 = vdwg.mxu0
    %v1564 = vmul.f32 %v1539, %v1057
    %v1565 = vmul.f32 %v1562, %v1063
    %v1566 = vsub.f32 %v1564, %v1565
    %v1567 = vmul.f32 %v1539, %v1063
    %v1568 = vmul.f32 %v1562, %v1057
    %v1569 = vadd.f32 %v1567, %v1568
    %v1570 = vmul.f32 %v1566, %v1075
    %v1571 = vmul.f32 %v1569, %v1080
    %v1572 = vsub.f32 %v1570, %v1571
    %v1573 = vmul.f32 %v1566, %v1080
    %v1574 = vmul.f32 %v1569, %v1075
    %v1575 = vadd.f32 %v1573, %v1574
    %v1577 = vsel %vm689, %v1572, 0
    %1579 = vmatpush.msra.mxu0 0.0
    %1580 = vmatpush.msra.mxu0 0.0
    %1581 = vmatpush.msra.mxu0 0.0
    %1582 = vmatpush.msra.mxu0 0.0
    %1583 = vmatpush.msra.mxu0 0.0
    %1584 = vmatpush.msra.mxu0 0.0
    %1585 = vmatpush.msra.mxu0 0.0
    %1586 = vmatpush.msra.mxu0 0.0
    %1587 = vmatpush.msra.mxu0 0.0
    %1588 = vmatpush.msra.mxu0 0.0
    %1589 = vmatpush.msra.mxu0 0.0
    %1590 = vmatpush.msra.mxu0 0.0
    %1591 = vmatpush.msra.mxu0 0.0
    %1592 = vmatpush.msra.mxu0 0.0
    %1593 = vmatpush.msra.mxu0 0.0
    %1594 = vmatpush.msra.mxu0 %v1091
    %1595 = vmatmul.f32.gmra.mxu0 %v1577
    %v1596 = vpop.f32.mrf.mxu0
    %v1597 = vadd.f32 0.0, %v1596
    %1598 = vdwg.mxu0
    %v1600 = vsel %vm689, %v1575, 0
    %1602 = vmatpush.msra.mxu0 0.0
    %1603 = vmatpush.msra.mxu0 0.0
    %1604 = vmatpush.msra.mxu0 0.0
    %1605 = vmatpush.msra.mxu0 0.0
    %1606 = vmatpush.msra.mxu0 0.0
    %1607 = vmatpush.msra.mxu0 0.0
    %1608 = vmatpush.msra.mxu0 0.0
    %1609 = vmatpush.msra.mxu0 0.0
    %1610 = vmatpush.msra.mxu0 0.0
    %1611 = vmatpush.msra.mxu0 0.0
    %1612 = vmatpush.msra.mxu0 0.0
    %1613 = vmatpush.msra.mxu0 0.0
    %1614 = vmatpush.msra.mxu0 0.0
    %1615 = vmatpush.msra.mxu0 0.0
    %1616 = vmatpush.msra.mxu0 0.0
    %1617 = vmatpush.msra.mxu0 %v1091
    %1618 = vmatmul.f32.gmra.mxu0 %v1600
    %v1619 = vpop.f32.mrf.mxu0
    %v1620 = vadd.f32 0.0, %v1619
    %1621 = vdwg.mxu0
    %v1622 = vmul.f32 %v1597, %v1459
    %v1623 = vmul.f32 %v1620, %v1465
    %v1624 = vsub.f32 %v1622, %v1623
    %v1625 = vmul.f32 %v1597, %v1465
    %v1626 = vmul.f32 %v1620, %v1459
    %v1627 = vadd.f32 %v1625, %v1626
    %v1629 = vsel %vm689, %v1624, 0
    %1631 = vmatpush.msra.mxu0 0.0
    %1632 = vmatpush.msra.mxu0 0.0
    %1633 = vmatpush.msra.mxu0 0.0
    %1634 = vmatpush.msra.mxu0 0.0
    %1635 = vmatpush.msra.mxu0 0.0
    %1636 = vmatpush.msra.mxu0 0.0
    %1637 = vmatpush.msra.mxu0 0.0
    %1638 = vmatpush.msra.mxu0 0.0
    %1639 = vmatpush.msra.mxu0 0.0
    %1640 = vmatpush.msra.mxu0 0.0
    %1641 = vmatpush.msra.mxu0 0.0
    %1642 = vmatpush.msra.mxu0 0.0
    %1643 = vmatpush.msra.mxu0 0.0
    %1644 = vmatpush.msra.mxu0 0.0
    %1645 = vmatpush.msra.mxu0 0.0
    %1646 = vmatpush.msra.mxu0 %v1091
    %1647 = vmatmul.f32.gmra.mxu0 %v1629
    %v1648 = vpop.f32.mrf.mxu0
    %v1649 = vadd.f32 0.0, %v1648
    %1650 = vdwg.mxu0
    %v1652 = vsel %vm689, %v1627, 0
    %1654 = vmatpush.msra.mxu0 0.0
    %1655 = vmatpush.msra.mxu0 0.0
    %1656 = vmatpush.msra.mxu0 0.0
    %1657 = vmatpush.msra.mxu0 0.0
    %1658 = vmatpush.msra.mxu0 0.0
    %1659 = vmatpush.msra.mxu0 0.0
    %1660 = vmatpush.msra.mxu0 0.0
    %1661 = vmatpush.msra.mxu0 0.0
    %1662 = vmatpush.msra.mxu0 0.0
    %1663 = vmatpush.msra.mxu0 0.0
    %1664 = vmatpush.msra.mxu0 0.0
    %1665 = vmatpush.msra.mxu0 0.0
    %1666 = vmatpush.msra.mxu0 0.0
    %1667 = vmatpush.msra.mxu0 0.0
    %1668 = vmatpush.msra.mxu0 0.0
    %1669 = vmatpush.msra.mxu0 %v1091
    %1670 = vmatmul.f32.gmra.mxu0 %v1652
    %v1671 = vpop.f32.mrf.mxu0
    %v1672 = vadd.f32 0.0, %v1671
    %1673 = vdwg.mxu0
    %v1674 = vld [vmem:[%s9] sm:$0xf]
    %v1676 = vsel %vm689, %v1649, 0
    %v1679 = vsel %vm693, %v1674, 0
    %1681 = vmatpush.msra.mxu0 0.0
    %1682 = vmatpush.msra.mxu0 0.0
    %1683 = vmatpush.msra.mxu0 0.0
    %1684 = vmatpush.msra.mxu0 0.0
    %1685 = vmatpush.msra.mxu0 0.0
    %1686 = vmatpush.msra.mxu0 0.0
    %1687 = vmatpush.msra.mxu0 0.0
    %1688 = vmatpush.msra.mxu0 0.0
    %1689 = vmatpush.msra.mxu0 0.0
    %1690 = vmatpush.msra.mxu0 0.0
    %1691 = vmatpush.msra.mxu0 0.0
    %1692 = vmatpush.msra.mxu0 0.0
    %1693 = vmatpush.msra.mxu0 0.0
    %1694 = vmatpush.msra.mxu0 0.0
    %1695 = vmatpush.msra.mxu0 0.0
    %1696 = vmatpush.msra.mxu0 %v1679
    %1697 = vmatmul.f32.gmra.mxu0 %v1676
    %v1698 = vpop.f32.mrf.mxu0
    %v1699 = vadd.f32 0.0, %v1698
    %1700 = vdwg.mxu0
    %v1702 = vsel %vm689, %v1672, 0
    %1704 = vmatpush.msra.mxu0 0.0
    %1705 = vmatpush.msra.mxu0 0.0
    %1706 = vmatpush.msra.mxu0 0.0
    %1707 = vmatpush.msra.mxu0 0.0
    %1708 = vmatpush.msra.mxu0 0.0
    %1709 = vmatpush.msra.mxu0 0.0
    %1710 = vmatpush.msra.mxu0 0.0
    %1711 = vmatpush.msra.mxu0 0.0
    %1712 = vmatpush.msra.mxu0 0.0
    %1713 = vmatpush.msra.mxu0 0.0
    %1714 = vmatpush.msra.mxu0 0.0
    %1715 = vmatpush.msra.mxu0 0.0
    %1716 = vmatpush.msra.mxu0 0.0
    %1717 = vmatpush.msra.mxu0 0.0
    %1718 = vmatpush.msra.mxu0 0.0
    %1719 = vmatpush.msra.mxu0 %v1679
    %1720 = vmatmul.f32.gmra.mxu0 %v1702
    %v1721 = vpop.f32.mrf.mxu0
    %v1722 = vadd.f32 0.0, %v1721
    %1723 = vdwg.mxu0
    %v1724 = vmul.f32 %v680, 2.0
    %v1725 = vsub.f32 1.0, %v1724
    %v1726 = vmul.f32 %v683, 2.0
    %v1727 = vsub.f32 1.0, %v1726
    %v1728 = vmul.f32 %v1725, %v1727
    %v1729 = vmul.f32 %v1699, %v1699
    %v1730 = vmul.f32 %v1722, %v1722
    %v1731 = vadd.f32 %v1729, %v1730
    %v1732 = vmul.f32 %v1731, %v1728
    %vm1733 = vcmask 25600
    %v1734 = vsel %vm1733, %v1732, 0.0
    %1735 = vadd.xlane.f32.xlu0 %v1734
    %v1736 = vpop.xlane.xlu0 %1735
    %s1737 = sld [smem:[#allocation2]]
    %v1738 = vstv %s1737
    %v1739 = vmul.f32 %v1736, %v1738
    %s1740 = sld [smem:[#allocation2 + $0x1]]
    %v1741 = vstv %s1740
    %v1742 = vadd.f32 %v1739, %v1741
    %v1743 = vsub.f32 1.0, %v1742
    %v1744 = vsel %vm684, %v1742, %v1743
    %vm1745 = vcmask 9216
    %1746 = vst.msk [vmem:[#allocation5] sm:$0x3] %vm1745, %v1744
    // Predicated region
    $region50: #{net_forward.3} parent=1 // pred_check
      _
    $region51: #{net_forward.3} parent=1 // pred_check_branch
      %1748 = sbr.rel (0) target = $region53
    $region52: #{net_forward.3} parent=1 // pred_region
      %1750 = vsyncadd [#allocation3], 0
      %s1752 = sshll.u32 [#allocation5], 4
      %s1753 = int_to_ptr.vmem [resolvable:$true] %s1752
      %s1754 = sshll.u32 %s11, 4
      %s1755 = int_to_ptr.hbm [resolvable:$true] %s1754
      %1757 = dma.vmem_to_hbm [thread:$0]  %s1753, 32, %s1755, [#allocation3]
    $region53: #{net_forward.3} parent=1 // pred_fallthru
      _
    // Predicated region
    $region54: #{net_forward.3} parent=1 // pred_check
      _
    $region55: #{net_forward.3} parent=1 // pred_check_branch
      %1759 = sbr.rel (0) target = $region57
    $region56: #{net_forward.3} parent=1 // pred_region
      %1761 = dma.done [#allocation3], 32
    $region57: #{net_forward.3} parent=1 // pred_fallthru
      _
    %1762 = vsyncpa [#allocation3], 1
    %1763 = vsyncpa [#allocation4], 1

</llo_original>
